<compile_context>
chip_gen: v7x
topology: tpu7x:2x2x1
jax: 0.10.0
libtpu: 0.0.40
codegen_flags: <defaults>
</compile_context>

<pallas_src>
import jax
import jax.numpy as jnp
from jax.experimental import pallas as pl
from jax.experimental.pallas import tpu as pltpu

EPS = 1e-5
COMPUTE_DTYPE = jnp.bfloat16              # native MXU dtype on v5e/v6e/v7x
_VMEM_LIMIT = 32 * 1024 * 1024            # safe on v5e/v6e/v7x


def _pick_row_tile(m):
    """Largest row tile that divides M and leaves >=2 grid steps (pipelining)."""
    for t in (1024, 512, 256, 128, 64, 32, 16, 8):
        if m % t == 0 and m // t >= 2:
            return t
    return m


def _compiler_params():
    return pltpu.CompilerParams(
        dimension_semantics=("parallel",),      # per-tile stats -> no cross-step state
        vmem_limit_bytes=_VMEM_LIMIT,
    )


# --------------------------------------------------------------------------
# Pallas kernels
# --------------------------------------------------------------------------
def _partial_stats(y_f32, stats_ref):
    """Write per-tile [sum; sum_sq] (f32) for cross-tile BN statistics."""
    s = jnp.sum(y_f32, axis=0, keepdims=True)
    ss = jnp.sum(y_f32 * y_f32, axis=0, keepdims=True)
    stats_ref[0] = jnp.concatenate([s, ss], axis=0)          # (2, C)


def conv1x1_stats_kernel(x_ref, w_ref, y_ref, stats_ref):
    # x: (Tm, Cin) f32, w: (Cin, Cw) bf16 -> y: (Tm, Cw) f32 + partial stats.
    y = jnp.dot(x_ref[...].astype(COMPUTE_DTYPE), w_ref[...],
                preferred_element_type=jnp.float32)
    y_ref[...] = y
    _partial_stats(y, stats_ref)


def bn_relu_conv3x3_stats_kernel(xp_ref, aff_ref, w_ref, y_ref, stats_ref):
    # xp: (1, H+2, W+2, C) raw (pre-BN) conv1 output, zero-padded spatially.
    # aff: (2, C) = [scale; shift] of BN1.  w: (9*C, C) bf16 packed taps.
    xp = xp_ref[0]                                            # (H+2, W+2, C)
    hp, wp, c = xp.shape
    h, w = hp - 2, wp - 2
    scale = aff_ref[0:1, :]
    shift = aff_ref[1:2, :]
    a = jnp.maximum(xp * scale + shift, 0.0)                  # fused BN1 + ReLU
    # zero the halo again (pad positions held raw 0 -> relu(shift) after affine)
    hi = jax.lax.broadcasted_iota(jnp.int32, (hp, wp, 1), 0)
    wi = jax.lax.broadcasted_iota(jnp.int32, (hp, wp, 1), 1)
    interior = (hi >= 1) & (hi <= h) & (wi >= 1) & (wi <= w)
    a = jnp.where(interior, a, 0.0).astype(COMPUTE_DTYPE)
    # im2col entirely in VMEM, then one K = 9*C MXU matmul.
    taps = [a[ky:ky + h, kx:kx + w, :].reshape(h * w, c)
            for ky in range(3) for kx in range(3)]
    x_cat = jnp.concatenate(taps, axis=-1)                    # (H*W, 9*C) bf16
    y = jnp.dot(x_cat, w_ref[...], preferred_element_type=jnp.float32)
    y_ref[0] = y                                              # (H*W, C) f32
    _partial_stats(y, stats_ref)


def bn_relu_conv1x1_stats_kernel(x_ref, aff_ref, w_ref, y_ref, stats_ref):
    # x: (Tm, Cw) raw conv2 output; fused BN2 + ReLU then 1x1 conv -> (Tm, Cout).
    a = jnp.maximum(x_ref[...] * aff_ref[0:1, :] + aff_ref[1:2, :], 0.0)
    y = jnp.dot(a.astype(COMPUTE_DTYPE), w_ref[...],
                preferred_element_type=jnp.float32)
    y_ref[...] = y
    _partial_stats(y, stats_ref)


def bn_add_relu_kernel(y_ref, aff_ref, id_ref, o_ref):
    # Final BN3 affine + residual add + ReLU (output aliases the residual buffer).
    yn = y_ref[...] * aff_ref[0:1, :] + aff_ref[1:2, :]
    o_ref[...] = jnp.maximum(yn + id_ref[...], 0.0)


# --------------------------------------------------------------------------
# Wrapper helpers
# --------------------------------------------------------------------------
def _affine_from_stats(stats, gamma, beta, count):
    """stats: (T, 2, C) partial [sum; sum_sq] -> (2, C) [scale; shift] (train BN)."""
    tot = jnp.sum(stats, axis=0)                               # (2, C)
    mean = tot[0] / count
    var = jnp.maximum(tot[1] / count - mean * mean, 0.0)       # biased, like PyTorch
    scale = gamma * jax.lax.rsqrt(var + EPS)
    shift = beta - mean * scale
    return jnp.stack([scale, shift], axis=0).astype(jnp.float32)


# --------------------------------------------------------------------------
# Parameter construction (deterministic, in-script)
# --------------------------------------------------------------------------
def init_bottleneck_params(key, inplanes, planes, base_width=64, groups=1):
    expansion = 4
    width = int(planes * (base_width / 64.0)) * groups
    out_planes = planes * expansion
    ks = jax.random.split(key, 9)

    def w(k, shape, fan_in):
        return (jax.random.normal(k, shape, jnp.float32) / jnp.sqrt(fan_in))

    params = dict(
        # PyTorch conv weights are OIHW; repacked in the forward wrapper.
        w1=w(ks[0], (width, inplanes, 1, 1), inplanes),
        w2=w(ks[1], (width, width, 3, 3), width * 9),
        w3=w(ks[2], (out_planes, width, 1, 1), width),
        g1=0.5 + jax.random.uniform(ks[3], (width,), jnp.float32),
        b1=0.1 * jax.random.normal(ks[4], (width,), jnp.float32),
        g2=0.5 + jax.random.uniform(ks[5], (width,), jnp.float32),
        b2=0.1 * jax.random.normal(ks[6], (width,), jnp.float32),
        g3=0.5 + jax.random.uniform(ks[7], (out_planes,), jnp.float32),
        b3=0.1 * jax.random.normal(ks[8], (out_planes,), jnp.float32),
    )
    return params, width, out_planes


# --------------------------------------------------------------------------
# Forward pass
# --------------------------------------------------------------------------
@jax.jit
def bottleneck_forward(x_nchw, params):
    N, Cin, H, W = x_nchw.shape
    M = N * H * W

    # Repack weights once (bf16 for the MXU).
    w1 = params["w1"][:, :, 0, 0].T.astype(COMPUTE_DTYPE)                  # (Cin, Cw)
    Cw = w1.shape[1]
    w2 = jnp.transpose(params["w2"], (2, 3, 1, 0)).reshape(9 * Cw, Cw)     # (9Cw, Cw)
    w2 = w2.astype(COMPUTE_DTYPE)
    w3 = params["w3"][:, :, 0, 0].T.astype(COMPUTE_DTYPE)                  # (Cw, Cout)
    Cout = w3.shape[1]

    # NCHW -> NHWC rows (also the residual in rows layout).
    x_rows = jnp.transpose(x_nchw, (0, 2, 3, 1)).reshape(M, Cin).astype(jnp.float32)

    tm = _pick_row_tile(M)
    nt = M // tm

    # ---- stage 1: conv1 (1x1) + partial BN1 stats ---------------------------
    y1, st1 = pl.pallas_call(
        conv1x1_stats_kernel,
        grid=(nt,),
        in_specs=[
            pl.BlockSpec((tm, Cin), lambda i: (i, 0)),
            pl.BlockSpec((Cin, Cw), lambda i: (0, 0)),
        ],
        out_specs=[
            pl.BlockSpec((tm, Cw), lambda i: (i, 0)),
            pl.BlockSpec((1, 2, Cw), lambda i: (i, 0, 0)),
        ],
        out_shape=[
            jax.ShapeDtypeStruct((M, Cw), jnp.float32),
            jax.ShapeDtypeStruct((nt, 2, Cw), jnp.float32),
        ],
        compiler_params=_compiler_params(),
        cost_estimate=pl.CostEstimate(
            flops=2 * M * Cin * Cw, transcendentals=0,
            bytes_accessed=4 * M * (Cin + Cw) + 2 * Cin * Cw + 8 * nt * Cw),
    )(x_rows, w1)
    aff1 = _affine_from_stats(st1, params["g1"], params["b1"], M)

    # ---- stage 2: fused BN1+ReLU, 3x3 conv (K=9*Cw), partial BN2 stats ------
    y1p = jnp.pad(y1.reshape(N, H, W, Cw), ((0, 0), (1, 1), (1, 1), (0, 0)))
    y2, st2 = pl.pallas_call(
        bn_relu_conv3x3_stats_kernel,
        grid=(N,),
        in_specs=[
            pl.BlockSpec((1, H + 2, W + 2, Cw), lambda n: (n, 0, 0, 0)),
            pl.BlockSpec((2, Cw), lambda n: (0, 0)),
            pl.BlockSpec((9 * Cw, Cw), lambda n: (0, 0)),
        ],
        out_specs=[
            pl.BlockSpec((1, H * W, Cw), lambda n: (n, 0, 0)),
            pl.BlockSpec((1, 2, Cw), lambda n: (n, 0, 0)),
        ],
        out_shape=[
            jax.ShapeDtypeStruct((N, H * W, Cw), jnp.float32),
            jax.ShapeDtypeStruct((N, 2, Cw), jnp.float32),
        ],
        compiler_params=_compiler_params(),
        cost_estimate=pl.CostEstimate(
            flops=2 * M * 9 * Cw * Cw, transcendentals=0,
            bytes_accessed=4 * N * (H + 2) * (W + 2) * Cw + 2 * 9 * Cw * Cw
                           + 4 * M * Cw + 8 * N * Cw),
    )(y1p, aff1, w2)
    aff2 = _affine_from_stats(st2, params["g2"], params["b2"], M)

    # ---- stage 3: fused BN2+ReLU, conv3 (1x1), partial BN3 stats ------------
    y2_rows = y2.reshape(M, Cw)
    y3, st3 = pl.pallas_call(
        bn_relu_conv1x1_stats_kernel,
        grid=(nt,),
        in_specs=[
            pl.BlockSpec((tm, Cw), lambda i: (i, 0)),
            pl.BlockSpec((2, Cw), lambda i: (0, 0)),
            pl.BlockSpec((Cw, Cout), lambda i: (0, 0)),
        ],
        out_specs=[
            pl.BlockSpec((tm, Cout), lambda i: (i, 0)),
            pl.BlockSpec((1, 2, Cout), lambda i: (i, 0, 0)),
        ],
        out_shape=[
            jax.ShapeDtypeStruct((M, Cout), jnp.float32),
            jax.ShapeDtypeStruct((nt, 2, Cout), jnp.float32),
        ],
        compiler_params=_compiler_params(),
        cost_estimate=pl.CostEstimate(
            flops=2 * M * Cw * Cout, transcendentals=0,
            bytes_accessed=4 * M * (Cw + Cout) + 2 * Cw * Cout + 8 * nt * Cout),
    )(y2_rows, aff2, w3)
    aff3 = _affine_from_stats(st3, params["g3"], params["b3"], M)

    # ---- stage 4: BN3 affine + residual add + ReLU (aliases residual buffer) -
    out_rows = pl.pallas_call(
        bn_add_relu_kernel,
        grid=(nt,),
        in_specs=[
            pl.BlockSpec((tm, Cout), lambda i: (i, 0)),
            pl.BlockSpec((2, Cout), lambda i: (0, 0)),
            pl.BlockSpec((tm, Cout), lambda i: (i, 0)),
        ],
        out_specs=pl.BlockSpec((tm, Cout), lambda i: (i, 0)),
        out_shape=jax.ShapeDtypeStruct((M, Cout), jnp.float32),
        input_output_aliases={2: 0},          # reuse x_rows buffer for the output
        compiler_params=_compiler_params(),
        cost_estimate=pl.CostEstimate(
            flops=3 * M * Cout, transcendentals=0,
            bytes_accessed=12 * M * Cout),
    )(y3, aff3, x_rows)

    return jnp.transpose(out_rows.reshape(N, H, W, Cout), (0, 3, 1, 2))


# --------------------------------------------------------------------------
# Pure-JAX reference (sanity check only; f32 end-to-end)
# --------------------------------------------------------------------------
def bottleneck_reference(x, params):
    def conv(x, w, pad):
        return jax.lax.conv_general_dilated(
            x, w, (1, 1), [(pad, pad), (pad, pad)],
            dimension_numbers=("NCHW", "OIHW", "NCHW"))

    def bn(y, g, b, relu=True):
        mu = jnp.mean(y, axis=(0, 2, 3), keepdims=True)
        var = jnp.mean(jnp.square(y - mu), axis=(0, 2, 3), keepdims=True)
        y = (y - mu) * jax.lax.rsqrt(var + EPS) * g.reshape(1, -1, 1, 1) \
            + b.reshape(1, -1, 1, 1)
        return jnp.maximum(y, 0.0) if relu else y

    identity = x
    out = bn(conv(x, params["w1"], 0), params["g1"], params["b1"])
    out = bn(conv(out, params["w2"], 1), params["g2"], params["b2"])
    out = bn(conv(out, params["w3"], 0), params["g3"], params["b3"], relu=False)
    return jnp.maximum(out + identity, 0.0)


# --------------------------------------------------------------------------
if __name__ == "__main__":
    key = jax.random.PRNGKey(0)
    k_x, k_p = jax.random.split(key)

    # Small shapes; inplanes must equal planes*4 because downsample=None.
    N, planes, H, W = 2, 32, 16, 16
    inplanes = planes * 4          # 128 (lane-dense residual/output channels)
    x = jax.random.normal(k_x, (N, inplanes, H, W), jnp.float32)

    params, width, out_planes = init_bottleneck_params(k_p, inplanes, planes)

    y = jax.block_until_ready(bottleneck_forward(x, params))
    assert y.shape == (N, out_planes, H, W), y.shape

    y_ref = jax.block_until_ready(bottleneck_reference(x, params))
    # bf16 MXU operands vs f32 reference -> allow a few-percent tolerance.
    max_err = float(jnp.max(jnp.abs(y - y_ref)))
    assert jnp.allclose(y, y_ref, atol=5e-2, rtol=5e-2), max_err

    print("KERNEL_OK")
</pallas_src>

<mosaic_0001>
module attributes {stable_mosaic.version = 11 : i64} {
  func.func @conv1x1_stats_kernel(%arg0: i32, %arg1: memref<256x128xf32, #tpu.memory_space<vmem>>, %arg2: memref<128x32xbf16, #tpu.memory_space<vmem>>, %arg3: memref<256x32xf32, #tpu.memory_space<vmem>>, %arg4: memref<1x2x32xf32, #tpu.memory_space<vmem>>) attributes {dimension_semantics = [#tpu.dimension_semantics<parallel>], iteration_bounds = array<i64: 2>, scalar_prefetch = 0 : i64, scratch_operands = 0 : i64, tpu.core_type = #tpu.core_type<tc>, window_params = [{transform_indices = @transform_0, window_bounds = array<i64: 256, 128>}, {pipeline_mode = #tpu.pipeline_mode<synchronous>, transform_indices = @transform_1, window_bounds = array<i64: 128, 32>}, {transform_indices = @transform_2, window_bounds = array<i64: 256, 32>}, {transform_indices = @transform_3, window_bounds = array<i64: 1, 2, 32>}]} {
    %c0 = arith.constant 0 : index
    %c0_0 = arith.constant 0 : index
    %0 = vector.load %arg1[%c0, %c0_0] : memref<256x128xf32, #tpu.memory_space<vmem>>, vector<256x128xf32>
    %1 = arith.truncf %0 : vector<256x128xf32> to vector<256x128xbf16>
    %c0_1 = arith.constant 0 : index
    %c0_2 = arith.constant 0 : index
    %2 = vector.load %arg2[%c0_1, %c0_2] : memref<128x32xbf16, #tpu.memory_space<vmem>>, vector<128x32xbf16>
    %cst = arith.constant dense<0.000000e+00> : vector<256x32xf32>
    %3 = tpu.matmul %1, %2, %cst {dimension_numbers = #tpu.dot_dimension_numbers<[1], [0], [0], [1], [0, 0, 1, 1], [], []>} : vector<256x128xbf16>, vector<128x32xbf16>, vector<256x32xf32> -> vector<256x32xf32>
    %c0_3 = arith.constant 0 : index
    %c0_4 = arith.constant 0 : index
    %4 = vector.load %arg3[%c0_3, %c0_4] : memref<256x32xf32, #tpu.memory_space<vmem>>, vector<256x32xf32>
    tpu.vector_store %arg3[%c0_3, %c0_4], %3 {strides = array<i32>} : memref<256x32xf32, #tpu.memory_space<vmem>>, vector<256x32xf32>,
    %cst_5 = arith.constant dense<0.000000e+00> : vector<32xf32>
    %5 = vector.multi_reduction <add>, %3, %cst_5 [0] : vector<256x32xf32> to vector<32xf32>
    %6 = vector.shape_cast %5 : vector<32xf32> to vector<1x32xf32>
    %7 = arith.mulf %3, %3 : vector<256x32xf32>
    %cst_6 = arith.constant dense<0.000000e+00> : vector<32xf32>
    %8 = vector.multi_reduction <add>, %7, %cst_6 [0] : vector<256x32xf32> to vector<32xf32>
    %9 = vector.shape_cast %8 : vector<32xf32> to vector<1x32xf32>
    %10 = tpu.concatenate %6, %9 in 0 : vector<1x32xf32>, vector<1x32xf32> -> vector<2x32xf32>
    %c0_7 = arith.constant 0 : index
    %c0_8 = arith.constant 0 : index
    %c0_9 = arith.constant 0 : index
    %11 = vector.load %arg4[%c0_7, %c0_8, %c0_9] : memref<1x2x32xf32, #tpu.memory_space<vmem>>, vector<1x2x32xf32>
    %12 = vector.shape_cast %11 : vector<1x2x32xf32> to vector<2x32xf32>
    %13 = vector.shape_cast %10 : vector<2x32xf32> to vector<1x2x32xf32>
    tpu.vector_store %arg4[%c0_7, %c0_8, %c0_9], %13 {strides = array<i32>} : memref<1x2x32xf32, #tpu.memory_space<vmem>>, vector<1x2x32xf32>,
    return
  }
  func.func @transform_0(%arg0: i32) -> (i32, i32) {
    %c0_i32 = arith.constant 0 : i32
    %c0_i32_0 = arith.constant 0 : i32
    return %arg0, %c0_i32 : i32, i32
  }
  func.func @transform_1(%arg0: i32) -> (i32, i32) {
    %c0_i32 = arith.constant 0 : i32
    %c0_i32_0 = arith.constant 0 : i32
    %c0_i32_1 = arith.constant 0 : i32
    return %c0_i32, %c0_i32_0 : i32, i32
  }
  func.func @transform_2(%arg0: i32) -> (i32, i32) {
    %c0_i32 = arith.constant 0 : i32
    %c0_i32_0 = arith.constant 0 : i32
    return %arg0, %c0_i32 : i32, i32
  }
  func.func @transform_3(%arg0: i32) -> (i32, i32, i32) {
    %c0_i32 = arith.constant 0 : i32
    %c0_i32_0 = arith.constant 0 : i32
    %c0_i32_1 = arith.constant 0 : i32
    return %arg0, %c0_i32, %c0_i32_0 : i32, i32, i32
  }
}

module attributes {stable_mosaic.version = 11 : i64} {
  func.func @bn_relu_conv1x1_stats_kernel(%arg0: i32, %arg1: memref<256x32xf32, #tpu.memory_space<vmem>>, %arg2: memref<2x32xf32, #tpu.memory_space<vmem>>, %arg3: memref<32x128xbf16, #tpu.memory_space<vmem>>, %arg4: memref<256x128xf32, #tpu.memory_space<vmem>>, %arg5: memref<1x2x128xf32, #tpu.memory_space<vmem>>) attributes {dimension_semantics = [#tpu.dimension_semantics<parallel>], iteration_bounds = array<i64: 2>, scalar_prefetch = 0 : i64, scratch_operands = 0 : i64, tpu.core_type = #tpu.core_type<tc>, window_params = [{transform_indices = @transform_0, window_bounds = array<i64: 256, 32>}, {pipeline_mode = #tpu.pipeline_mode<synchronous>, transform_indices = @transform_1, window_bounds = array<i64: 2, 32>}, {pipeline_mode = #tpu.pipeline_mode<synchronous>, transform_indices = @transform_2, window_bounds = array<i64: 32, 128>}, {transform_indices = @transform_3, window_bounds = array<i64: 256, 128>}, {transform_indices = @transform_4, window_bounds = array<i64: 1, 2, 128>}]} {
    %c0 = arith.constant 0 : index
    %c0_0 = arith.constant 0 : index
    %0 = vector.load %arg1[%c0, %c0_0] : memref<256x32xf32, #tpu.memory_space<vmem>>, vector<256x32xf32>
    %c0_1 = arith.constant 0 : index
    %c0_2 = arith.constant 0 : index
    %1 = vector.load %arg2[%c0_1, %c0_2] : memref<2x32xf32, #tpu.memory_space<vmem>>, vector<1x32xf32>
    %2 = vector.broadcast %1 : vector<1x32xf32> to vector<256x32xf32>
    %3 = arith.mulf %0, %2 : vector<256x32xf32>
    %c1 = arith.constant 1 : index
    %c0_3 = arith.constant 0 : index
    %4 = vector.load %arg2[%c1, %c0_3] : memref<2x32xf32, #tpu.memory_space<vmem>>, vector<1x32xf32>
    %5 = vector.broadcast %4 : vector<1x32xf32> to vector<256x32xf32>
    %6 = arith.addf %3, %5 : vector<256x32xf32>
    %cst = arith.constant 0.000000e+00 : f32
    %7 = vector.broadcast %cst : f32 to vector<256x32xf32>
    %8 = arith.maximumf %6, %7 : vector<256x32xf32>
    %9 = arith.truncf %8 : vector<256x32xf32> to vector<256x32xbf16>
    %c0_4 = arith.constant 0 : index
    %c0_5 = arith.constant 0 : index
    %10 = vector.load %arg3[%c0_4, %c0_5] : memref<32x128xbf16, #tpu.memory_space<vmem>>, vector<32x128xbf16>
    %cst_6 = arith.constant dense<0.000000e+00> : vector<256x128xf32>
    %11 = tpu.matmul %9, %10, %cst_6 {dimension_numbers = #tpu.dot_dimension_numbers<[1], [0], [0], [1], [0, 0, 1, 1], [], []>} : vector<256x32xbf16>, vector<32x128xbf16>, vector<256x128xf32> -> vector<256x128xf32>
    %c0_7 = arith.constant 0 : index
    %c0_8 = arith.constant 0 : index
    %12 = vector.load %arg4[%c0_7, %c0_8] : memref<256x128xf32, #tpu.memory_space<vmem>>, vector<256x128xf32>
    tpu.vector_store %arg4[%c0_7, %c0_8], %11 {strides = array<i32>} : memref<256x128xf32, #tpu.memory_space<vmem>>, vector<256x128xf32>,
    %cst_9 = arith.constant dense<0.000000e+00> : vector<128xf32>
    %13 = vector.multi_reduction <add>, %11, %cst_9 [0] : vector<256x128xf32> to vector<128xf32>
    %14 = vector.shape_cast %13 : vector<128xf32> to vector<1x128xf32>
    %15 = arith.mulf %11, %11 : vector<256x128xf32>
    %cst_10 = arith.constant dense<0.000000e+00> : vector<128xf32>
    %16 = vector.multi_reduction <add>, %15, %cst_10 [0] : vector<256x128xf32> to vector<128xf32>
    %17 = vector.shape_cast %16 : vector<128xf32> to vector<1x128xf32>
    %18 = tpu.concatenate %14, %17 in 0 : vector<1x128xf32>, vector<1x128xf32> -> vector<2x128xf32>
    %c0_11 = arith.constant 0 : index
    %c0_12 = arith.constant 0 : index
    %c0_13 = arith.constant 0 : index
    %19 = vector.load %arg5[%c0_11, %c0_12, %c0_13] : memref<1x2x128xf32, #tpu.memory_space<vmem>>, vector<1x2x128xf32>
    %20 = vector.shape_cast %19 : vector<1x2x128xf32> to vector<2x128xf32>
    %21 = vector.shape_cast %18 : vector<2x128xf32> to vector<1x2x128xf32>
    tpu.vector_store %arg5[%c0_11, %c0_12, %c0_13], %21 {strides = array<i32>} : memref<1x2x128xf32, #tpu.memory_space<vmem>>, vector<1x2x128xf32>,
    return
  }
  func.func @transform_0(%arg0: i32) -> (i32, i32) {
    %c0_i32 = arith.constant 0 : i32
    %c0_i32_0 = arith.constant 0 : i32
    return %arg0, %c0_i32 : i32, i32
  }
  func.func @transform_1(%arg0: i32) -> (i32, i32) {
    %c0_i32 = arith.constant 0 : i32
    %c0_i32_0 = arith.constant 0 : i32
    %c0_i32_1 = arith.constant 0 : i32
    return %c0_i32, %c0_i32_0 : i32, i32
  }
  func.func @transform_2(%arg0: i32) -> (i32, i32) {
    %c0_i32 = arith.constant 0 : i32
    %c0_i32_0 = arith.constant 0 : i32
    %c0_i32_1 = arith.constant 0 : i32
    return %c0_i32, %c0_i32_0 : i32, i32
  }
  func.func @transform_3(%arg0: i32) -> (i32, i32) {
    %c0_i32 = arith.constant 0 : i32
    %c0_i32_0 = arith.constant 0 : i32
    return %arg0, %c0_i32 : i32, i32
  }
  func.func @transform_4(%arg0: i32) -> (i32, i32, i32) {
    %c0_i32 = arith.constant 0 : i32
    %c0_i32_0 = arith.constant 0 : i32
    %c0_i32_1 = arith.constant 0 : i32
    return %arg0, %c0_i32, %c0_i32_0 : i32, i32, i32
  }
}

module attributes {stable_mosaic.version = 11 : i64} {
  func.func @bn_add_relu_kernel(%arg0: i32, %arg1: memref<256x128xf32, #tpu.memory_space<vmem>>, %arg2: memref<2x128xf32, #tpu.memory_space<vmem>>, %arg3: memref<256x128xf32, #tpu.memory_space<vmem>>, %arg4: memref<256x128xf32, #tpu.memory_space<vmem>>) attributes {dimension_semantics = [#tpu.dimension_semantics<parallel>], iteration_bounds = array<i64: 2>, scalar_prefetch = 0 : i64, scratch_operands = 0 : i64, tpu.core_type = #tpu.core_type<tc>, window_params = [{transform_indices = @transform_0, window_bounds = array<i64: 256, 128>}, {pipeline_mode = #tpu.pipeline_mode<synchronous>, transform_indices = @transform_1, window_bounds = array<i64: 2, 128>}, {transform_indices = @transform_2, window_bounds = array<i64: 256, 128>}, {transform_indices = @transform_3, window_bounds = array<i64: 256, 128>}]} {
    %c0 = arith.constant 0 : index
    %c0_0 = arith.constant 0 : index
    %0 = vector.load %arg1[%c0, %c0_0] : memref<256x128xf32, #tpu.memory_space<vmem>>, vector<256x128xf32>
    %c0_1 = arith.constant 0 : index
    %c0_2 = arith.constant 0 : index
    %1 = vector.load %arg2[%c0_1, %c0_2] : memref<2x128xf32, #tpu.memory_space<vmem>>, vector<1x128xf32>
    %2 = vector.broadcast %1 : vector<1x128xf32> to vector<256x128xf32>
    %3 = arith.mulf %0, %2 : vector<256x128xf32>
    %c1 = arith.constant 1 : index
    %c0_3 = arith.constant 0 : index
    %4 = vector.load %arg2[%c1, %c0_3] : memref<2x128xf32, #tpu.memory_space<vmem>>, vector<1x128xf32>
    %5 = vector.broadcast %4 : vector<1x128xf32> to vector<256x128xf32>
    %6 = arith.addf %3, %5 : vector<256x128xf32>
    %c0_4 = arith.constant 0 : index
    %c0_5 = arith.constant 0 : index
    %7 = vector.load %arg3[%c0_4, %c0_5] : memref<256x128xf32, #tpu.memory_space<vmem>>, vector<256x128xf32>
    %8 = arith.addf %6, %7 : vector<256x128xf32>
    %cst = arith.constant 0.000000e+00 : f32
    %9 = vector.broadcast %cst : f32 to vector<256x128xf32>
    %10 = arith.maximumf %8, %9 : vector<256x128xf32>
    %c0_6 = arith.constant 0 : index
    %c0_7 = arith.constant 0 : index
    %11 = vector.load %arg4[%c0_6, %c0_7] : memref<256x128xf32, #tpu.memory_space<vmem>>, vector<256x128xf32>
    tpu.vector_store %arg4[%c0_6, %c0_7], %10 {strides = array<i32>} : memref<256x128xf32, #tpu.memory_space<vmem>>, vector<256x128xf32>,
    return
  }
  func.func @transform_0(%arg0: i32) -> (i32, i32) {
    %c0_i32 = arith.constant 0 : i32
    %c0_i32_0 = arith.constant 0 : i32
    return %arg0, %c0_i32 : i32, i32
  }
  func.func @transform_1(%arg0: i32) -> (i32, i32) {
    %c0_i32 = arith.constant 0 : i32
    %c0_i32_0 = arith.constant 0 : i32
    %c0_i32_1 = arith.constant 0 : i32
    return %c0_i32, %c0_i32_0 : i32, i32
  }
  func.func @transform_2(%arg0: i32) -> (i32, i32) {
    %c0_i32 = arith.constant 0 : i32
    %c0_i32_0 = arith.constant 0 : i32
    return %arg0, %c0_i32 : i32, i32
  }
  func.func @transform_3(%arg0: i32) -> (i32, i32) {
    %c0_i32 = arith.constant 0 : i32
    %c0_i32_0 = arith.constant 0 : i32
    return %arg0, %c0_i32 : i32, i32
  }
}

module attributes {stable_mosaic.version = 11 : i64} {
  func.func @bn_relu_conv3x3_stats_kernel(%arg0: i32, %arg1: memref<1x18x18x32xf32, #tpu.memory_space<vmem>>, %arg2: memref<2x32xf32, #tpu.memory_space<vmem>>, %arg3: memref<288x32xbf16, #tpu.memory_space<vmem>>, %arg4: memref<1x256x32xf32, #tpu.memory_space<vmem>>, %arg5: memref<1x2x32xf32, #tpu.memory_space<vmem>>) attributes {dimension_semantics = [#tpu.dimension_semantics<parallel>], iteration_bounds = array<i64: 2>, scalar_prefetch = 0 : i64, scratch_operands = 0 : i64, tpu.core_type = #tpu.core_type<tc>, window_params = [{transform_indices = @transform_0, window_bounds = array<i64: 1, 18, 18, 32>}, {pipeline_mode = #tpu.pipeline_mode<synchronous>, transform_indices = @transform_1, window_bounds = array<i64: 2, 32>}, {pipeline_mode = #tpu.pipeline_mode<synchronous>, transform_indices = @transform_2, window_bounds = array<i64: 288, 32>}, {transform_indices = @transform_3, window_bounds = array<i64: 1, 256, 32>}, {transform_indices = @transform_4, window_bounds = array<i64: 1, 2, 32>}]} {
    %c0 = arith.constant 0 : index
    %c0_0 = arith.constant 0 : index
    %c0_1 = arith.constant 0 : index
    %c0_2 = arith.constant 0 : index
    %0 = vector.load %arg1[%c0, %c0_0, %c0_1, %c0_2] : memref<1x18x18x32xf32, #tpu.memory_space<vmem>>, vector<1x18x18x32xf32>
    %1 = vector.shape_cast %0 : vector<1x18x18x32xf32> to vector<18x18x32xf32>
    %c0_3 = arith.constant 0 : index
    %c0_4 = arith.constant 0 : index
    %2 = vector.load %arg2[%c0_3, %c0_4] : memref<2x32xf32, #tpu.memory_space<vmem>>, vector<1x32xf32>
    %c1 = arith.constant 1 : index
    %c0_5 = arith.constant 0 : index
    %3 = vector.load %arg2[%c1, %c0_5] : memref<2x32xf32, #tpu.memory_space<vmem>>, vector<1x32xf32>
    %4 = vector.shape_cast %2 : vector<1x32xf32> to vector<1x1x32xf32>
    %5 = vector.broadcast %4 : vector<1x1x32xf32> to vector<18x18x32xf32>
    %6 = arith.mulf %1, %5 : vector<18x18x32xf32>
    %7 = vector.shape_cast %3 : vector<1x32xf32> to vector<1x1x32xf32>
    %8 = vector.broadcast %7 : vector<1x1x32xf32> to vector<18x18x32xf32>
    %9 = arith.addf %6, %8 : vector<18x18x32xf32>
    %cst = arith.constant 0.000000e+00 : f32
    %10 = vector.broadcast %cst : f32 to vector<18x18x32xf32>
    %11 = arith.maximumf %9, %10 : vector<18x18x32xf32>
    %12 = tpu.iota {dimensions = array<i32: 0>} : vector<18x18x1xi32>
    %13 = tpu.iota {dimensions = array<i32: 1>} : vector<18x18x1xi32>
    %c1_i32 = arith.constant 1 : i32
    %14 = vector.broadcast %c1_i32 : i32 to vector<18x18x1xi32>
    %15 = arith.cmpi sge, %12, %14 : vector<18x18x1xi32>
    %c16_i32 = arith.constant 16 : i32
    %16 = vector.broadcast %c16_i32 : i32 to vector<18x18x1xi32>
    %17 = arith.cmpi sle, %12, %16 : vector<18x18x1xi32>
    %18 = arith.andi %15, %17 : vector<18x18x1xi1>
    %c1_i32_6 = arith.constant 1 : i32
    %19 = vector.broadcast %c1_i32_6 : i32 to vector<18x18x1xi32>
    %20 = arith.cmpi sge, %13, %19 : vector<18x18x1xi32>
    %21 = arith.andi %18, %20 : vector<18x18x1xi1>
    %c16_i32_7 = arith.constant 16 : i32
    %22 = vector.broadcast %c16_i32_7 : i32 to vector<18x18x1xi32>
    %23 = arith.cmpi sle, %13, %22 : vector<18x18x1xi32>
    %24 = arith.andi %21, %23 : vector<18x18x1xi1>
    %cst_8 = arith.constant 0.000000e+00 : f32
    %25 = vector.shape_cast %24 : vector<18x18x1xi1> to vector<18x18x1xi1>
    %26 = vector.broadcast %25 : vector<18x18x1xi1> to vector<18x18x32xi1>
    %27 = vector.broadcast %cst_8 : f32 to vector<18x18x32xf32>
    %28 = arith.select %26, %11, %27 : vector<18x18x32xi1>, vector<18x18x32xf32>
    %29 = arith.truncf %28 : vector<18x18x32xf32> to vector<18x18x32xbf16>
    %30 = vector.extract_strided_slice %29 {offsets = [0, 0, 0], sizes = [16, 16, 32], strides = [1, 1, 1]} : vector<18x18x32xbf16> to vector<16x16x32xbf16>
    %31 = vector.shape_cast %30 : vector<16x16x32xbf16> to vector<256x32xbf16>
    %32 = vector.extract_strided_slice %29 {offsets = [0, 1, 0], sizes = [16, 16, 32], strides = [1, 1, 1]} : vector<18x18x32xbf16> to vector<16x16x32xbf16>
    %33 = vector.shape_cast %32 : vector<16x16x32xbf16> to vector<256x32xbf16>
    %34 = vector.extract_strided_slice %29 {offsets = [0, 2, 0], sizes = [16, 16, 32], strides = [1, 1, 1]} : vector<18x18x32xbf16> to vector<16x16x32xbf16>
    %35 = vector.shape_cast %34 : vector<16x16x32xbf16> to vector<256x32xbf16>
    %36 = vector.extract_strided_slice %29 {offsets = [1, 0, 0], sizes = [16, 16, 32], strides = [1, 1, 1]} : vector<18x18x32xbf16> to vector<16x16x32xbf16>
    %37 = vector.shape_cast %36 : vector<16x16x32xbf16> to vector<256x32xbf16>
    %38 = vector.extract_strided_slice %29 {offsets = [1, 1, 0], sizes = [16, 16, 32], strides = [1, 1, 1]} : vector<18x18x32xbf16> to vector<16x16x32xbf16>
    %39 = vector.shape_cast %38 : vector<16x16x32xbf16> to vector<256x32xbf16>
    %40 = vector.extract_strided_slice %29 {offsets = [1, 2, 0], sizes = [16, 16, 32], strides = [1, 1, 1]} : vector<18x18x32xbf16> to vector<16x16x32xbf16>
    %41 = vector.shape_cast %40 : vector<16x16x32xbf16> to vector<256x32xbf16>
    %42 = vector.extract_strided_slice %29 {offsets = [2, 0, 0], sizes = [16, 16, 32], strides = [1, 1, 1]} : vector<18x18x32xbf16> to vector<16x16x32xbf16>
    %43 = vector.shape_cast %42 : vector<16x16x32xbf16> to vector<256x32xbf16>
    %44 = vector.extract_strided_slice %29 {offsets = [2, 1, 0], sizes = [16, 16, 32], strides = [1, 1, 1]} : vector<18x18x32xbf16> to vector<16x16x32xbf16>
    %45 = vector.shape_cast %44 : vector<16x16x32xbf16> to vector<256x32xbf16>
    %46 = vector.extract_strided_slice %29 {offsets = [2, 2, 0], sizes = [16, 16, 32], strides = [1, 1, 1]} : vector<18x18x32xbf16> to vector<16x16x32xbf16>
    %47 = vector.shape_cast %46 : vector<16x16x32xbf16> to vector<256x32xbf16>
    %48 = tpu.concatenate %31, %33, %35, %37, %39, %41, %43, %45, %47 in 1 : vector<256x32xbf16>, vector<256x32xbf16>, vector<256x32xbf16>, vector<256x32xbf16>, vector<256x32xbf16>, vector<256x32xbf16>, vector<256x32xbf16>, vector<256x32xbf16>, vector<256x32xbf16> -> vector<256x288xbf16>
    %c0_9 = arith.constant 0 : index
    %c0_10 = arith.constant 0 : index
    %49 = vector.load %arg3[%c0_9, %c0_10] : memref<288x32xbf16, #tpu.memory_space<vmem>>, vector<288x32xbf16>
    %cst_11 = arith.constant dense<0.000000e+00> : vector<256x32xf32>
    %50 = tpu.matmul %48, %49, %cst_11 {dimension_numbers = #tpu.dot_dimension_numbers<[1], [0], [0], [1], [0, 0, 1, 1], [], []>} : vector<256x288xbf16>, vector<288x32xbf16>, vector<256x32xf32> -> vector<256x32xf32>
    %c0_12 = arith.constant 0 : index
    %c0_13 = arith.constant 0 : index
    %c0_14 = arith.constant 0 : index
    %51 = vector.load %arg4[%c0_12, %c0_13, %c0_14] : memref<1x256x32xf32, #tpu.memory_space<vmem>>, vector<1x256x32xf32>
    %52 = vector.shape_cast %51 : vector<1x256x32xf32> to vector<256x32xf32>
    %53 = vector.shape_cast %50 : vector<256x32xf32> to vector<1x256x32xf32>
    tpu.vector_store %arg4[%c0_12, %c0_13, %c0_14], %53 {strides = array<i32>} : memref<1x256x32xf32, #tpu.memory_space<vmem>>, vector<1x256x32xf32>,
    %cst_15 = arith.constant dense<0.000000e+00> : vector<32xf32>
    %54 = vector.multi_reduction <add>, %50, %cst_15 [0] : vector<256x32xf32> to vector<32xf32>
    %55 = vector.shape_cast %54 : vector<32xf32> to vector<1x32xf32>
    %56 = arith.mulf %50, %50 : vector<256x32xf32>
    %cst_16 = arith.constant dense<0.000000e+00> : vector<32xf32>
    %57 = vector.multi_reduction <add>, %56, %cst_16 [0] : vector<256x32xf32> to vector<32xf32>
    %58 = vector.shape_cast %57 : vector<32xf32> to vector<1x32xf32>
    %59 = tpu.concatenate %55, %58 in 0 : vector<1x32xf32>, vector<1x32xf32> -> vector<2x32xf32>
    %c0_17 = arith.constant 0 : index
    %c0_18 = arith.constant 0 : index
    %c0_19 = arith.constant 0 : index
    %60 = vector.load %arg5[%c0_17, %c0_18, %c0_19] : memref<1x2x32xf32, #tpu.memory_space<vmem>>, vector<1x2x32xf32>
    %61 = vector.shape_cast %60 : vector<1x2x32xf32> to vector<2x32xf32>
    %62 = vector.shape_cast %59 : vector<2x32xf32> to vector<1x2x32xf32>
    tpu.vector_store %arg5[%c0_17, %c0_18, %c0_19], %62 {strides = array<i32>} : memref<1x2x32xf32, #tpu.memory_space<vmem>>, vector<1x2x32xf32>,
    return
  }
  func.func @transform_0(%arg0: i32) -> (i32, i32, i32, i32) {
    %c0_i32 = arith.constant 0 : i32
    %c0_i32_0 = arith.constant 0 : i32
    %c0_i32_1 = arith.constant 0 : i32
    %c0_i32_2 = arith.constant 0 : i32
    return %arg0, %c0_i32, %c0_i32_0, %c0_i32_1 : i32, i32, i32, i32
  }
  func.func @transform_1(%arg0: i32) -> (i32, i32) {
    %c0_i32 = arith.constant 0 : i32
    %c0_i32_0 = arith.constant 0 : i32
    %c0_i32_1 = arith.constant 0 : i32
    return %c0_i32, %c0_i32_0 : i32, i32
  }
  func.func @transform_2(%arg0: i32) -> (i32, i32) {
    %c0_i32 = arith.constant 0 : i32
    %c0_i32_0 = arith.constant 0 : i32
    %c0_i32_1 = arith.constant 0 : i32
    return %c0_i32, %c0_i32_0 : i32, i32
  }
  func.func @transform_3(%arg0: i32) -> (i32, i32, i32) {
    %c0_i32 = arith.constant 0 : i32
    %c0_i32_0 = arith.constant 0 : i32
    %c0_i32_1 = arith.constant 0 : i32
    return %arg0, %c0_i32, %c0_i32_0 : i32, i32, i32
  }
  func.func @transform_4(%arg0: i32) -> (i32, i32, i32) {
    %c0_i32 = arith.constant 0 : i32
    %c0_i32_0 = arith.constant 0 : i32
    %c0_i32_1 = arith.constant 0 : i32
    return %arg0, %c0_i32, %c0_i32_0 : i32, i32, i32
  }
}

</mosaic_0001>

<llo_original>
// kernel: bottleneck_forward.4
$region0: #{bottleneck_forward.4}
  #allocation0 [shape = 'u32[]', space=smem, size = 0x4, offset = 0x4, fixed_abs, tag = 'smem constant byte address 0x4 - core index']
  #allocation1 [shape = 'u32[144,128]{1,0:T(1,128)}', space=vmem, size = 0x12000, scoped, tag = 'internal scratch']
  %s0 = inlined_call_operand.vmem [shape: f32[512,128], index: 0, kind: input, shape index: {}]
  %s1 = inlined_call_operand.vmem [shape: bf16[128,32], index: 1, kind: input, shape index: {}]
  %s2 = inlined_call_operand.vmem [shape: f32[512,32], index: 2, kind: output, shape index: {0}]
  %s3 = inlined_call_operand.vmem [shape: f32[2,2,32], index: 3, kind: output, shape index: {1}]
  %4 = xla_tuple %s2, %s3
  %s5 = sld [smem:[#allocation0]]
  $region49: #{bottleneck_forward.4} parent=0
    _
  %s7 = ssub.s32 1, %s5
  %s8 = scalar_select 0, %s7, %s5
  loop: start=0, step=1, limit=4
  $region2: #{bottleneck_forward.4} parent=0 // loop_pre_header
    _
  $region3: #{bottleneck_forward.4} parent=0 // loop_header
    %s10 = sphi 0, %s14
    %p11 = scmp.ge.s32.totalorder %s10, 4
    %s20 = sphi 0, %s22
    %s23 = sphi 0, %s20
    %s24 = sphi 0, %s23
    %s40 = sphi 0, %s24
    %s44 = sphi 0, %s44
    %s46 = sphi 0, %s44
    %s47 = sphi 0, %s46
    %s61 = sphi 0, %s47
    %s67 = sphi 0, %s69
    %s70 = sphi 0, %s67
    %s71 = sphi 0, %s70
    %s87 = sphi 0, %s71
    %s93 = sphi 0, %s95
    %s96 = sphi 0, %s93
    %s97 = sphi 0, %s96
    %s113 = sphi 0, %s97
  $region4: #{bottleneck_forward.4} parent=0 // loop_header_branch
    %13 = sbr.rel (%p11) target = $region8
  $region5: #{bottleneck_forward.4} parent=0 // loop_body
    %s15 = ssub.s32 %s10, 1
    %s16 = ssub.s32 %s10, 2
    %s17 = sadd.s32 %s10, 1
    %s18 = ssub.s32 %s10, %s17
    %p19 = scmp.eq.s32.totalorder %s18, 0
    %s21 = sadd.s32 %s20, 1
    %s22 = scalar_select %p19, %s20, %s21
    %p25 = pneg %p19
    %p26 = scmp.eq.s32.totalorder %s10, 1
    %p27 = por %p25, %p26
    %p28 = scmp.ne.s32.totalorder %s20, %s23
    %p29 = scmp.eq.s32.totalorder %s10, 0
    %p30 = por %p28, %p29
    %p31 = scmp.ne.s32.totalorder %s20, %s23
    %p32 = scmp.eq.s32.totalorder %s15, 1
    %p33 = por %p31, %p32
    %p34 = scmp.ne.s32.totalorder %s23, %s24
    %p35 = scmp.eq.s32.totalorder %s15, 0
    %p36 = por %p34, %p35
    %p37 = scmp.ne.s32.totalorder %s23, %s24
    %p38 = scmp.eq.s32.totalorder %s16, 1
    %p39 = por %p37, %p38
    %p41 = scmp.ne.s32.totalorder %s24, %s40
    %p42 = scmp.eq.s32.totalorder %s16, 0
    %p43 = por %p41, %p42
    %s45 = sadd.s32 %s44, 1
    %p48 = scmp.eq.s32.totalorder %s10, 1
    %p49 = scmp.ne.s32.totalorder %s44, %s46
    %p50 = scmp.eq.s32.totalorder %s10, 0
    %p51 = por %p49, %p50
    %p52 = scmp.ne.s32.totalorder %s44, %s46
    %p53 = scmp.eq.s32.totalorder %s15, 1
    %p54 = por %p52, %p53
    %p55 = scmp.ne.s32.totalorder %s46, %s47
    %p56 = scmp.eq.s32.totalorder %s15, 0
    %p57 = por %p55, %p56
    %p58 = scmp.ne.s32.totalorder %s46, %s47
    %p59 = scmp.eq.s32.totalorder %s16, 1
    %p60 = por %p58, %p59
    %p62 = scmp.ne.s32.totalorder %s47, %s61
    %p63 = scmp.eq.s32.totalorder %s16, 0
    %p64 = por %p62, %p63
    %s65 = ssub.s32 %s10, %s17
    %p66 = scmp.eq.s32.totalorder %s65, 0
    %s68 = sadd.s32 %s67, 1
    %s69 = scalar_select %p66, %s67, %s68
    %p72 = pneg %p66
    %p73 = scmp.eq.s32.totalorder %s10, 1
    %p74 = por %p72, %p73
    %p75 = scmp.ne.s32.totalorder %s67, %s70
    %p76 = scmp.eq.s32.totalorder %s10, 0
    %p77 = por %p75, %p76
    %p78 = scmp.ne.s32.totalorder %s67, %s70
    %p79 = scmp.eq.s32.totalorder %s15, 1
    %p80 = por %p78, %p79
    %p81 = scmp.ne.s32.totalorder %s70, %s71
    %p82 = scmp.eq.s32.totalorder %s15, 0
    %p83 = por %p81, %p82
    %p84 = scmp.ne.s32.totalorder %s70, %s71
    %p85 = scmp.eq.s32.totalorder %s16, 1
    %p86 = por %p84, %p85
    %p88 = scmp.ne.s32.totalorder %s71, %s87
    %p89 = scmp.eq.s32.totalorder %s16, 0
    %p90 = por %p88, %p89
    %s91 = ssub.s32 %s10, %s17
    %p92 = scmp.eq.s32.totalorder %s91, 0
    %s94 = sadd.s32 %s93, 1
    %s95 = scalar_select %p92, %s93, %s94
    %p98 = pneg %p92
    %p99 = scmp.eq.s32.totalorder %s10, 1
    %p100 = por %p98, %p99
    %p101 = scmp.ne.s32.totalorder %s93, %s96
    %p102 = scmp.eq.s32.totalorder %s10, 0
    %p103 = por %p101, %p102
    %p104 = scmp.ne.s32.totalorder %s93, %s96
    %p105 = scmp.eq.s32.totalorder %s15, 1
    %p106 = por %p104, %p105
    %p107 = scmp.ne.s32.totalorder %s96, %s97
    %p108 = scmp.eq.s32.totalorder %s15, 0
    %p109 = por %p107, %p108
    %p110 = scmp.ne.s32.totalorder %s96, %s97
    %p111 = scmp.eq.s32.totalorder %s16, 1
    %p112 = por %p110, %p111
    %p114 = scmp.ne.s32.totalorder %s97, %s113
    %p115 = scmp.eq.s32.totalorder %s16, 0
    %p116 = por %p114, %p115
    %p117 = scmp.le.s32.totalorder 1, %s10
    %p118 = scmp.lt.s32.totalorder %s10, 3
    %p119 = pnand %p117, %p118
    %p120 = pneg %p119
    // Predicated region
    $region9: #{bottleneck_forward.4} parent=5 // pred_check
      _
    $region10: #{bottleneck_forward.4} parent=5 // pred_check_branch
      %122 = sbr.rel (%p119) target = $region12
    $region11: #{bottleneck_forward.4} parent=5 // pred_region
      %s123 = ssub.s32 %s10, 1
      // Predicated region
      $region13: #{bottleneck_forward.4} parent=11 // pred_check
        %p124 = pneg %p57
      $region14: #{bottleneck_forward.4} parent=11 // pred_check_branch
        %126 = sbr.rel (%p124) target = $region16
      $region15: #{bottleneck_forward.4} parent=11 // pred_region
        _
      $region16: #{bottleneck_forward.4} parent=11 // pred_fallthru
        _
    $region12: #{bottleneck_forward.4} parent=5 // pred_fallthru
      _
    %p127 = scmp.lt.s32.totalorder %s10, 2
    // Predicated region
    $region17: #{bottleneck_forward.4} parent=5 // pred_check
      %p128 = pneg %p127
    $region18: #{bottleneck_forward.4} parent=5 // pred_check_branch
      %130 = sbr.rel (%p128) target = $region20
    $region19: #{bottleneck_forward.4} parent=5 // pred_region
      // Predicated region
      $region21: #{bottleneck_forward.4} parent=19 // pred_check
        %p131 = pneg %p30
      $region22: #{bottleneck_forward.4} parent=19 // pred_check_branch
        %133 = sbr.rel (%p131) target = $region24
      $region23: #{bottleneck_forward.4} parent=19 // pred_region
        %s134 = smul.u32 32, %s10
        %p135 = scmp.lt.s32.totalorder %s134, 63
        %s136 = scalar_select %p135, %s134, 63
        %s137 = smul.addr %s136, 8
        %s138 = scalar_lea.vmem %s0, %s137
        %s139 = smul.u32 32, %s10
      $region24: #{bottleneck_forward.4} parent=19 // pred_fallthru
        _
    $region20: #{bottleneck_forward.4} parent=5 // pred_fallthru
      _
    %p140 = scmp.le.s32.totalorder 1, %s10
    %p141 = scmp.lt.s32.totalorder %s10, 3
    %p142 = pnand %p140, %p141
    %p143 = pneg %p142
    // Predicated region
    $region25: #{bottleneck_forward.4} parent=5 // pred_check
      _
    $region26: #{bottleneck_forward.4} parent=5 // pred_check_branch
      %145 = sbr.rel (%p142) target = $region28
    $region27: #{bottleneck_forward.4} parent=5 // pred_region
      %s146 = ssub.s32 %s10, 1
      %s147 = smul.u32 32, %s15
      %p148 = scmp.lt.s32.totalorder %s147, 63
      %s149 = scalar_select %p148, %s147, 63
      %s150 = smul.addr %s149, 8
      %s151 = scalar_lea.vmem %s0, %s150
      %p152 = pneg %p36
      %p153 = pneg %p33
      %p154 = pneg %p57
      %p155 = pneg %p54
      %p156 = pneg %p83
      %p157 = pneg %p80
      %s158 = smul.u32 32, %s15
      %p159 = scmp.lt.s32.totalorder %s158, 63
      %s160 = scalar_select %p159, %s158, 63
      %s161 = smul.addr %s160, 8
      %s162 = scalar_lea.vmem %s2, %s161
      %p163 = pneg %p109
      %p164 = pneg %p106
      %p165 = scmp.lt.s32.totalorder %s15, 1
      %s166 = scalar_select %p165, %s15, 1
      %s167 = smul.addr %s166, 2
      %s168 = scalar_lea.vmem %s3, %s167
      %s169 = smul.u32 32, %s15
      %p170 = scmp.lt.s32.totalorder %s169, 63
      %s171 = scalar_select %p170, %s169, 63
      %s172 = smul.addr %s171, 8
      %s173 = scalar_lea.vmem %s0, %s172
      %s174 = smul.u32 32, %s15
      %s175 = smul.u32 32, %s15
      %p176 = scmp.lt.s32.totalorder %s175, 63
      %s177 = scalar_select %p176, %s175, 63
      %s178 = smul.addr %s177, 8
      %s179 = scalar_lea.vmem %s2, %s178
      %s180 = smul.u32 32, %s15
      %p181 = scmp.lt.s32.totalorder %s15, 1
      %s182 = scalar_select %p181, %s15, 1
      %s183 = smul.addr %s182, 2
      %s184 = scalar_lea.vmem %s3, %s183
      %v186 = vld [vmem:[%s173] sm:$0xff]
      %v187 = vld [vmem:[%s173 + $0x8] sm:$0xff]
      %v188 = vld [vmem:[%s173 + $0x10] sm:$0xff]
      %v189 = vld [vmem:[%s173 + $0x18] sm:$0xff]
      %v190 = vld [vmem:[%s173 + $0x20] sm:$0xff]
      %v191 = vld [vmem:[%s173 + $0x28] sm:$0xff]
      %v192 = vld [vmem:[%s173 + $0x30] sm:$0xff]
      %v193 = vld [vmem:[%s173 + $0x38] sm:$0xff]
      %v194 = vld [vmem:[%s173 + $0x40] sm:$0xff]
      %v195 = vld [vmem:[%s173 + $0x48] sm:$0xff]
      %v196 = vld [vmem:[%s173 + $0x50] sm:$0xff]
      %v197 = vld [vmem:[%s173 + $0x58] sm:$0xff]
      %v198 = vld [vmem:[%s173 + $0x60] sm:$0xff]
      %v199 = vld [vmem:[%s173 + $0x68] sm:$0xff]
      %v200 = vld [vmem:[%s173 + $0x70] sm:$0xff]
      %v201 = vld [vmem:[%s173 + $0x78] sm:$0xff]
      %v202 = vld [vmem:[%s173 + $0x80] sm:$0xff]
      %v203 = vld [vmem:[%s173 + $0x88] sm:$0xff]
      %v204 = vld [vmem:[%s173 + $0x90] sm:$0xff]
      %v205 = vld [vmem:[%s173 + $0x98] sm:$0xff]
      %v206 = vld [vmem:[%s173 + $0xa0] sm:$0xff]
      %v207 = vld [vmem:[%s173 + $0xa8] sm:$0xff]
      %v208 = vld [vmem:[%s173 + $0xb0] sm:$0xff]
      %v209 = vld [vmem:[%s173 + $0xb8] sm:$0xff]
      %v210 = vld [vmem:[%s173 + $0xc0] sm:$0xff]
      %v211 = vld [vmem:[%s173 + $0xc8] sm:$0xff]
      %v212 = vld [vmem:[%s173 + $0xd0] sm:$0xff]
      %v213 = vld [vmem:[%s173 + $0xd8] sm:$0xff]
      %v214 = vld [vmem:[%s173 + $0xe0] sm:$0xff]
      %v215 = vld [vmem:[%s173 + $0xe8] sm:$0xff]
      %v216 = vld [vmem:[%s173 + $0xf0] sm:$0xff]
      %v217 = vld [vmem:[%s173 + $0xf8] sm:$0xff]
      %v218 = vpack.c.bf16 %v187, %v186
      %v219 = vpack.c.bf16 %v189, %v188
      %v220 = vpack.c.bf16 %v191, %v190
      %v221 = vpack.c.bf16 %v193, %v192
      %v222 = vpack.c.bf16 %v195, %v194
      %v223 = vpack.c.bf16 %v197, %v196
      %v224 = vpack.c.bf16 %v199, %v198
      %v225 = vpack.c.bf16 %v201, %v200
      %v226 = vpack.c.bf16 %v203, %v202
      %v227 = vpack.c.bf16 %v205, %v204
      %v228 = vpack.c.bf16 %v207, %v206
      %v229 = vpack.c.bf16 %v209, %v208
      %v230 = vpack.c.bf16 %v211, %v210
      %v231 = vpack.c.bf16 %v213, %v212
      %v232 = vpack.c.bf16 %v215, %v214
      %v233 = vpack.c.bf16 %v217, %v216
      %v234 = vld [vmem:[%s1] sm:$0xf]
      %v235 = vld [vmem:[%s1 + $0x4] sm:$0xf]
      %v236 = vld [vmem:[%s1 + $0x8] sm:$0xf]
      %v237 = vld [vmem:[%s1 + $0xc] sm:$0xf]
      %v238 = vld [vmem:[%s1 + $0x10] sm:$0xf]
      %v239 = vld [vmem:[%s1 + $0x14] sm:$0xf]
      %v240 = vld [vmem:[%s1 + $0x18] sm:$0xf]
      %v241 = vld [vmem:[%s1 + $0x1c] sm:$0xf]
      %v242 = vld [vmem:[%s1 + $0x20] sm:$0xf]
      %v243 = vld [vmem:[%s1 + $0x24] sm:$0xf]
      %v244 = vld [vmem:[%s1 + $0x28] sm:$0xf]
      %v245 = vld [vmem:[%s1 + $0x2c] sm:$0xf]
      %v246 = vld [vmem:[%s1 + $0x30] sm:$0xf]
      %v247 = vld [vmem:[%s1 + $0x34] sm:$0xf]
      %v248 = vld [vmem:[%s1 + $0x38] sm:$0xf]
      %v249 = vld [vmem:[%s1 + $0x3c] sm:$0xf]
      %v266 = vunpack.c.l.b16 %v234
      %v267 = vunpack.c.l.b16 %v235
      %v268 = vunpack.c.l.b16 %v236
      %v269 = vunpack.c.l.b16 %v237
      %v270 = vunpack.c.l.b16 %v238
      %v271 = vunpack.c.l.b16 %v239
      %v272 = vunpack.c.l.b16 %v240
      %v273 = vunpack.c.l.b16 %v241
      %v274 = vunpack.c.l.b16 %v242
      %v275 = vunpack.c.l.b16 %v243
      %v276 = vunpack.c.l.b16 %v244
      %v277 = vunpack.c.l.b16 %v245
      %v278 = vunpack.c.l.b16 %v246
      %v279 = vunpack.c.l.b16 %v247
      %v280 = vunpack.c.l.b16 %v248
      %v281 = vunpack.c.l.b16 %v249
      %v282 = vpack.c.b16 %v267, %v266
      %v283 = vpack.c.b16 %v269, %v268
      %v284 = vpack.c.b16 %v271, %v270
      %v285 = vpack.c.b16 %v273, %v272
      %v286 = vpack.c.b16 %v275, %v274
      %v287 = vpack.c.b16 %v277, %v276
      %v288 = vpack.c.b16 %v279, %v278
      %v289 = vpack.c.b16 %v281, %v280
      %298 = vmatprep.subr.bf16.mxu0 0
      %299 = vmatpush1.bf16.msra.mxu0 %v282
      %300 = vmatprep.subr.bf16.mxu0 0
      %301 = vmatpush1.bf16.msra.mxu0 %v283
      %302 = vmatprep.subr.bf16.mxu0 0
      %303 = vmatpush1.bf16.msra.mxu0 %v284
      %304 = vmatprep.subr.bf16.mxu0 0
      %305 = vmatpush1.bf16.msra.mxu0 %v285
      %306 = vmatprep.subr.bf16.mxu0 0
      %307 = vmatpush1.bf16.msra.mxu0 %v286
      %308 = vmatprep.subr.bf16.mxu0 0
      %309 = vmatpush1.bf16.msra.mxu0 %v287
      %310 = vmatprep.subr.bf16.mxu0 0
      %311 = vmatpush1.bf16.msra.mxu0 %v288
      %312 = vmatprep.subr.bf16.mxu0 0
      %313 = vmatpush1.bf16.msra.mxu0 %v289
      %314 = vmatprep.subr.bf16.mxu0 0
      %315 = vmatpush1.bf16.msra.mxu0 0
      %316 = vmatprep.subr.bf16.mxu0 0
      %317 = vmatpush1.bf16.msra.mxu0 0
      %318 = vmatprep.subr.bf16.mxu0 0
      %319 = vmatpush1.bf16.msra.mxu0 0
      %320 = vmatprep.subr.bf16.mxu0 0
      %321 = vmatpush1.bf16.msra.mxu0 0
      %322 = vmatprep.subr.bf16.mxu0 0
      %323 = vmatpush1.bf16.msra.mxu0 0
      %324 = vmatprep.subr.bf16.mxu0 0
      %325 = vmatpush1.bf16.msra.mxu0 0
      %326 = vmatprep.subr.bf16.mxu0 0
      %327 = vmatpush1.bf16.msra.mxu0 0
      %328 = vmatprep.subr.bf16.mxu0 0
      %329 = vmatpush1.bf16.msra.mxu0 0
      %330 = vmatprep.mubr.bf16.mxu0 0
      %331 = vmatmul.mubr.bf16.gmra.mrb[0].mxu0 %v218
      %v332 = vpop.f32.mrb[0].mxu0
      %v333 = vadd.f32 0.0, %v332
      %v334 = vpop.f32.mrb[0].mxu0
      %v335 = vpop.f32.mrb[0].mxu0
      %v336 = vadd.f32 0.0, %v335
      %v337 = vpop.f32.mrb[0].mxu0
      %338 = vmatprep.mubr.bf16.mxu0 0
      %339 = vmatmul.mubr.bf16.gmra.mrb[0].mxu0 %v219
      %v340 = vpop.f32.mrb[0].mxu0
      %v341 = vadd.f32 0.0, %v340
      %v342 = vpop.f32.mrb[0].mxu0
      %v343 = vpop.f32.mrb[0].mxu0
      %v344 = vadd.f32 0.0, %v343
      %v345 = vpop.f32.mrb[0].mxu0
      %346 = vmatprep.mubr.bf16.mxu0 0
      %347 = vmatmul.mubr.bf16.gmra.mrb[0].mxu0 %v220
      %v348 = vpop.f32.mrb[0].mxu0
      %v349 = vadd.f32 0.0, %v348
      %v350 = vpop.f32.mrb[0].mxu0
      %v351 = vpop.f32.mrb[0].mxu0
      %v352 = vadd.f32 0.0, %v351
      %v353 = vpop.f32.mrb[0].mxu0
      %354 = vmatprep.mubr.bf16.mxu0 0
      %355 = vmatmul.mubr.bf16.gmra.mrb[0].mxu0 %v221
      %v356 = vpop.f32.mrb[0].mxu0
      %v357 = vadd.f32 0.0, %v356
      %v358 = vpop.f32.mrb[0].mxu0
      %v359 = vpop.f32.mrb[0].mxu0
      %v360 = vadd.f32 0.0, %v359
      %v361 = vpop.f32.mrb[0].mxu0
      %362 = vmatprep.mubr.bf16.mxu0 0
      %363 = vmatmul.mubr.bf16.gmra.mrb[0].mxu0 %v222
      %v364 = vpop.f32.mrb[0].mxu0
      %v365 = vadd.f32 0.0, %v364
      %v366 = vpop.f32.mrb[0].mxu0
      %v367 = vpop.f32.mrb[0].mxu0
      %v368 = vadd.f32 0.0, %v367
      %v369 = vpop.f32.mrb[0].mxu0
      %370 = vmatprep.mubr.bf16.mxu0 0
      %371 = vmatmul.mubr.bf16.gmra.mrb[0].mxu0 %v223
      %v372 = vpop.f32.mrb[0].mxu0
      %v373 = vadd.f32 0.0, %v372
      %v374 = vpop.f32.mrb[0].mxu0
      %v375 = vpop.f32.mrb[0].mxu0
      %v376 = vadd.f32 0.0, %v375
      %v377 = vpop.f32.mrb[0].mxu0
      %378 = vmatprep.mubr.bf16.mxu0 0
      %379 = vmatmul.mubr.bf16.gmra.mrb[0].mxu0 %v224
      %v380 = vpop.f32.mrb[0].mxu0
      %v381 = vadd.f32 0.0, %v380
      %v382 = vpop.f32.mrb[0].mxu0
      %v383 = vpop.f32.mrb[0].mxu0
      %v384 = vadd.f32 0.0, %v383
      %v385 = vpop.f32.mrb[0].mxu0
      %386 = vmatprep.mubr.bf16.mxu0 0
      %387 = vmatmul.mubr.bf16.gmra.mrb[0].mxu0 %v225
      %v388 = vpop.f32.mrb[0].mxu0
      %v389 = vadd.f32 0.0, %v388
      %v390 = vpop.f32.mrb[0].mxu0
      %v391 = vpop.f32.mrb[0].mxu0
      %v392 = vadd.f32 0.0, %v391
      %v393 = vpop.f32.mrb[0].mxu0
      %394 = vmatprep.mubr.bf16.mxu0 0
      %395 = vmatmul.mubr.bf16.gmra.mrb[0].mxu0 %v226
      %v396 = vpop.f32.mrb[0].mxu0
      %v397 = vadd.f32 0.0, %v396
      %v398 = vpop.f32.mrb[0].mxu0
      %v399 = vpop.f32.mrb[0].mxu0
      %v400 = vadd.f32 0.0, %v399
      %v401 = vpop.f32.mrb[0].mxu0
      %402 = vmatprep.mubr.bf16.mxu0 0
      %403 = vmatmul.mubr.bf16.gmra.mrb[0].mxu0 %v227
      %v404 = vpop.f32.mrb[0].mxu0
      %v405 = vadd.f32 0.0, %v404
      %v406 = vpop.f32.mrb[0].mxu0
      %v407 = vpop.f32.mrb[0].mxu0
      %v408 = vadd.f32 0.0, %v407
      %v409 = vpop.f32.mrb[0].mxu0
      %410 = vmatprep.mubr.bf16.mxu0 0
      %411 = vmatmul.mubr.bf16.gmra.mrb[0].mxu0 %v228
      %v412 = vpop.f32.mrb[0].mxu0
      %v413 = vadd.f32 0.0, %v412
      %v414 = vpop.f32.mrb[0].mxu0
      %v415 = vpop.f32.mrb[0].mxu0
      %v416 = vadd.f32 0.0, %v415
      %v417 = vpop.f32.mrb[0].mxu0
      %418 = vmatprep.mubr.bf16.mxu0 0
      %419 = vmatmul.mubr.bf16.gmra.mrb[0].mxu0 %v229
      %v420 = vpop.f32.mrb[0].mxu0
      %v421 = vadd.f32 0.0, %v420
      %v422 = vpop.f32.mrb[0].mxu0
      %v423 = vpop.f32.mrb[0].mxu0
      %v424 = vadd.f32 0.0, %v423
      %v425 = vpop.f32.mrb[0].mxu0
      %426 = vmatprep.mubr.bf16.mxu0 0
      %427 = vmatmul.mubr.bf16.gmra.mrb[0].mxu0 %v230
      %v428 = vpop.f32.mrb[0].mxu0
      %v429 = vadd.f32 0.0, %v428
      %v430 = vpop.f32.mrb[0].mxu0
      %v431 = vpop.f32.mrb[0].mxu0
      %v432 = vadd.f32 0.0, %v431
      %v433 = vpop.f32.mrb[0].mxu0
      %434 = vmatprep.mubr.bf16.mxu0 0
      %435 = vmatmul.mubr.bf16.gmra.mrb[0].mxu0 %v231
      %v436 = vpop.f32.mrb[0].mxu0
      %v437 = vadd.f32 0.0, %v436
      %v438 = vpop.f32.mrb[0].mxu0
      %v439 = vpop.f32.mrb[0].mxu0
      %v440 = vadd.f32 0.0, %v439
      %v441 = vpop.f32.mrb[0].mxu0
      %442 = vmatprep.mubr.bf16.mxu0 0
      %443 = vmatmul.mubr.bf16.gmra.mrb[0].mxu0 %v232
      %v444 = vpop.f32.mrb[0].mxu0
      %v445 = vadd.f32 0.0, %v444
      %v446 = vpop.f32.mrb[0].mxu0
      %v447 = vpop.f32.mrb[0].mxu0
      %v448 = vadd.f32 0.0, %v447
      %v449 = vpop.f32.mrb[0].mxu0
      %450 = vmatprep.mubr.bf16.mxu0 0
      %451 = vmatmul.mubr.bf16.gmra.mrb[0].mxu0 %v233
      %v452 = vpop.f32.mrb[0].mxu0
      %v453 = vadd.f32 0.0, %v452
      %v454 = vpop.f32.mrb[0].mxu0
      %v455 = vpop.f32.mrb[0].mxu0
      %v456 = vadd.f32 0.0, %v455
      %v457 = vpop.f32.mrb[0].mxu0
      %458 = vdwg.mxu0
      %vm459 = vcmask 261120
      %460 = vst.msk [vmem:[%s179] sm:$0xff] %vm459, %v333
      %461 = vst.msk [vmem:[%s179 + $0x8] sm:$0xff] %vm459, %v336
      %462 = vst.msk [vmem:[%s179 + $0x10] sm:$0xff] %vm459, %v341
      %463 = vst.msk [vmem:[%s179 + $0x18] sm:$0xff] %vm459, %v344
      %464 = vst.msk [vmem:[%s179 + $0x20] sm:$0xff] %vm459, %v349
      %465 = vst.msk [vmem:[%s179 + $0x28] sm:$0xff] %vm459, %v352
      %466 = vst.msk [vmem:[%s179 + $0x30] sm:$0xff] %vm459, %v357
      %467 = vst.msk [vmem:[%s179 + $0x38] sm:$0xff] %vm459, %v360
      %468 = vst.msk [vmem:[%s179 + $0x40] sm:$0xff] %vm459, %v365
      %469 = vst.msk [vmem:[%s179 + $0x48] sm:$0xff] %vm459, %v368
      %470 = vst.msk [vmem:[%s179 + $0x50] sm:$0xff] %vm459, %v373
      %471 = vst.msk [vmem:[%s179 + $0x58] sm:$0xff] %vm459, %v376
      %472 = vst.msk [vmem:[%s179 + $0x60] sm:$0xff] %vm459, %v381
      %473 = vst.msk [vmem:[%s179 + $0x68] sm:$0xff] %vm459, %v384
      %474 = vst.msk [vmem:[%s179 + $0x70] sm:$0xff] %vm459, %v389
      %475 = vst.msk [vmem:[%s179 + $0x78] sm:$0xff] %vm459, %v392
      %476 = vst.msk [vmem:[%s179 + $0x80] sm:$0xff] %vm459, %v397
      %477 = vst.msk [vmem:[%s179 + $0x88] sm:$0xff] %vm459, %v400
      %478 = vst.msk [vmem:[%s179 + $0x90] sm:$0xff] %vm459, %v405
      %479 = vst.msk [vmem:[%s179 + $0x98] sm:$0xff] %vm459, %v408
      %480 = vst.msk [vmem:[%s179 + $0xa0] sm:$0xff] %vm459, %v413
      %481 = vst.msk [vmem:[%s179 + $0xa8] sm:$0xff] %vm459, %v416
      %482 = vst.msk [vmem:[%s179 + $0xb0] sm:$0xff] %vm459, %v421
      %483 = vst.msk [vmem:[%s179 + $0xb8] sm:$0xff] %vm459, %v424
      %484 = vst.msk [vmem:[%s179 + $0xc0] sm:$0xff] %vm459, %v429
      %485 = vst.msk [vmem:[%s179 + $0xc8] sm:$0xff] %vm459, %v432
      %486 = vst.msk [vmem:[%s179 + $0xd0] sm:$0xff] %vm459, %v437
      %487 = vst.msk [vmem:[%s179 + $0xd8] sm:$0xff] %vm459, %v440
      %488 = vst.msk [vmem:[%s179 + $0xe0] sm:$0xff] %vm459, %v445
      %489 = vst.msk [vmem:[%s179 + $0xe8] sm:$0xff] %vm459, %v448
      %490 = vst.msk [vmem:[%s179 + $0xf0] sm:$0xff] %vm459, %v453
      %491 = vst.msk [vmem:[%s179 + $0xf8] sm:$0xff] %vm459, %v456
      %v492 = vsel %vm459, %v333, 0.0
      %v493 = vsel %vm459, %v336, 0.0
      %v494 = vadd.f32 %v492, %v493
      %v495 = vsel %vm459, %v341, 0.0
      %v496 = vadd.f32 %v494, %v495
      %v497 = vsel %vm459, %v344, 0.0
      %v498 = vadd.f32 %v496, %v497
      %v499 = vsel %vm459, %v349, 0.0
      %v500 = vadd.f32 %v498, %v499
      %v501 = vsel %vm459, %v352, 0.0
      %v502 = vadd.f32 %v500, %v501
      %v503 = vsel %vm459, %v357, 0.0
      %v504 = vadd.f32 %v502, %v503
      %v505 = vsel %vm459, %v360, 0.0
      %v506 = vadd.f32 %v504, %v505
      %v507 = vsel %vm459, %v365, 0.0
      %v508 = vadd.f32 %v506, %v507
      %v509 = vsel %vm459, %v368, 0.0
      %v510 = vadd.f32 %v508, %v509
      %v511 = vsel %vm459, %v373, 0.0
      %v512 = vadd.f32 %v510, %v511
      %v513 = vsel %vm459, %v376, 0.0
      %v514 = vadd.f32 %v512, %v513
      %v515 = vsel %vm459, %v381, 0.0
      %v516 = vadd.f32 %v514, %v515
      %v517 = vsel %vm459, %v384, 0.0
      %v518 = vadd.f32 %v516, %v517
      %v519 = vsel %vm459, %v389, 0.0
      %v520 = vadd.f32 %v518, %v519
      %v521 = vsel %vm459, %v392, 0.0
      %v522 = vadd.f32 %v520, %v521
      %v523 = vsel %vm459, %v397, 0.0
      %v524 = vadd.f32 %v522, %v523
      %v525 = vsel %vm459, %v400, 0.0
      %v526 = vadd.f32 %v524, %v525
      %v527 = vsel %vm459, %v405, 0.0
      %v528 = vadd.f32 %v526, %v527
      %v529 = vsel %vm459, %v408, 0.0
      %v530 = vadd.f32 %v528, %v529
      %v531 = vsel %vm459, %v413, 0.0
      %v532 = vadd.f32 %v530, %v531
      %v533 = vsel %vm459, %v416, 0.0
      %v534 = vadd.f32 %v532, %v533
      %v535 = vsel %vm459, %v421, 0.0
      %v536 = vadd.f32 %v534, %v535
      %v537 = vsel %vm459, %v424, 0.0
      %v538 = vadd.f32 %v536, %v537
      %v539 = vsel %vm459, %v429, 0.0
      %v540 = vadd.f32 %v538, %v539
      %v541 = vsel %vm459, %v432, 0.0
      %v542 = vadd.f32 %v540, %v541
      %v543 = vsel %vm459, %v437, 0.0
      %v544 = vadd.f32 %v542, %v543
      %v545 = vsel %vm459, %v440, 0.0
      %v546 = vadd.f32 %v544, %v545
      %v547 = vsel %vm459, %v445, 0.0
      %v548 = vadd.f32 %v546, %v547
      %v549 = vsel %vm459, %v448, 0.0
      %v550 = vadd.f32 %v548, %v549
      %v551 = vsel %vm459, %v453, 0.0
      %v552 = vadd.f32 %v550, %v551
      %v553 = vsel %vm459, %v456, 0.0
      %v554 = vadd.f32 %v552, %v553
      %v555 = vrot.slane %v554, 4
      %v556 = vadd.f32 %v554, %v555
      %v557 = vrot.slane %v556, 2
      %v558 = vadd.f32 %v556, %v557
      %v559 = vrot.slane %v558, 1
      %v560 = vadd.f32 %v558, %v559
      %v561 = vmul.f32 %v333, %v333
      %v562 = vmul.f32 %v336, %v336
      %v563 = vmul.f32 %v341, %v341
      %v564 = vmul.f32 %v344, %v344
      %v565 = vmul.f32 %v349, %v349
      %v566 = vmul.f32 %v352, %v352
      %v567 = vmul.f32 %v357, %v357
      %v568 = vmul.f32 %v360, %v360
      %v569 = vmul.f32 %v365, %v365
      %v570 = vmul.f32 %v368, %v368
      %v571 = vmul.f32 %v373, %v373
      %v572 = vmul.f32 %v376, %v376
      %v573 = vmul.f32 %v381, %v381
      %v574 = vmul.f32 %v384, %v384
      %v575 = vmul.f32 %v389, %v389
      %v576 = vmul.f32 %v392, %v392
      %v577 = vmul.f32 %v397, %v397
      %v578 = vmul.f32 %v400, %v400
      %v579 = vmul.f32 %v405, %v405
      %v580 = vmul.f32 %v408, %v408
      %v581 = vmul.f32 %v413, %v413
      %v582 = vmul.f32 %v416, %v416
      %v583 = vmul.f32 %v421, %v421
      %v584 = vmul.f32 %v424, %v424
      %v585 = vmul.f32 %v429, %v429
      %v586 = vmul.f32 %v432, %v432
      %v587 = vmul.f32 %v437, %v437
      %v588 = vmul.f32 %v440, %v440
      %v589 = vmul.f32 %v445, %v445
      %v590 = vmul.f32 %v448, %v448
      %v591 = vmul.f32 %v453, %v453
      %v592 = vmul.f32 %v456, %v456
      %v593 = vsel %vm459, %v561, 0.0
      %v594 = vsel %vm459, %v562, 0.0
      %v595 = vadd.f32 %v593, %v594
      %v596 = vsel %vm459, %v563, 0.0
      %v597 = vadd.f32 %v595, %v596
      %v598 = vsel %vm459, %v564, 0.0
      %v599 = vadd.f32 %v597, %v598
      %v600 = vsel %vm459, %v565, 0.0
      %v601 = vadd.f32 %v599, %v600
      %v602 = vsel %vm459, %v566, 0.0
      %v603 = vadd.f32 %v601, %v602
      %v604 = vsel %vm459, %v567, 0.0
      %v605 = vadd.f32 %v603, %v604
      %v606 = vsel %vm459, %v568, 0.0
      %v607 = vadd.f32 %v605, %v606
      %v608 = vsel %vm459, %v569, 0.0
      %v609 = vadd.f32 %v607, %v608
      %v610 = vsel %vm459, %v570, 0.0
      %v611 = vadd.f32 %v609, %v610
      %v612 = vsel %vm459, %v571, 0.0
      %v613 = vadd.f32 %v611, %v612
      %v614 = vsel %vm459, %v572, 0.0
      %v615 = vadd.f32 %v613, %v614
      %v616 = vsel %vm459, %v573, 0.0
      %v617 = vadd.f32 %v615, %v616
      %v618 = vsel %vm459, %v574, 0.0
      %v619 = vadd.f32 %v617, %v618
      %v620 = vsel %vm459, %v575, 0.0
      %v621 = vadd.f32 %v619, %v620
      %v622 = vsel %vm459, %v576, 0.0
      %v623 = vadd.f32 %v621, %v622
      %v624 = vsel %vm459, %v577, 0.0
      %v625 = vadd.f32 %v623, %v624
      %v626 = vsel %vm459, %v578, 0.0
      %v627 = vadd.f32 %v625, %v626
      %v628 = vsel %vm459, %v579, 0.0
      %v629 = vadd.f32 %v627, %v628
      %v630 = vsel %vm459, %v580, 0.0
      %v631 = vadd.f32 %v629, %v630
      %v632 = vsel %vm459, %v581, 0.0
      %v633 = vadd.f32 %v631, %v632
      %v634 = vsel %vm459, %v582, 0.0
      %v635 = vadd.f32 %v633, %v634
      %v636 = vsel %vm459, %v583, 0.0
      %v637 = vadd.f32 %v635, %v636
      %v638 = vsel %vm459, %v584, 0.0
      %v639 = vadd.f32 %v637, %v638
      %v640 = vsel %vm459, %v585, 0.0
      %v641 = vadd.f32 %v639, %v640
      %v642 = vsel %vm459, %v586, 0.0
      %v643 = vadd.f32 %v641, %v642
      %v644 = vsel %vm459, %v587, 0.0
      %v645 = vadd.f32 %v643, %v644
      %v646 = vsel %vm459, %v588, 0.0
      %v647 = vadd.f32 %v645, %v646
      %v648 = vsel %vm459, %v589, 0.0
      %v649 = vadd.f32 %v647, %v648
      %v650 = vsel %vm459, %v590, 0.0
      %v651 = vadd.f32 %v649, %v650
      %v652 = vsel %vm459, %v591, 0.0
      %v653 = vadd.f32 %v651, %v652
      %v654 = vsel %vm459, %v592, 0.0
      %v655 = vadd.f32 %v653, %v654
      %v656 = vrot.slane %v655, 4
      %v657 = vadd.f32 %v655, %v656
      %v658 = vrot.slane %v657, 2
      %v659 = vadd.f32 %v657, %v658
      %v660 = vrot.slane %v659, 1
      %v661 = vadd.f32 %v659, %v660
      %vm662 = vcmask 1040384
      %v663 = vsel %vm662, %v560, %v661
      %vm664 = vcmask 254976
      %665 = vst.msk [vmem:[%s184] sm:$0x3] %vm664, %v663
      %s666 = smul.u32 32, %s15
      %p667 = scmp.lt.s32.totalorder %s666, 63
      %s668 = scalar_select %p667, %s666, 63
      %s669 = smul.addr %s668, 8
      %s670 = scalar_lea.vmem %s2, %s669
      %p671 = scmp.lt.s32.totalorder %s15, 1
      %s672 = scalar_select %p671, %s15, 1
      %s673 = smul.addr %s672, 2
      %s674 = scalar_lea.vmem %s3, %s673
      // Predicated region
      $region29: #{bottleneck_forward.4} parent=27 // pred_check
        %p675 = pneg %p80
      $region30: #{bottleneck_forward.4} parent=27 // pred_check_branch
        %677 = sbr.rel (%p675) target = $region32
      $region31: #{bottleneck_forward.4} parent=27 // pred_region
        %s678 = smul.u32 32, %s15
      $region32: #{bottleneck_forward.4} parent=27 // pred_fallthru
        _
      // Predicated region
      $region33: #{bottleneck_forward.4} parent=27 // pred_check
        %p679 = pneg %p106
      $region34: #{bottleneck_forward.4} parent=27 // pred_check_branch
        %681 = sbr.rel (%p679) target = $region36
      $region35: #{bottleneck_forward.4} parent=27 // pred_region
        _
      $region36: #{bottleneck_forward.4} parent=27 // pred_fallthru
        _
    $region28: #{bottleneck_forward.4} parent=5 // pred_fallthru
      _
    %p682 = scmp.le.s32.totalorder 2, %s10
    // Predicated region
    $region37: #{bottleneck_forward.4} parent=5 // pred_check
      %p683 = pneg %p682
    $region38: #{bottleneck_forward.4} parent=5 // pred_check_branch
      %685 = sbr.rel (%p683) target = $region40
    $region39: #{bottleneck_forward.4} parent=5 // pred_region
      %s686 = ssub.s32 %s10, 2
      // Predicated region
      $region41: #{bottleneck_forward.4} parent=39 // pred_check
        %p687 = pneg %p86
      $region42: #{bottleneck_forward.4} parent=39 // pred_check_branch
        %689 = sbr.rel (%p687) target = $region44
      $region43: #{bottleneck_forward.4} parent=39 // pred_region
        %s690 = smul.u32 32, %s16
        %p691 = scmp.lt.s32.totalorder %s690, 63
        %s692 = scalar_select %p691, %s690, 63
        %s693 = smul.addr %s692, 8
        %s694 = scalar_lea.vmem %s2, %s693
      $region44: #{bottleneck_forward.4} parent=39 // pred_fallthru
        _
      // Predicated region
      $region45: #{bottleneck_forward.4} parent=39 // pred_check
        %p695 = pneg %p112
      $region46: #{bottleneck_forward.4} parent=39 // pred_check_branch
        %697 = sbr.rel (%p695) target = $region48
      $region47: #{bottleneck_forward.4} parent=39 // pred_region
        %p698 = scmp.lt.s32.totalorder %s16, 1
        %s699 = scalar_select %p698, %s16, 1
        %s700 = smul.addr %s699, 2
        %s701 = scalar_lea.vmem %s3, %s700
      $region48: #{bottleneck_forward.4} parent=39 // pred_fallthru
        _
    $region40: #{bottleneck_forward.4} parent=5 // pred_fallthru
      _
  $region6: #{bottleneck_forward.4} parent=0 // loop_footer
    %s14 = sadd.s32 1, %s10
  $region7: #{bottleneck_forward.4} parent=0 // loop_footer_branch
    %9 = sbr.rel target = $region3
  $region8: #{bottleneck_forward.4} parent=0 // loop_exit
    _

// kernel: bottleneck_forward.7
$region0: #{bottleneck_forward.7}
  #allocation0 [shape = 'u32[]', space=smem, size = 0x4, offset = 0x4, fixed_abs, tag = 'smem constant byte address 0x4 - core index']
  #allocation1 [shape = 'u32[144,128]{1,0:T(1,128)}', space=vmem, size = 0x12000, scoped, tag = 'internal scratch']
  %s0 = inlined_call_operand.vmem [shape: f32[512,128], index: 0, kind: input, shape index: {}]
  %s1 = inlined_call_operand.vmem [shape: f32[2,128], index: 1, kind: input, shape index: {}]
  %s2 = inlined_call_operand.vmem [shape: f32[512,128], index: 2, kind: input, shape index: {}, may-alias: {2,3}]
  %s3 = inlined_call_operand.vmem [shape: f32[512,128], index: 3, kind: output, shape index: {}, may-alias: {2,3}]
  %s4 = sld [smem:[#allocation0]]
  $region45: #{bottleneck_forward.7} parent=0
    _
  %s6 = ssub.s32 1, %s4
  %s7 = scalar_select 0, %s6, %s4
  loop: start=0, step=1, limit=4
  $region2: #{bottleneck_forward.7} parent=0 // loop_pre_header
    _
  $region3: #{bottleneck_forward.7} parent=0 // loop_header
    %s9 = sphi 0, %s13
    %p10 = scmp.ge.s32.totalorder %s9, 4
    %s19 = sphi 0, %s21
    %s22 = sphi 0, %s19
    %s23 = sphi 0, %s22
    %s39 = sphi 0, %s23
    %s43 = sphi 0, %s43
    %s45 = sphi 0, %s43
    %s46 = sphi 0, %s45
    %s60 = sphi 0, %s46
    %s66 = sphi 0, %s68
    %s69 = sphi 0, %s66
    %s70 = sphi 0, %s69
    %s86 = sphi 0, %s70
    %s92 = sphi 0, %s94
    %s95 = sphi 0, %s92
    %s96 = sphi 0, %s95
    %s112 = sphi 0, %s96
  $region4: #{bottleneck_forward.7} parent=0 // loop_header_branch
    %12 = sbr.rel (%p10) target = $region8
  $region5: #{bottleneck_forward.7} parent=0 // loop_body
    %s14 = ssub.s32 %s9, 1
    %s15 = ssub.s32 %s9, 2
    %s16 = sadd.s32 %s9, 1
    %s17 = ssub.s32 %s9, %s16
    %p18 = scmp.eq.s32.totalorder %s17, 0
    %s20 = sadd.s32 %s19, 1
    %s21 = scalar_select %p18, %s19, %s20
    %p24 = pneg %p18
    %p25 = scmp.eq.s32.totalorder %s9, 1
    %p26 = por %p24, %p25
    %p27 = scmp.ne.s32.totalorder %s19, %s22
    %p28 = scmp.eq.s32.totalorder %s9, 0
    %p29 = por %p27, %p28
    %p30 = scmp.ne.s32.totalorder %s19, %s22
    %p31 = scmp.eq.s32.totalorder %s14, 1
    %p32 = por %p30, %p31
    %p33 = scmp.ne.s32.totalorder %s22, %s23
    %p34 = scmp.eq.s32.totalorder %s14, 0
    %p35 = por %p33, %p34
    %p36 = scmp.ne.s32.totalorder %s22, %s23
    %p37 = scmp.eq.s32.totalorder %s15, 1
    %p38 = por %p36, %p37
    %p40 = scmp.ne.s32.totalorder %s23, %s39
    %p41 = scmp.eq.s32.totalorder %s15, 0
    %p42 = por %p40, %p41
    %s44 = sadd.s32 %s43, 1
    %p47 = scmp.eq.s32.totalorder %s9, 1
    %p48 = scmp.ne.s32.totalorder %s43, %s45
    %p49 = scmp.eq.s32.totalorder %s9, 0
    %p50 = por %p48, %p49
    %p51 = scmp.ne.s32.totalorder %s43, %s45
    %p52 = scmp.eq.s32.totalorder %s14, 1
    %p53 = por %p51, %p52
    %p54 = scmp.ne.s32.totalorder %s45, %s46
    %p55 = scmp.eq.s32.totalorder %s14, 0
    %p56 = por %p54, %p55
    %p57 = scmp.ne.s32.totalorder %s45, %s46
    %p58 = scmp.eq.s32.totalorder %s15, 1
    %p59 = por %p57, %p58
    %p61 = scmp.ne.s32.totalorder %s46, %s60
    %p62 = scmp.eq.s32.totalorder %s15, 0
    %p63 = por %p61, %p62
    %s64 = ssub.s32 %s9, %s16
    %p65 = scmp.eq.s32.totalorder %s64, 0
    %s67 = sadd.s32 %s66, 1
    %s68 = scalar_select %p65, %s66, %s67
    %p71 = pneg %p65
    %p72 = scmp.eq.s32.totalorder %s9, 1
    %p73 = por %p71, %p72
    %p74 = scmp.ne.s32.totalorder %s66, %s69
    %p75 = scmp.eq.s32.totalorder %s9, 0
    %p76 = por %p74, %p75
    %p77 = scmp.ne.s32.totalorder %s66, %s69
    %p78 = scmp.eq.s32.totalorder %s14, 1
    %p79 = por %p77, %p78
    %p80 = scmp.ne.s32.totalorder %s69, %s70
    %p81 = scmp.eq.s32.totalorder %s14, 0
    %p82 = por %p80, %p81
    %p83 = scmp.ne.s32.totalorder %s69, %s70
    %p84 = scmp.eq.s32.totalorder %s15, 1
    %p85 = por %p83, %p84
    %p87 = scmp.ne.s32.totalorder %s70, %s86
    %p88 = scmp.eq.s32.totalorder %s15, 0
    %p89 = por %p87, %p88
    %s90 = ssub.s32 %s9, %s16
    %p91 = scmp.eq.s32.totalorder %s90, 0
    %s93 = sadd.s32 %s92, 1
    %s94 = scalar_select %p91, %s92, %s93
    %p97 = pneg %p91
    %p98 = scmp.eq.s32.totalorder %s9, 1
    %p99 = por %p97, %p98
    %p100 = scmp.ne.s32.totalorder %s92, %s95
    %p101 = scmp.eq.s32.totalorder %s9, 0
    %p102 = por %p100, %p101
    %p103 = scmp.ne.s32.totalorder %s92, %s95
    %p104 = scmp.eq.s32.totalorder %s14, 1
    %p105 = por %p103, %p104
    %p106 = scmp.ne.s32.totalorder %s95, %s96
    %p107 = scmp.eq.s32.totalorder %s14, 0
    %p108 = por %p106, %p107
    %p109 = scmp.ne.s32.totalorder %s95, %s96
    %p110 = scmp.eq.s32.totalorder %s15, 1
    %p111 = por %p109, %p110
    %p113 = scmp.ne.s32.totalorder %s96, %s112
    %p114 = scmp.eq.s32.totalorder %s15, 0
    %p115 = por %p113, %p114
    %p116 = scmp.le.s32.totalorder 1, %s9
    %p117 = scmp.lt.s32.totalorder %s9, 3
    %p118 = pnand %p116, %p117
    %p119 = pneg %p118
    // Predicated region
    $region9: #{bottleneck_forward.7} parent=5 // pred_check
      _
    $region10: #{bottleneck_forward.7} parent=5 // pred_check_branch
      %121 = sbr.rel (%p118) target = $region12
    $region11: #{bottleneck_forward.7} parent=5 // pred_region
      %s122 = ssub.s32 %s9, 1
      // Predicated region
      $region13: #{bottleneck_forward.7} parent=11 // pred_check
        %p123 = pneg %p56
      $region14: #{bottleneck_forward.7} parent=11 // pred_check_branch
        %125 = sbr.rel (%p123) target = $region16
      $region15: #{bottleneck_forward.7} parent=11 // pred_region
        _
      $region16: #{bottleneck_forward.7} parent=11 // pred_fallthru
        _
    $region12: #{bottleneck_forward.7} parent=5 // pred_fallthru
      _
    %p126 = scmp.lt.s32.totalorder %s9, 2
    // Predicated region
    $region17: #{bottleneck_forward.7} parent=5 // pred_check
      %p127 = pneg %p126
    $region18: #{bottleneck_forward.7} parent=5 // pred_check_branch
      %129 = sbr.rel (%p127) target = $region20
    $region19: #{bottleneck_forward.7} parent=5 // pred_region
      // Predicated region
      $region21: #{bottleneck_forward.7} parent=19 // pred_check
        %p130 = pneg %p29
      $region22: #{bottleneck_forward.7} parent=19 // pred_check_branch
        %132 = sbr.rel (%p130) target = $region24
      $region23: #{bottleneck_forward.7} parent=19 // pred_region
        %s133 = smul.u32 32, %s9
        %p134 = scmp.lt.s32.totalorder %s133, 63
        %s135 = scalar_select %p134, %s133, 63
        %s136 = smul.addr %s135, 8
        %s137 = scalar_lea.vmem %s0, %s136
        %s138 = smul.u32 32, %s9
      $region24: #{bottleneck_forward.7} parent=19 // pred_fallthru
        _
      // Predicated region
      $region25: #{bottleneck_forward.7} parent=19 // pred_check
        %p139 = pneg %p76
      $region26: #{bottleneck_forward.7} parent=19 // pred_check_branch
        %141 = sbr.rel (%p139) target = $region28
      $region27: #{bottleneck_forward.7} parent=19 // pred_region
        %s142 = smul.u32 32, %s9
        %p143 = scmp.lt.s32.totalorder %s142, 63
        %s144 = scalar_select %p143, %s142, 63
        %s145 = smul.addr %s144, 8
        %s146 = scalar_lea.vmem %s2, %s145
        %s147 = smul.u32 32, %s9
      $region28: #{bottleneck_forward.7} parent=19 // pred_fallthru
        _
    $region20: #{bottleneck_forward.7} parent=5 // pred_fallthru
      _
    %p148 = scmp.le.s32.totalorder 1, %s9
    %p149 = scmp.lt.s32.totalorder %s9, 3
    %p150 = pnand %p148, %p149
    %p151 = pneg %p150
    // Predicated region
    $region29: #{bottleneck_forward.7} parent=5 // pred_check
      _
    $region30: #{bottleneck_forward.7} parent=5 // pred_check_branch
      %153 = sbr.rel (%p150) target = $region32
    $region31: #{bottleneck_forward.7} parent=5 // pred_region
      %s154 = ssub.s32 %s9, 1
      %s155 = smul.u32 32, %s14
      %p156 = scmp.lt.s32.totalorder %s155, 63
      %s157 = scalar_select %p156, %s155, 63
      %s158 = smul.addr %s157, 8
      %s159 = scalar_lea.vmem %s0, %s158
      %p160 = pneg %p35
      %p161 = pneg %p32
      %p162 = pneg %p56
      %p163 = pneg %p53
      %s164 = smul.u32 32, %s14
      %p165 = scmp.lt.s32.totalorder %s164, 63
      %s166 = scalar_select %p165, %s164, 63
      %s167 = smul.addr %s166, 8
      %s168 = scalar_lea.vmem %s2, %s167
      %p169 = pneg %p82
      %p170 = pneg %p79
      %p171 = pneg %p108
      %p172 = pneg %p105
      %s173 = smul.u32 32, %s14
      %p174 = scmp.lt.s32.totalorder %s173, 63
      %s175 = scalar_select %p174, %s173, 63
      %s176 = smul.addr %s175, 8
      %s177 = scalar_lea.vmem %s3, %s176
      %s178 = smul.u32 32, %s14
      %p179 = scmp.lt.s32.totalorder %s178, 63
      %s180 = scalar_select %p179, %s178, 63
      %s181 = smul.addr %s180, 8
      %s182 = scalar_lea.vmem %s0, %s181
      %s183 = smul.u32 32, %s14
      %s184 = smul.u32 32, %s14
      %p185 = scmp.lt.s32.totalorder %s184, 63
      %s186 = scalar_select %p185, %s184, 63
      %s187 = smul.addr %s186, 8
      %s188 = scalar_lea.vmem %s2, %s187
      %s189 = smul.u32 32, %s14
      %s190 = smul.u32 32, %s14
      %p191 = scmp.lt.s32.totalorder %s190, 63
      %s192 = scalar_select %p191, %s190, 63
      %s193 = smul.addr %s192, 8
      %s194 = scalar_lea.vmem %s3, %s193
      %s195 = smul.u32 32, %s14
      %v196 = vld [vmem:[%s182] sm:$0xff]
      %v197 = vld [vmem:[%s182 + $0x8] sm:$0xff]
      %v198 = vld [vmem:[%s182 + $0x10] sm:$0xff]
      %v199 = vld [vmem:[%s182 + $0x18] sm:$0xff]
      %v200 = vld [vmem:[%s182 + $0x20] sm:$0xff]
      %v201 = vld [vmem:[%s182 + $0x28] sm:$0xff]
      %v202 = vld [vmem:[%s182 + $0x30] sm:$0xff]
      %v203 = vld [vmem:[%s182 + $0x38] sm:$0xff]
      %v204 = vld [vmem:[%s182 + $0x40] sm:$0xff]
      %v205 = vld [vmem:[%s182 + $0x48] sm:$0xff]
      %v206 = vld [vmem:[%s182 + $0x50] sm:$0xff]
      %v207 = vld [vmem:[%s182 + $0x58] sm:$0xff]
      %v208 = vld [vmem:[%s182 + $0x60] sm:$0xff]
      %v209 = vld [vmem:[%s182 + $0x68] sm:$0xff]
      %v210 = vld [vmem:[%s182 + $0x70] sm:$0xff]
      %v211 = vld [vmem:[%s182 + $0x78] sm:$0xff]
      %v212 = vld [vmem:[%s182 + $0x80] sm:$0xff]
      %v213 = vld [vmem:[%s182 + $0x88] sm:$0xff]
      %v214 = vld [vmem:[%s182 + $0x90] sm:$0xff]
      %v215 = vld [vmem:[%s182 + $0x98] sm:$0xff]
      %v216 = vld [vmem:[%s182 + $0xa0] sm:$0xff]
      %v217 = vld [vmem:[%s182 + $0xa8] sm:$0xff]
      %v218 = vld [vmem:[%s182 + $0xb0] sm:$0xff]
      %v219 = vld [vmem:[%s182 + $0xb8] sm:$0xff]
      %v220 = vld [vmem:[%s182 + $0xc0] sm:$0xff]
      %v221 = vld [vmem:[%s182 + $0xc8] sm:$0xff]
      %v222 = vld [vmem:[%s182 + $0xd0] sm:$0xff]
      %v223 = vld [vmem:[%s182 + $0xd8] sm:$0xff]
      %v224 = vld [vmem:[%s182 + $0xe0] sm:$0xff]
      %v225 = vld [vmem:[%s182 + $0xe8] sm:$0xff]
      %v226 = vld [vmem:[%s182 + $0xf0] sm:$0xff]
      %v227 = vld [vmem:[%s182 + $0xf8] sm:$0xff]
      %v228 = vld [vmem:[%s1] sm:$0x1]
      %v229 = vlaneseq
      %v230 = vshrl.u32 %v229, 7
      %v231 = vsub.s32 0, %v230
      %v232 = vrot.slane %v228, %v231
      %v233 = vmul.f32 %v196, %v232
      %v234 = vmul.f32 %v197, %v232
      %v235 = vmul.f32 %v198, %v232
      %v236 = vmul.f32 %v199, %v232
      %v237 = vmul.f32 %v200, %v232
      %v238 = vmul.f32 %v201, %v232
      %v239 = vmul.f32 %v202, %v232
      %v240 = vmul.f32 %v203, %v232
      %v241 = vmul.f32 %v204, %v232
      %v242 = vmul.f32 %v205, %v232
      %v243 = vmul.f32 %v206, %v232
      %v244 = vmul.f32 %v207, %v232
      %v245 = vmul.f32 %v208, %v232
      %v246 = vmul.f32 %v209, %v232
      %v247 = vmul.f32 %v210, %v232
      %v248 = vmul.f32 %v211, %v232
      %v249 = vmul.f32 %v212, %v232
      %v250 = vmul.f32 %v213, %v232
      %v251 = vmul.f32 %v214, %v232
      %v252 = vmul.f32 %v215, %v232
      %v253 = vmul.f32 %v216, %v232
      %v254 = vmul.f32 %v217, %v232
      %v255 = vmul.f32 %v218, %v232
      %v256 = vmul.f32 %v219, %v232
      %v257 = vmul.f32 %v220, %v232
      %v258 = vmul.f32 %v221, %v232
      %v259 = vmul.f32 %v222, %v232
      %v260 = vmul.f32 %v223, %v232
      %v261 = vmul.f32 %v224, %v232
      %v262 = vmul.f32 %v225, %v232
      %v263 = vmul.f32 %v226, %v232
      %v264 = vmul.f32 %v227, %v232
      %v265 = vld [vmem:[%s1 + $0x1] sm:$0x1]
      %v266 = vlaneseq
      %v267 = vshrl.u32 %v266, 7
      %v268 = vsub.s32 0, %v267
      %v269 = vrot.slane %v265, %v268
      %v270 = vadd.f32 %v233, %v269
      %v271 = vadd.f32 %v234, %v269
      %v272 = vadd.f32 %v235, %v269
      %v273 = vadd.f32 %v236, %v269
      %v274 = vadd.f32 %v237, %v269
      %v275 = vadd.f32 %v238, %v269
      %v276 = vadd.f32 %v239, %v269
      %v277 = vadd.f32 %v240, %v269
      %v278 = vadd.f32 %v241, %v269
      %v279 = vadd.f32 %v242, %v269
      %v280 = vadd.f32 %v243, %v269
      %v281 = vadd.f32 %v244, %v269
      %v282 = vadd.f32 %v245, %v269
      %v283 = vadd.f32 %v246, %v269
      %v284 = vadd.f32 %v247, %v269
      %v285 = vadd.f32 %v248, %v269
      %v286 = vadd.f32 %v249, %v269
      %v287 = vadd.f32 %v250, %v269
      %v288 = vadd.f32 %v251, %v269
      %v289 = vadd.f32 %v252, %v269
      %v290 = vadd.f32 %v253, %v269
      %v291 = vadd.f32 %v254, %v269
      %v292 = vadd.f32 %v255, %v269
      %v293 = vadd.f32 %v256, %v269
      %v294 = vadd.f32 %v257, %v269
      %v295 = vadd.f32 %v258, %v269
      %v296 = vadd.f32 %v259, %v269
      %v297 = vadd.f32 %v260, %v269
      %v298 = vadd.f32 %v261, %v269
      %v299 = vadd.f32 %v262, %v269
      %v300 = vadd.f32 %v263, %v269
      %v301 = vadd.f32 %v264, %v269
      %v302 = vld [vmem:[%s188] sm:$0xff]
      %v303 = vld [vmem:[%s188 + $0x8] sm:$0xff]
      %v304 = vld [vmem:[%s188 + $0x10] sm:$0xff]
      %v305 = vld [vmem:[%s188 + $0x18] sm:$0xff]
      %v306 = vld [vmem:[%s188 + $0x20] sm:$0xff]
      %v307 = vld [vmem:[%s188 + $0x28] sm:$0xff]
      %v308 = vld [vmem:[%s188 + $0x30] sm:$0xff]
      %v309 = vld [vmem:[%s188 + $0x38] sm:$0xff]
      %v310 = vld [vmem:[%s188 + $0x40] sm:$0xff]
      %v311 = vld [vmem:[%s188 + $0x48] sm:$0xff]
      %v312 = vld [vmem:[%s188 + $0x50] sm:$0xff]
      %v313 = vld [vmem:[%s188 + $0x58] sm:$0xff]
      %v314 = vld [vmem:[%s188 + $0x60] sm:$0xff]
      %v315 = vld [vmem:[%s188 + $0x68] sm:$0xff]
      %v316 = vld [vmem:[%s188 + $0x70] sm:$0xff]
      %v317 = vld [vmem:[%s188 + $0x78] sm:$0xff]
      %v318 = vld [vmem:[%s188 + $0x80] sm:$0xff]
      %v319 = vld [vmem:[%s188 + $0x88] sm:$0xff]
      %v320 = vld [vmem:[%s188 + $0x90] sm:$0xff]
      %v321 = vld [vmem:[%s188 + $0x98] sm:$0xff]
      %v322 = vld [vmem:[%s188 + $0xa0] sm:$0xff]
      %v323 = vld [vmem:[%s188 + $0xa8] sm:$0xff]
      %v324 = vld [vmem:[%s188 + $0xb0] sm:$0xff]
      %v325 = vld [vmem:[%s188 + $0xb8] sm:$0xff]
      %v326 = vld [vmem:[%s188 + $0xc0] sm:$0xff]
      %v327 = vld [vmem:[%s188 + $0xc8] sm:$0xff]
      %v328 = vld [vmem:[%s188 + $0xd0] sm:$0xff]
      %v329 = vld [vmem:[%s188 + $0xd8] sm:$0xff]
      %v330 = vld [vmem:[%s188 + $0xe0] sm:$0xff]
      %v331 = vld [vmem:[%s188 + $0xe8] sm:$0xff]
      %v332 = vld [vmem:[%s188 + $0xf0] sm:$0xff]
      %v333 = vld [vmem:[%s188 + $0xf8] sm:$0xff]
      %v334 = vadd.f32 %v270, %v302
      %v335 = vadd.f32 %v271, %v303
      %v336 = vadd.f32 %v272, %v304
      %v337 = vadd.f32 %v273, %v305
      %v338 = vadd.f32 %v274, %v306
      %v339 = vadd.f32 %v275, %v307
      %v340 = vadd.f32 %v276, %v308
      %v341 = vadd.f32 %v277, %v309
      %v342 = vadd.f32 %v278, %v310
      %v343 = vadd.f32 %v279, %v311
      %v344 = vadd.f32 %v280, %v312
      %v345 = vadd.f32 %v281, %v313
      %v346 = vadd.f32 %v282, %v314
      %v347 = vadd.f32 %v283, %v315
      %v348 = vadd.f32 %v284, %v316
      %v349 = vadd.f32 %v285, %v317
      %v350 = vadd.f32 %v286, %v318
      %v351 = vadd.f32 %v287, %v319
      %v352 = vadd.f32 %v288, %v320
      %v353 = vadd.f32 %v289, %v321
      %v354 = vadd.f32 %v290, %v322
      %v355 = vadd.f32 %v291, %v323
      %v356 = vadd.f32 %v292, %v324
      %v357 = vadd.f32 %v293, %v325
      %v358 = vadd.f32 %v294, %v326
      %v359 = vadd.f32 %v295, %v327
      %v360 = vadd.f32 %v296, %v328
      %v361 = vadd.f32 %v297, %v329
      %v362 = vadd.f32 %v298, %v330
      %v363 = vadd.f32 %v299, %v331
      %v364 = vadd.f32 %v300, %v332
      %v365 = vadd.f32 %v301, %v333
      %v366 = vmax.f32 %v334, 0.0
      %v367 = vmax.f32 %v335, 0.0
      %v368 = vmax.f32 %v336, 0.0
      %v369 = vmax.f32 %v337, 0.0
      %v370 = vmax.f32 %v338, 0.0
      %v371 = vmax.f32 %v339, 0.0
      %v372 = vmax.f32 %v340, 0.0
      %v373 = vmax.f32 %v341, 0.0
      %v374 = vmax.f32 %v342, 0.0
      %v375 = vmax.f32 %v343, 0.0
      %v376 = vmax.f32 %v344, 0.0
      %v377 = vmax.f32 %v345, 0.0
      %v378 = vmax.f32 %v346, 0.0
      %v379 = vmax.f32 %v347, 0.0
      %v380 = vmax.f32 %v348, 0.0
      %v381 = vmax.f32 %v349, 0.0
      %v382 = vmax.f32 %v350, 0.0
      %v383 = vmax.f32 %v351, 0.0
      %v384 = vmax.f32 %v352, 0.0
      %v385 = vmax.f32 %v353, 0.0
      %v386 = vmax.f32 %v354, 0.0
      %v387 = vmax.f32 %v355, 0.0
      %v388 = vmax.f32 %v356, 0.0
      %v389 = vmax.f32 %v357, 0.0
      %v390 = vmax.f32 %v358, 0.0
      %v391 = vmax.f32 %v359, 0.0
      %v392 = vmax.f32 %v360, 0.0
      %v393 = vmax.f32 %v361, 0.0
      %v394 = vmax.f32 %v362, 0.0
      %v395 = vmax.f32 %v363, 0.0
      %v396 = vmax.f32 %v364, 0.0
      %v397 = vmax.f32 %v365, 0.0
      %398 = vst [vmem:[%s194] sm:$0xff] %v366
      %399 = vst [vmem:[%s194 + $0x8] sm:$0xff] %v367
      %400 = vst [vmem:[%s194 + $0x10] sm:$0xff] %v368
      %401 = vst [vmem:[%s194 + $0x18] sm:$0xff] %v369
      %402 = vst [vmem:[%s194 + $0x20] sm:$0xff] %v370
      %403 = vst [vmem:[%s194 + $0x28] sm:$0xff] %v371
      %404 = vst [vmem:[%s194 + $0x30] sm:$0xff] %v372
      %405 = vst [vmem:[%s194 + $0x38] sm:$0xff] %v373
      %406 = vst [vmem:[%s194 + $0x40] sm:$0xff] %v374
      %407 = vst [vmem:[%s194 + $0x48] sm:$0xff] %v375
      %408 = vst [vmem:[%s194 + $0x50] sm:$0xff] %v376
      %409 = vst [vmem:[%s194 + $0x58] sm:$0xff] %v377
      %410 = vst [vmem:[%s194 + $0x60] sm:$0xff] %v378
      %411 = vst [vmem:[%s194 + $0x68] sm:$0xff] %v379
      %412 = vst [vmem:[%s194 + $0x70] sm:$0xff] %v380
      %413 = vst [vmem:[%s194 + $0x78] sm:$0xff] %v381
      %414 = vst [vmem:[%s194 + $0x80] sm:$0xff] %v382
      %415 = vst [vmem:[%s194 + $0x88] sm:$0xff] %v383
      %416 = vst [vmem:[%s194 + $0x90] sm:$0xff] %v384
      %417 = vst [vmem:[%s194 + $0x98] sm:$0xff] %v385
      %418 = vst [vmem:[%s194 + $0xa0] sm:$0xff] %v386
      %419 = vst [vmem:[%s194 + $0xa8] sm:$0xff] %v387
      %420 = vst [vmem:[%s194 + $0xb0] sm:$0xff] %v388
      %421 = vst [vmem:[%s194 + $0xb8] sm:$0xff] %v389
      %422 = vst [vmem:[%s194 + $0xc0] sm:$0xff] %v390
      %423 = vst [vmem:[%s194 + $0xc8] sm:$0xff] %v391
      %424 = vst [vmem:[%s194 + $0xd0] sm:$0xff] %v392
      %425 = vst [vmem:[%s194 + $0xd8] sm:$0xff] %v393
      %426 = vst [vmem:[%s194 + $0xe0] sm:$0xff] %v394
      %427 = vst [vmem:[%s194 + $0xe8] sm:$0xff] %v395
      %428 = vst [vmem:[%s194 + $0xf0] sm:$0xff] %v396
      %429 = vst [vmem:[%s194 + $0xf8] sm:$0xff] %v397
      %s430 = smul.u32 32, %s14
      %p431 = scmp.lt.s32.totalorder %s430, 63
      %s432 = scalar_select %p431, %s430, 63
      %s433 = smul.addr %s432, 8
      %s434 = scalar_lea.vmem %s3, %s433
      // Predicated region
      $region33: #{bottleneck_forward.7} parent=31 // pred_check
        %p435 = pneg %p105
      $region34: #{bottleneck_forward.7} parent=31 // pred_check_branch
        %437 = sbr.rel (%p435) target = $region36
      $region35: #{bottleneck_forward.7} parent=31 // pred_region
        %s438 = smul.u32 32, %s14
      $region36: #{bottleneck_forward.7} parent=31 // pred_fallthru
        _
    $region32: #{bottleneck_forward.7} parent=5 // pred_fallthru
      _
    %p439 = scmp.le.s32.totalorder 2, %s9
    // Predicated region
    $region37: #{bottleneck_forward.7} parent=5 // pred_check
      %p440 = pneg %p439
    $region38: #{bottleneck_forward.7} parent=5 // pred_check_branch
      %442 = sbr.rel (%p440) target = $region40
    $region39: #{bottleneck_forward.7} parent=5 // pred_region
      %s443 = ssub.s32 %s9, 2
      // Predicated region
      $region41: #{bottleneck_forward.7} parent=39 // pred_check
        %p444 = pneg %p111
      $region42: #{bottleneck_forward.7} parent=39 // pred_check_branch
        %446 = sbr.rel (%p444) target = $region44
      $region43: #{bottleneck_forward.7} parent=39 // pred_region
        %s447 = smul.u32 32, %s15
        %p448 = scmp.lt.s32.totalorder %s447, 63
        %s449 = scalar_select %p448, %s447, 63
        %s450 = smul.addr %s449, 8
        %s451 = scalar_lea.vmem %s3, %s450
      $region44: #{bottleneck_forward.7} parent=39 // pred_fallthru
        _
    $region40: #{bottleneck_forward.7} parent=5 // pred_fallthru
      _
  $region6: #{bottleneck_forward.7} parent=0 // loop_footer
    %s13 = sadd.s32 1, %s9
  $region7: #{bottleneck_forward.7} parent=0 // loop_footer_branch
    %8 = sbr.rel target = $region3
  $region8: #{bottleneck_forward.7} parent=0 // loop_exit
    _

// kernel: bottleneck_forward.6
$region0: #{bottleneck_forward.6}
  #allocation0 [shape = 'u32[]', space=smem, size = 0x4, offset = 0x4, fixed_abs, tag = 'smem constant byte address 0x4 - core index']
  #allocation1 [shape = 'u32[144,128]{1,0:T(1,128)}', space=vmem, size = 0x12000, scoped, tag = 'internal scratch']
  %s0 = inlined_call_operand.vmem [shape: f32[512,32], index: 0, kind: input, shape index: {}]
  %s1 = inlined_call_operand.vmem [shape: f32[2,32], index: 1, kind: input, shape index: {}]
  %s2 = inlined_call_operand.vmem [shape: bf16[32,128], index: 2, kind: input, shape index: {}]
  %s3 = inlined_call_operand.vmem [shape: f32[512,128], index: 3, kind: output, shape index: {0}]
  %s4 = inlined_call_operand.vmem [shape: f32[2,2,128], index: 4, kind: output, shape index: {1}]
  %5 = xla_tuple %s3, %s4
  %s6 = sld [smem:[#allocation0]]
  $region53: #{bottleneck_forward.6} parent=0
    _
  %s8 = ssub.s32 1, %s6
  %s9 = scalar_select 0, %s8, %s6
  loop: start=0, step=1, limit=4
  $region2: #{bottleneck_forward.6} parent=0 // loop_pre_header
    _
  $region3: #{bottleneck_forward.6} parent=0 // loop_header
    %s11 = sphi 0, %s15
    %p12 = scmp.ge.s32.totalorder %s11, 4
    %s21 = sphi 0, %s23
    %s24 = sphi 0, %s21
    %s25 = sphi 0, %s24
    %s41 = sphi 0, %s25
    %s45 = sphi 0, %s45
    %s47 = sphi 0, %s45
    %s48 = sphi 0, %s47
    %s62 = sphi 0, %s48
    %s66 = sphi 0, %s66
    %s68 = sphi 0, %s66
    %s69 = sphi 0, %s68
    %s83 = sphi 0, %s69
    %s89 = sphi 0, %s91
    %s92 = sphi 0, %s89
    %s93 = sphi 0, %s92
    %s109 = sphi 0, %s93
    %s115 = sphi 0, %s117
    %s118 = sphi 0, %s115
    %s119 = sphi 0, %s118
    %s135 = sphi 0, %s119
  $region4: #{bottleneck_forward.6} parent=0 // loop_header_branch
    %14 = sbr.rel (%p12) target = $region8
  $region5: #{bottleneck_forward.6} parent=0 // loop_body
    %s16 = ssub.s32 %s11, 1
    %s17 = ssub.s32 %s11, 2
    %s18 = sadd.s32 %s11, 1
    %s19 = ssub.s32 %s11, %s18
    %p20 = scmp.eq.s32.totalorder %s19, 0
    %s22 = sadd.s32 %s21, 1
    %s23 = scalar_select %p20, %s21, %s22
    %p26 = pneg %p20
    %p27 = scmp.eq.s32.totalorder %s11, 1
    %p28 = por %p26, %p27
    %p29 = scmp.ne.s32.totalorder %s21, %s24
    %p30 = scmp.eq.s32.totalorder %s11, 0
    %p31 = por %p29, %p30
    %p32 = scmp.ne.s32.totalorder %s21, %s24
    %p33 = scmp.eq.s32.totalorder %s16, 1
    %p34 = por %p32, %p33
    %p35 = scmp.ne.s32.totalorder %s24, %s25
    %p36 = scmp.eq.s32.totalorder %s16, 0
    %p37 = por %p35, %p36
    %p38 = scmp.ne.s32.totalorder %s24, %s25
    %p39 = scmp.eq.s32.totalorder %s17, 1
    %p40 = por %p38, %p39
    %p42 = scmp.ne.s32.totalorder %s25, %s41
    %p43 = scmp.eq.s32.totalorder %s17, 0
    %p44 = por %p42, %p43
    %s46 = sadd.s32 %s45, 1
    %p49 = scmp.eq.s32.totalorder %s11, 1
    %p50 = scmp.ne.s32.totalorder %s45, %s47
    %p51 = scmp.eq.s32.totalorder %s11, 0
    %p52 = por %p50, %p51
    %p53 = scmp.ne.s32.totalorder %s45, %s47
    %p54 = scmp.eq.s32.totalorder %s16, 1
    %p55 = por %p53, %p54
    %p56 = scmp.ne.s32.totalorder %s47, %s48
    %p57 = scmp.eq.s32.totalorder %s16, 0
    %p58 = por %p56, %p57
    %p59 = scmp.ne.s32.totalorder %s47, %s48
    %p60 = scmp.eq.s32.totalorder %s17, 1
    %p61 = por %p59, %p60
    %p63 = scmp.ne.s32.totalorder %s48, %s62
    %p64 = scmp.eq.s32.totalorder %s17, 0
    %p65 = por %p63, %p64
    %s67 = sadd.s32 %s66, 1
    %p70 = scmp.eq.s32.totalorder %s11, 1
    %p71 = scmp.ne.s32.totalorder %s66, %s68
    %p72 = scmp.eq.s32.totalorder %s11, 0
    %p73 = por %p71, %p72
    %p74 = scmp.ne.s32.totalorder %s66, %s68
    %p75 = scmp.eq.s32.totalorder %s16, 1
    %p76 = por %p74, %p75
    %p77 = scmp.ne.s32.totalorder %s68, %s69
    %p78 = scmp.eq.s32.totalorder %s16, 0
    %p79 = por %p77, %p78
    %p80 = scmp.ne.s32.totalorder %s68, %s69
    %p81 = scmp.eq.s32.totalorder %s17, 1
    %p82 = por %p80, %p81
    %p84 = scmp.ne.s32.totalorder %s69, %s83
    %p85 = scmp.eq.s32.totalorder %s17, 0
    %p86 = por %p84, %p85
    %s87 = ssub.s32 %s11, %s18
    %p88 = scmp.eq.s32.totalorder %s87, 0
    %s90 = sadd.s32 %s89, 1
    %s91 = scalar_select %p88, %s89, %s90
    %p94 = pneg %p88
    %p95 = scmp.eq.s32.totalorder %s11, 1
    %p96 = por %p94, %p95
    %p97 = scmp.ne.s32.totalorder %s89, %s92
    %p98 = scmp.eq.s32.totalorder %s11, 0
    %p99 = por %p97, %p98
    %p100 = scmp.ne.s32.totalorder %s89, %s92
    %p101 = scmp.eq.s32.totalorder %s16, 1
    %p102 = por %p100, %p101
    %p103 = scmp.ne.s32.totalorder %s92, %s93
    %p104 = scmp.eq.s32.totalorder %s16, 0
    %p105 = por %p103, %p104
    %p106 = scmp.ne.s32.totalorder %s92, %s93
    %p107 = scmp.eq.s32.totalorder %s17, 1
    %p108 = por %p106, %p107
    %p110 = scmp.ne.s32.totalorder %s93, %s109
    %p111 = scmp.eq.s32.totalorder %s17, 0
    %p112 = por %p110, %p111
    %s113 = ssub.s32 %s11, %s18
    %p114 = scmp.eq.s32.totalorder %s113, 0
    %s116 = sadd.s32 %s115, 1
    %s117 = scalar_select %p114, %s115, %s116
    %p120 = pneg %p114
    %p121 = scmp.eq.s32.totalorder %s11, 1
    %p122 = por %p120, %p121
    %p123 = scmp.ne.s32.totalorder %s115, %s118
    %p124 = scmp.eq.s32.totalorder %s11, 0
    %p125 = por %p123, %p124
    %p126 = scmp.ne.s32.totalorder %s115, %s118
    %p127 = scmp.eq.s32.totalorder %s16, 1
    %p128 = por %p126, %p127
    %p129 = scmp.ne.s32.totalorder %s118, %s119
    %p130 = scmp.eq.s32.totalorder %s16, 0
    %p131 = por %p129, %p130
    %p132 = scmp.ne.s32.totalorder %s118, %s119
    %p133 = scmp.eq.s32.totalorder %s17, 1
    %p134 = por %p132, %p133
    %p136 = scmp.ne.s32.totalorder %s119, %s135
    %p137 = scmp.eq.s32.totalorder %s17, 0
    %p138 = por %p136, %p137
    %p139 = scmp.le.s32.totalorder 1, %s11
    %p140 = scmp.lt.s32.totalorder %s11, 3
    %p141 = pnand %p139, %p140
    %p142 = pneg %p141
    // Predicated region
    $region9: #{bottleneck_forward.6} parent=5 // pred_check
      _
    $region10: #{bottleneck_forward.6} parent=5 // pred_check_branch
      %144 = sbr.rel (%p141) target = $region12
    $region11: #{bottleneck_forward.6} parent=5 // pred_region
      %s145 = ssub.s32 %s11, 1
      // Predicated region
      $region13: #{bottleneck_forward.6} parent=11 // pred_check
        %p146 = pneg %p58
      $region14: #{bottleneck_forward.6} parent=11 // pred_check_branch
        %148 = sbr.rel (%p146) target = $region16
      $region15: #{bottleneck_forward.6} parent=11 // pred_region
        _
      $region16: #{bottleneck_forward.6} parent=11 // pred_fallthru
        _
      // Predicated region
      $region17: #{bottleneck_forward.6} parent=11 // pred_check
        %p149 = pneg %p79
      $region18: #{bottleneck_forward.6} parent=11 // pred_check_branch
        %151 = sbr.rel (%p149) target = $region20
      $region19: #{bottleneck_forward.6} parent=11 // pred_region
        _
      $region20: #{bottleneck_forward.6} parent=11 // pred_fallthru
        _
    $region12: #{bottleneck_forward.6} parent=5 // pred_fallthru
      _
    %p152 = scmp.lt.s32.totalorder %s11, 2
    // Predicated region
    $region21: #{bottleneck_forward.6} parent=5 // pred_check
      %p153 = pneg %p152
    $region22: #{bottleneck_forward.6} parent=5 // pred_check_branch
      %155 = sbr.rel (%p153) target = $region24
    $region23: #{bottleneck_forward.6} parent=5 // pred_region
      // Predicated region
      $region25: #{bottleneck_forward.6} parent=23 // pred_check
        %p156 = pneg %p31
      $region26: #{bottleneck_forward.6} parent=23 // pred_check_branch
        %158 = sbr.rel (%p156) target = $region28
      $region27: #{bottleneck_forward.6} parent=23 // pred_region
        %s159 = smul.u32 32, %s11
        %p160 = scmp.lt.s32.totalorder %s159, 63
        %s161 = scalar_select %p160, %s159, 63
        %s162 = smul.addr %s161, 8
        %s163 = scalar_lea.vmem %s0, %s162
        %s164 = smul.u32 32, %s11
      $region28: #{bottleneck_forward.6} parent=23 // pred_fallthru
        _
    $region24: #{bottleneck_forward.6} parent=5 // pred_fallthru
      _
    %p165 = scmp.le.s32.totalorder 1, %s11
    %p166 = scmp.lt.s32.totalorder %s11, 3
    %p167 = pnand %p165, %p166
    %p168 = pneg %p167
    // Predicated region
    $region29: #{bottleneck_forward.6} parent=5 // pred_check
      _
    $region30: #{bottleneck_forward.6} parent=5 // pred_check_branch
      %170 = sbr.rel (%p167) target = $region32
    $region31: #{bottleneck_forward.6} parent=5 // pred_region
      %s171 = ssub.s32 %s11, 1
      %s172 = smul.u32 32, %s16
      %p173 = scmp.lt.s32.totalorder %s172, 63
      %s174 = scalar_select %p173, %s172, 63
      %s175 = smul.addr %s174, 8
      %s176 = scalar_lea.vmem %s0, %s175
      %p177 = pneg %p37
      %p178 = pneg %p34
      %p179 = pneg %p58
      %p180 = pneg %p55
      %p181 = pneg %p79
      %p182 = pneg %p76
      %p183 = pneg %p105
      %p184 = pneg %p102
      %s185 = smul.u32 32, %s16
      %p186 = scmp.lt.s32.totalorder %s185, 63
      %s187 = scalar_select %p186, %s185, 63
      %s188 = smul.addr %s187, 8
      %s189 = scalar_lea.vmem %s3, %s188
      %p190 = pneg %p131
      %p191 = pneg %p128
      %p192 = scmp.lt.s32.totalorder %s16, 1
      %s193 = scalar_select %p192, %s16, 1
      %s194 = smul.addr %s193, 2
      %s195 = scalar_lea.vmem %s4, %s194
      %s196 = smul.u32 32, %s16
      %p197 = scmp.lt.s32.totalorder %s196, 63
      %s198 = scalar_select %p197, %s196, 63
      %s199 = smul.addr %s198, 8
      %s200 = scalar_lea.vmem %s0, %s199
      %s201 = smul.u32 32, %s16
      %s202 = smul.u32 32, %s16
      %p203 = scmp.lt.s32.totalorder %s202, 63
      %s204 = scalar_select %p203, %s202, 63
      %s205 = smul.addr %s204, 8
      %s206 = scalar_lea.vmem %s3, %s205
      %s207 = smul.u32 32, %s16
      %p208 = scmp.lt.s32.totalorder %s16, 1
      %s209 = scalar_select %p208, %s16, 1
      %s210 = smul.addr %s209, 2
      %s211 = scalar_lea.vmem %s4, %s210
      %v213 = vld [vmem:[%s200] sm:$0xff]
      %v214 = vld [vmem:[%s200 + $0x8] sm:$0xff]
      %v215 = vld [vmem:[%s200 + $0x10] sm:$0xff]
      %v216 = vld [vmem:[%s200 + $0x18] sm:$0xff]
      %v217 = vld [vmem:[%s200 + $0x20] sm:$0xff]
      %v218 = vld [vmem:[%s200 + $0x28] sm:$0xff]
      %v219 = vld [vmem:[%s200 + $0x30] sm:$0xff]
      %v220 = vld [vmem:[%s200 + $0x38] sm:$0xff]
      %v221 = vld [vmem:[%s200 + $0x40] sm:$0xff]
      %v222 = vld [vmem:[%s200 + $0x48] sm:$0xff]
      %v223 = vld [vmem:[%s200 + $0x50] sm:$0xff]
      %v224 = vld [vmem:[%s200 + $0x58] sm:$0xff]
      %v225 = vld [vmem:[%s200 + $0x60] sm:$0xff]
      %v226 = vld [vmem:[%s200 + $0x68] sm:$0xff]
      %v227 = vld [vmem:[%s200 + $0x70] sm:$0xff]
      %v228 = vld [vmem:[%s200 + $0x78] sm:$0xff]
      %v229 = vld [vmem:[%s200 + $0x80] sm:$0xff]
      %v230 = vld [vmem:[%s200 + $0x88] sm:$0xff]
      %v231 = vld [vmem:[%s200 + $0x90] sm:$0xff]
      %v232 = vld [vmem:[%s200 + $0x98] sm:$0xff]
      %v233 = vld [vmem:[%s200 + $0xa0] sm:$0xff]
      %v234 = vld [vmem:[%s200 + $0xa8] sm:$0xff]
      %v235 = vld [vmem:[%s200 + $0xb0] sm:$0xff]
      %v236 = vld [vmem:[%s200 + $0xb8] sm:$0xff]
      %v237 = vld [vmem:[%s200 + $0xc0] sm:$0xff]
      %v238 = vld [vmem:[%s200 + $0xc8] sm:$0xff]
      %v239 = vld [vmem:[%s200 + $0xd0] sm:$0xff]
      %v240 = vld [vmem:[%s200 + $0xd8] sm:$0xff]
      %v241 = vld [vmem:[%s200 + $0xe0] sm:$0xff]
      %v242 = vld [vmem:[%s200 + $0xe8] sm:$0xff]
      %v243 = vld [vmem:[%s200 + $0xf0] sm:$0xff]
      %v244 = vld [vmem:[%s200 + $0xf8] sm:$0xff]
      %v245 = vld [vmem:[%s1] sm:$0x1]
      %v246 = vlaneseq
      %v247 = vshrl.u32 %v246, 7
      %v248 = vsub.s32 0, %v247
      %v249 = vrot.slane %v245, %v248
      %v250 = vmul.f32 %v213, %v249
      %v251 = vmul.f32 %v214, %v249
      %v252 = vmul.f32 %v215, %v249
      %v253 = vmul.f32 %v216, %v249
      %v254 = vmul.f32 %v217, %v249
      %v255 = vmul.f32 %v218, %v249
      %v256 = vmul.f32 %v219, %v249
      %v257 = vmul.f32 %v220, %v249
      %v258 = vmul.f32 %v221, %v249
      %v259 = vmul.f32 %v222, %v249
      %v260 = vmul.f32 %v223, %v249
      %v261 = vmul.f32 %v224, %v249
      %v262 = vmul.f32 %v225, %v249
      %v263 = vmul.f32 %v226, %v249
      %v264 = vmul.f32 %v227, %v249
      %v265 = vmul.f32 %v228, %v249
      %v266 = vmul.f32 %v229, %v249
      %v267 = vmul.f32 %v230, %v249
      %v268 = vmul.f32 %v231, %v249
      %v269 = vmul.f32 %v232, %v249
      %v270 = vmul.f32 %v233, %v249
      %v271 = vmul.f32 %v234, %v249
      %v272 = vmul.f32 %v235, %v249
      %v273 = vmul.f32 %v236, %v249
      %v274 = vmul.f32 %v237, %v249
      %v275 = vmul.f32 %v238, %v249
      %v276 = vmul.f32 %v239, %v249
      %v277 = vmul.f32 %v240, %v249
      %v278 = vmul.f32 %v241, %v249
      %v279 = vmul.f32 %v242, %v249
      %v280 = vmul.f32 %v243, %v249
      %v281 = vmul.f32 %v244, %v249
      %v282 = vld [vmem:[%s1 + $0x1] sm:$0x1]
      %v283 = vlaneseq
      %v284 = vshrl.u32 %v283, 7
      %v285 = vsub.s32 0, %v284
      %v286 = vrot.slane %v282, %v285
      %v287 = vadd.f32 %v250, %v286
      %v288 = vadd.f32 %v251, %v286
      %v289 = vadd.f32 %v252, %v286
      %v290 = vadd.f32 %v253, %v286
      %v291 = vadd.f32 %v254, %v286
      %v292 = vadd.f32 %v255, %v286
      %v293 = vadd.f32 %v256, %v286
      %v294 = vadd.f32 %v257, %v286
      %v295 = vadd.f32 %v258, %v286
      %v296 = vadd.f32 %v259, %v286
      %v297 = vadd.f32 %v260, %v286
      %v298 = vadd.f32 %v261, %v286
      %v299 = vadd.f32 %v262, %v286
      %v300 = vadd.f32 %v263, %v286
      %v301 = vadd.f32 %v264, %v286
      %v302 = vadd.f32 %v265, %v286
      %v303 = vadd.f32 %v266, %v286
      %v304 = vadd.f32 %v267, %v286
      %v305 = vadd.f32 %v268, %v286
      %v306 = vadd.f32 %v269, %v286
      %v307 = vadd.f32 %v270, %v286
      %v308 = vadd.f32 %v271, %v286
      %v309 = vadd.f32 %v272, %v286
      %v310 = vadd.f32 %v273, %v286
      %v311 = vadd.f32 %v274, %v286
      %v312 = vadd.f32 %v275, %v286
      %v313 = vadd.f32 %v276, %v286
      %v314 = vadd.f32 %v277, %v286
      %v315 = vadd.f32 %v278, %v286
      %v316 = vadd.f32 %v279, %v286
      %v317 = vadd.f32 %v280, %v286
      %v318 = vadd.f32 %v281, %v286
      %v319 = vmax.f32 %v287, 0.0
      %v320 = vmax.f32 %v288, 0.0
      %v321 = vmax.f32 %v289, 0.0
      %v322 = vmax.f32 %v290, 0.0
      %v323 = vmax.f32 %v291, 0.0
      %v324 = vmax.f32 %v292, 0.0
      %v325 = vmax.f32 %v293, 0.0
      %v326 = vmax.f32 %v294, 0.0
      %v327 = vmax.f32 %v295, 0.0
      %v328 = vmax.f32 %v296, 0.0
      %v329 = vmax.f32 %v297, 0.0
      %v330 = vmax.f32 %v298, 0.0
      %v331 = vmax.f32 %v299, 0.0
      %v332 = vmax.f32 %v300, 0.0
      %v333 = vmax.f32 %v301, 0.0
      %v334 = vmax.f32 %v302, 0.0
      %v335 = vmax.f32 %v303, 0.0
      %v336 = vmax.f32 %v304, 0.0
      %v337 = vmax.f32 %v305, 0.0
      %v338 = vmax.f32 %v306, 0.0
      %v339 = vmax.f32 %v307, 0.0
      %v340 = vmax.f32 %v308, 0.0
      %v341 = vmax.f32 %v309, 0.0
      %v342 = vmax.f32 %v310, 0.0
      %v343 = vmax.f32 %v311, 0.0
      %v344 = vmax.f32 %v312, 0.0
      %v345 = vmax.f32 %v313, 0.0
      %v346 = vmax.f32 %v314, 0.0
      %v347 = vmax.f32 %v315, 0.0
      %v348 = vmax.f32 %v316, 0.0
      %v349 = vmax.f32 %v317, 0.0
      %v350 = vmax.f32 %v318, 0.0
      %v351 = vpack.c.bf16 %v320, %v319
      %v352 = vpack.c.bf16 %v322, %v321
      %v353 = vpack.c.bf16 %v324, %v323
      %v354 = vpack.c.bf16 %v326, %v325
      %v355 = vpack.c.bf16 %v328, %v327
      %v356 = vpack.c.bf16 %v330, %v329
      %v357 = vpack.c.bf16 %v332, %v331
      %v358 = vpack.c.bf16 %v334, %v333
      %v359 = vpack.c.bf16 %v336, %v335
      %v360 = vpack.c.bf16 %v338, %v337
      %v361 = vpack.c.bf16 %v340, %v339
      %v362 = vpack.c.bf16 %v342, %v341
      %v363 = vpack.c.bf16 %v344, %v343
      %v364 = vpack.c.bf16 %v346, %v345
      %v365 = vpack.c.bf16 %v348, %v347
      %v366 = vpack.c.bf16 %v350, %v349
      %v367 = vld [vmem:[%s2] sm:$0xf]
      %v368 = vld [vmem:[%s2 + $0x4] sm:$0xf]
      %v369 = vld [vmem:[%s2 + $0x8] sm:$0xf]
      %v370 = vld [vmem:[%s2 + $0xc] sm:$0xf]
      %v375 = vunpack.c.l.b16 %v367
      %v376 = vunpack.c.l.b16 %v368
      %v377 = vunpack.c.l.b16 %v369
      %v378 = vunpack.c.l.b16 %v370
      %v379 = vpack.c.b16 %v376, %v375
      %v380 = vpack.c.b16 %v378, %v377
      %vm383 = vcmask 261120
      %v385 = vsel %vm383, %v351, 0
      %v388 = vsel %vm383, %v352, 0
      %v391 = vsel %vm383, %v353, 0
      %v394 = vsel %vm383, %v354, 0
      %v397 = vsel %vm383, %v355, 0
      %v400 = vsel %vm383, %v356, 0
      %v403 = vsel %vm383, %v357, 0
      %v406 = vsel %vm383, %v358, 0
      %v409 = vsel %vm383, %v359, 0
      %v412 = vsel %vm383, %v360, 0
      %v415 = vsel %vm383, %v361, 0
      %v418 = vsel %vm383, %v362, 0
      %v421 = vsel %vm383, %v363, 0
      %v424 = vsel %vm383, %v364, 0
      %v427 = vsel %vm383, %v365, 0
      %v430 = vsel %vm383, %v366, 0
      %432 = vmatprep.subr.bf16.mxu0 0
      %433 = vmatpush1.bf16.msra.mxu0 %v379
      %434 = vmatprep.subr.bf16.mxu0 0
      %435 = vmatpush1.bf16.msra.mxu0 %v380
      %436 = vmatprep.subr.bf16.mxu0 0
      %437 = vmatpush1.bf16.msra.mxu0 0
      %438 = vmatprep.subr.bf16.mxu0 0
      %439 = vmatpush1.bf16.msra.mxu0 0
      %440 = vmatprep.subr.bf16.mxu0 0
      %441 = vmatpush1.bf16.msra.mxu0 0
      %442 = vmatprep.subr.bf16.mxu0 0
      %443 = vmatpush1.bf16.msra.mxu0 0
      %444 = vmatprep.subr.bf16.mxu0 0
      %445 = vmatpush1.bf16.msra.mxu0 0
      %446 = vmatprep.subr.bf16.mxu0 0
      %447 = vmatpush1.bf16.msra.mxu0 0
      %448 = vmatprep.subr.bf16.mxu0 0
      %449 = vmatpush1.bf16.msra.mxu0 0
      %450 = vmatprep.subr.bf16.mxu0 0
      %451 = vmatpush1.bf16.msra.mxu0 0
      %452 = vmatprep.subr.bf16.mxu0 0
      %453 = vmatpush1.bf16.msra.mxu0 0
      %454 = vmatprep.subr.bf16.mxu0 0
      %455 = vmatpush1.bf16.msra.mxu0 0
      %456 = vmatprep.subr.bf16.mxu0 0
      %457 = vmatpush1.bf16.msra.mxu0 0
      %458 = vmatprep.subr.bf16.mxu0 0
      %459 = vmatpush1.bf16.msra.mxu0 0
      %460 = vmatprep.subr.bf16.mxu0 0
      %461 = vmatpush1.bf16.msra.mxu0 0
      %462 = vmatprep.subr.bf16.mxu0 0
      %463 = vmatpush1.bf16.msra.mxu0 0
      %464 = vmatprep.mubr.bf16.mxu0 0
      %465 = vmatmul.mubr.bf16.gmra.mrb[0].mxu0 %v385
      %v466 = vpop.f32.mrb[0].mxu0
      %v467 = vadd.f32 0.0, %v466
      %v468 = vpop.f32.mrb[0].mxu0
      %v469 = vpop.f32.mrb[0].mxu0
      %v470 = vadd.f32 0.0, %v469
      %v471 = vpop.f32.mrb[0].mxu0
      %472 = vmatprep.mubr.bf16.mxu0 0
      %473 = vmatmul.mubr.bf16.gmra.mrb[0].mxu0 %v388
      %v474 = vpop.f32.mrb[0].mxu0
      %v475 = vadd.f32 0.0, %v474
      %v476 = vpop.f32.mrb[0].mxu0
      %v477 = vpop.f32.mrb[0].mxu0
      %v478 = vadd.f32 0.0, %v477
      %v479 = vpop.f32.mrb[0].mxu0
      %480 = vmatprep.mubr.bf16.mxu0 0
      %481 = vmatmul.mubr.bf16.gmra.mrb[0].mxu0 %v391
      %v482 = vpop.f32.mrb[0].mxu0
      %v483 = vadd.f32 0.0, %v482
      %v484 = vpop.f32.mrb[0].mxu0
      %v485 = vpop.f32.mrb[0].mxu0
      %v486 = vadd.f32 0.0, %v485
      %v487 = vpop.f32.mrb[0].mxu0
      %488 = vmatprep.mubr.bf16.mxu0 0
      %489 = vmatmul.mubr.bf16.gmra.mrb[0].mxu0 %v394
      %v490 = vpop.f32.mrb[0].mxu0
      %v491 = vadd.f32 0.0, %v490
      %v492 = vpop.f32.mrb[0].mxu0
      %v493 = vpop.f32.mrb[0].mxu0
      %v494 = vadd.f32 0.0, %v493
      %v495 = vpop.f32.mrb[0].mxu0
      %496 = vmatprep.mubr.bf16.mxu0 0
      %497 = vmatmul.mubr.bf16.gmra.mrb[0].mxu0 %v397
      %v498 = vpop.f32.mrb[0].mxu0
      %v499 = vadd.f32 0.0, %v498
      %v500 = vpop.f32.mrb[0].mxu0
      %v501 = vpop.f32.mrb[0].mxu0
      %v502 = vadd.f32 0.0, %v501
      %v503 = vpop.f32.mrb[0].mxu0
      %504 = vmatprep.mubr.bf16.mxu0 0
      %505 = vmatmul.mubr.bf16.gmra.mrb[0].mxu0 %v400
      %v506 = vpop.f32.mrb[0].mxu0
      %v507 = vadd.f32 0.0, %v506
      %v508 = vpop.f32.mrb[0].mxu0
      %v509 = vpop.f32.mrb[0].mxu0
      %v510 = vadd.f32 0.0, %v509
      %v511 = vpop.f32.mrb[0].mxu0
      %512 = vmatprep.mubr.bf16.mxu0 0
      %513 = vmatmul.mubr.bf16.gmra.mrb[0].mxu0 %v403
      %v514 = vpop.f32.mrb[0].mxu0
      %v515 = vadd.f32 0.0, %v514
      %v516 = vpop.f32.mrb[0].mxu0
      %v517 = vpop.f32.mrb[0].mxu0
      %v518 = vadd.f32 0.0, %v517
      %v519 = vpop.f32.mrb[0].mxu0
      %520 = vmatprep.mubr.bf16.mxu0 0
      %521 = vmatmul.mubr.bf16.gmra.mrb[0].mxu0 %v406
      %v522 = vpop.f32.mrb[0].mxu0
      %v523 = vadd.f32 0.0, %v522
      %v524 = vpop.f32.mrb[0].mxu0
      %v525 = vpop.f32.mrb[0].mxu0
      %v526 = vadd.f32 0.0, %v525
      %v527 = vpop.f32.mrb[0].mxu0
      %528 = vmatprep.mubr.bf16.mxu0 0
      %529 = vmatmul.mubr.bf16.gmra.mrb[0].mxu0 %v409
      %v530 = vpop.f32.mrb[0].mxu0
      %v531 = vadd.f32 0.0, %v530
      %v532 = vpop.f32.mrb[0].mxu0
      %v533 = vpop.f32.mrb[0].mxu0
      %v534 = vadd.f32 0.0, %v533
      %v535 = vpop.f32.mrb[0].mxu0
      %536 = vmatprep.mubr.bf16.mxu0 0
      %537 = vmatmul.mubr.bf16.gmra.mrb[0].mxu0 %v412
      %v538 = vpop.f32.mrb[0].mxu0
      %v539 = vadd.f32 0.0, %v538
      %v540 = vpop.f32.mrb[0].mxu0
      %v541 = vpop.f32.mrb[0].mxu0
      %v542 = vadd.f32 0.0, %v541
      %v543 = vpop.f32.mrb[0].mxu0
      %544 = vmatprep.mubr.bf16.mxu0 0
      %545 = vmatmul.mubr.bf16.gmra.mrb[0].mxu0 %v415
      %v546 = vpop.f32.mrb[0].mxu0
      %v547 = vadd.f32 0.0, %v546
      %v548 = vpop.f32.mrb[0].mxu0
      %v549 = vpop.f32.mrb[0].mxu0
      %v550 = vadd.f32 0.0, %v549
      %v551 = vpop.f32.mrb[0].mxu0
      %552 = vmatprep.mubr.bf16.mxu0 0
      %553 = vmatmul.mubr.bf16.gmra.mrb[0].mxu0 %v418
      %v554 = vpop.f32.mrb[0].mxu0
      %v555 = vadd.f32 0.0, %v554
      %v556 = vpop.f32.mrb[0].mxu0
      %v557 = vpop.f32.mrb[0].mxu0
      %v558 = vadd.f32 0.0, %v557
      %v559 = vpop.f32.mrb[0].mxu0
      %560 = vmatprep.mubr.bf16.mxu0 0
      %561 = vmatmul.mubr.bf16.gmra.mrb[0].mxu0 %v421
      %v562 = vpop.f32.mrb[0].mxu0
      %v563 = vadd.f32 0.0, %v562
      %v564 = vpop.f32.mrb[0].mxu0
      %v565 = vpop.f32.mrb[0].mxu0
      %v566 = vadd.f32 0.0, %v565
      %v567 = vpop.f32.mrb[0].mxu0
      %568 = vmatprep.mubr.bf16.mxu0 0
      %569 = vmatmul.mubr.bf16.gmra.mrb[0].mxu0 %v424
      %v570 = vpop.f32.mrb[0].mxu0
      %v571 = vadd.f32 0.0, %v570
      %v572 = vpop.f32.mrb[0].mxu0
      %v573 = vpop.f32.mrb[0].mxu0
      %v574 = vadd.f32 0.0, %v573
      %v575 = vpop.f32.mrb[0].mxu0
      %576 = vmatprep.mubr.bf16.mxu0 0
      %577 = vmatmul.mubr.bf16.gmra.mrb[0].mxu0 %v427
      %v578 = vpop.f32.mrb[0].mxu0
      %v579 = vadd.f32 0.0, %v578
      %v580 = vpop.f32.mrb[0].mxu0
      %v581 = vpop.f32.mrb[0].mxu0
      %v582 = vadd.f32 0.0, %v581
      %v583 = vpop.f32.mrb[0].mxu0
      %584 = vmatprep.mubr.bf16.mxu0 0
      %585 = vmatmul.mubr.bf16.gmra.mrb[0].mxu0 %v430
      %v586 = vpop.f32.mrb[0].mxu0
      %v587 = vadd.f32 0.0, %v586
      %v588 = vpop.f32.mrb[0].mxu0
      %v589 = vpop.f32.mrb[0].mxu0
      %v590 = vadd.f32 0.0, %v589
      %v591 = vpop.f32.mrb[0].mxu0
      %592 = vdwg.mxu0
      %593 = vst [vmem:[%s206] sm:$0xff] %v467
      %594 = vst [vmem:[%s206 + $0x8] sm:$0xff] %v470
      %595 = vst [vmem:[%s206 + $0x10] sm:$0xff] %v475
      %596 = vst [vmem:[%s206 + $0x18] sm:$0xff] %v478
      %597 = vst [vmem:[%s206 + $0x20] sm:$0xff] %v483
      %598 = vst [vmem:[%s206 + $0x28] sm:$0xff] %v486
      %599 = vst [vmem:[%s206 + $0x30] sm:$0xff] %v491
      %600 = vst [vmem:[%s206 + $0x38] sm:$0xff] %v494
      %601 = vst [vmem:[%s206 + $0x40] sm:$0xff] %v499
      %602 = vst [vmem:[%s206 + $0x48] sm:$0xff] %v502
      %603 = vst [vmem:[%s206 + $0x50] sm:$0xff] %v507
      %604 = vst [vmem:[%s206 + $0x58] sm:$0xff] %v510
      %605 = vst [vmem:[%s206 + $0x60] sm:$0xff] %v515
      %606 = vst [vmem:[%s206 + $0x68] sm:$0xff] %v518
      %607 = vst [vmem:[%s206 + $0x70] sm:$0xff] %v523
      %608 = vst [vmem:[%s206 + $0x78] sm:$0xff] %v526
      %609 = vst [vmem:[%s206 + $0x80] sm:$0xff] %v531
      %610 = vst [vmem:[%s206 + $0x88] sm:$0xff] %v534
      %611 = vst [vmem:[%s206 + $0x90] sm:$0xff] %v539
      %612 = vst [vmem:[%s206 + $0x98] sm:$0xff] %v542
      %613 = vst [vmem:[%s206 + $0xa0] sm:$0xff] %v547
      %614 = vst [vmem:[%s206 + $0xa8] sm:$0xff] %v550
      %615 = vst [vmem:[%s206 + $0xb0] sm:$0xff] %v555
      %616 = vst [vmem:[%s206 + $0xb8] sm:$0xff] %v558
      %617 = vst [vmem:[%s206 + $0xc0] sm:$0xff] %v563
      %618 = vst [vmem:[%s206 + $0xc8] sm:$0xff] %v566
      %619 = vst [vmem:[%s206 + $0xd0] sm:$0xff] %v571
      %620 = vst [vmem:[%s206 + $0xd8] sm:$0xff] %v574
      %621 = vst [vmem:[%s206 + $0xe0] sm:$0xff] %v579
      %622 = vst [vmem:[%s206 + $0xe8] sm:$0xff] %v582
      %623 = vst [vmem:[%s206 + $0xf0] sm:$0xff] %v587
      %624 = vst [vmem:[%s206 + $0xf8] sm:$0xff] %v590
      %v625 = vadd.f32 %v467, %v470
      %v626 = vadd.f32 %v625, %v475
      %v627 = vadd.f32 %v626, %v478
      %v628 = vadd.f32 %v627, %v483
      %v629 = vadd.f32 %v628, %v486
      %v630 = vadd.f32 %v629, %v491
      %v631 = vadd.f32 %v630, %v494
      %v632 = vadd.f32 %v631, %v499
      %v633 = vadd.f32 %v632, %v502
      %v634 = vadd.f32 %v633, %v507
      %v635 = vadd.f32 %v634, %v510
      %v636 = vadd.f32 %v635, %v515
      %v637 = vadd.f32 %v636, %v518
      %v638 = vadd.f32 %v637, %v523
      %v639 = vadd.f32 %v638, %v526
      %v640 = vadd.f32 %v639, %v531
      %v641 = vadd.f32 %v640, %v534
      %v642 = vadd.f32 %v641, %v539
      %v643 = vadd.f32 %v642, %v542
      %v644 = vadd.f32 %v643, %v547
      %v645 = vadd.f32 %v644, %v550
      %v646 = vadd.f32 %v645, %v555
      %v647 = vadd.f32 %v646, %v558
      %v648 = vadd.f32 %v647, %v563
      %v649 = vadd.f32 %v648, %v566
      %v650 = vadd.f32 %v649, %v571
      %v651 = vadd.f32 %v650, %v574
      %v652 = vadd.f32 %v651, %v579
      %v653 = vadd.f32 %v652, %v582
      %v654 = vadd.f32 %v653, %v587
      %v655 = vadd.f32 %v654, %v590
      %v656 = vrot.slane %v655, 4
      %v657 = vadd.f32 %v655, %v656
      %v658 = vrot.slane %v657, 2
      %v659 = vadd.f32 %v657, %v658
      %v660 = vrot.slane %v659, 1
      %v661 = vadd.f32 %v659, %v660
      %v662 = vmul.f32 %v467, %v467
      %v663 = vmul.f32 %v470, %v470
      %v664 = vmul.f32 %v475, %v475
      %v665 = vmul.f32 %v478, %v478
      %v666 = vmul.f32 %v483, %v483
      %v667 = vmul.f32 %v486, %v486
      %v668 = vmul.f32 %v491, %v491
      %v669 = vmul.f32 %v494, %v494
      %v670 = vmul.f32 %v499, %v499
      %v671 = vmul.f32 %v502, %v502
      %v672 = vmul.f32 %v507, %v507
      %v673 = vmul.f32 %v510, %v510
      %v674 = vmul.f32 %v515, %v515
      %v675 = vmul.f32 %v518, %v518
      %v676 = vmul.f32 %v523, %v523
      %v677 = vmul.f32 %v526, %v526
      %v678 = vmul.f32 %v531, %v531
      %v679 = vmul.f32 %v534, %v534
      %v680 = vmul.f32 %v539, %v539
      %v681 = vmul.f32 %v542, %v542
      %v682 = vmul.f32 %v547, %v547
      %v683 = vmul.f32 %v550, %v550
      %v684 = vmul.f32 %v555, %v555
      %v685 = vmul.f32 %v558, %v558
      %v686 = vmul.f32 %v563, %v563
      %v687 = vmul.f32 %v566, %v566
      %v688 = vmul.f32 %v571, %v571
      %v689 = vmul.f32 %v574, %v574
      %v690 = vmul.f32 %v579, %v579
      %v691 = vmul.f32 %v582, %v582
      %v692 = vmul.f32 %v587, %v587
      %v693 = vmul.f32 %v590, %v590
      %v694 = vadd.f32 %v662, %v663
      %v695 = vadd.f32 %v694, %v664
      %v696 = vadd.f32 %v695, %v665
      %v697 = vadd.f32 %v696, %v666
      %v698 = vadd.f32 %v697, %v667
      %v699 = vadd.f32 %v698, %v668
      %v700 = vadd.f32 %v699, %v669
      %v701 = vadd.f32 %v700, %v670
      %v702 = vadd.f32 %v701, %v671
      %v703 = vadd.f32 %v702, %v672
      %v704 = vadd.f32 %v703, %v673
      %v705 = vadd.f32 %v704, %v674
      %v706 = vadd.f32 %v705, %v675
      %v707 = vadd.f32 %v706, %v676
      %v708 = vadd.f32 %v707, %v677
      %v709 = vadd.f32 %v708, %v678
      %v710 = vadd.f32 %v709, %v679
      %v711 = vadd.f32 %v710, %v680
      %v712 = vadd.f32 %v711, %v681
      %v713 = vadd.f32 %v712, %v682
      %v714 = vadd.f32 %v713, %v683
      %v715 = vadd.f32 %v714, %v684
      %v716 = vadd.f32 %v715, %v685
      %v717 = vadd.f32 %v716, %v686
      %v718 = vadd.f32 %v717, %v687
      %v719 = vadd.f32 %v718, %v688
      %v720 = vadd.f32 %v719, %v689
      %v721 = vadd.f32 %v720, %v690
      %v722 = vadd.f32 %v721, %v691
      %v723 = vadd.f32 %v722, %v692
      %v724 = vadd.f32 %v723, %v693
      %v725 = vrot.slane %v724, 4
      %v726 = vadd.f32 %v724, %v725
      %v727 = vrot.slane %v726, 2
      %v728 = vadd.f32 %v726, %v727
      %v729 = vrot.slane %v728, 1
      %v730 = vadd.f32 %v728, %v729
      %vm731 = vcmask 1040384
      %v732 = vsel %vm731, %v661, %v730
      %733 = vst [vmem:[%s211] sm:$0x3] %v732
      %s734 = smul.u32 32, %s16
      %p735 = scmp.lt.s32.totalorder %s734, 63
      %s736 = scalar_select %p735, %s734, 63
      %s737 = smul.addr %s736, 8
      %s738 = scalar_lea.vmem %s3, %s737
      %p739 = scmp.lt.s32.totalorder %s16, 1
      %s740 = scalar_select %p739, %s16, 1
      %s741 = smul.addr %s740, 2
      %s742 = scalar_lea.vmem %s4, %s741
      // Predicated region
      $region33: #{bottleneck_forward.6} parent=31 // pred_check
        %p743 = pneg %p102
      $region34: #{bottleneck_forward.6} parent=31 // pred_check_branch
        %745 = sbr.rel (%p743) target = $region36
      $region35: #{bottleneck_forward.6} parent=31 // pred_region
        %s746 = smul.u32 32, %s16
      $region36: #{bottleneck_forward.6} parent=31 // pred_fallthru
        _
      // Predicated region
      $region37: #{bottleneck_forward.6} parent=31 // pred_check
        %p747 = pneg %p128
      $region38: #{bottleneck_forward.6} parent=31 // pred_check_branch
        %749 = sbr.rel (%p747) target = $region40
      $region39: #{bottleneck_forward.6} parent=31 // pred_region
        _
      $region40: #{bottleneck_forward.6} parent=31 // pred_fallthru
        _
    $region32: #{bottleneck_forward.6} parent=5 // pred_fallthru
      _
    %p750 = scmp.le.s32.totalorder 2, %s11
    // Predicated region
    $region41: #{bottleneck_forward.6} parent=5 // pred_check
      %p751 = pneg %p750
    $region42: #{bottleneck_forward.6} parent=5 // pred_check_branch
      %753 = sbr.rel (%p751) target = $region44
    $region43: #{bottleneck_forward.6} parent=5 // pred_region
      %s754 = ssub.s32 %s11, 2
      // Predicated region
      $region45: #{bottleneck_forward.6} parent=43 // pred_check
        %p755 = pneg %p108
      $region46: #{bottleneck_forward.6} parent=43 // pred_check_branch
        %757 = sbr.rel (%p755) target = $region48
      $region47: #{bottleneck_forward.6} parent=43 // pred_region
        %s758 = smul.u32 32, %s17
        %p759 = scmp.lt.s32.totalorder %s758, 63
        %s760 = scalar_select %p759, %s758, 63
        %s761 = smul.addr %s760, 8
        %s762 = scalar_lea.vmem %s3, %s761
      $region48: #{bottleneck_forward.6} parent=43 // pred_fallthru
        _
      // Predicated region
      $region49: #{bottleneck_forward.6} parent=43 // pred_check
        %p763 = pneg %p134
      $region50: #{bottleneck_forward.6} parent=43 // pred_check_branch
        %765 = sbr.rel (%p763) target = $region52
      $region51: #{bottleneck_forward.6} parent=43 // pred_region
        %p766 = scmp.lt.s32.totalorder %s17, 1
        %s767 = scalar_select %p766, %s17, 1
        %s768 = smul.addr %s767, 2
        %s769 = scalar_lea.vmem %s4, %s768
      $region52: #{bottleneck_forward.6} parent=43 // pred_fallthru
        _
    $region44: #{bottleneck_forward.6} parent=5 // pred_fallthru
      _
  $region6: #{bottleneck_forward.6} parent=0 // loop_footer
    %s15 = sadd.s32 1, %s11
  $region7: #{bottleneck_forward.6} parent=0 // loop_footer_branch
    %10 = sbr.rel target = $region3
  $region8: #{bottleneck_forward.6} parent=0 // loop_exit
    _

// kernel: bottleneck_forward.5
$region0: #{bottleneck_forward.5}
  #allocation0 [shape = 'u32[]', space=smem, size = 0x4, offset = 0x4, fixed_abs, tag = 'smem constant byte address 0x4 - core index']
  #allocation1 [shape = 'u32[144,128]{1,0:T(1,128)}', space=vmem, size = 0x12000, scoped, tag = 'internal scratch']
  %s0 = inlined_call_operand.vmem [shape: f32[2,18,18,32], index: 0, kind: input, shape index: {}]
  %s1 = inlined_call_operand.vmem [shape: f32[2,32], index: 1, kind: input, shape index: {}]
  %s2 = inlined_call_operand.vmem [shape: bf16[288,32], index: 2, kind: input, shape index: {}]
  %s3 = inlined_call_operand.vmem [shape: f32[2,256,32], index: 3, kind: output, shape index: {0}]
  %s4 = inlined_call_operand.vmem [shape: f32[2,2,32], index: 4, kind: output, shape index: {1}]
  %5 = xla_tuple %s3, %s4
  %s6 = sld [smem:[#allocation0]]
  $region53: #{bottleneck_forward.5} parent=0
    _
  %s8 = ssub.s32 1, %s6
  %s9 = scalar_select 0, %s8, %s6
  loop: start=0, step=1, limit=4
  $region2: #{bottleneck_forward.5} parent=0 // loop_pre_header
    _
  $region3: #{bottleneck_forward.5} parent=0 // loop_header
    %s11 = sphi 0, %s15
    %p12 = scmp.ge.s32.totalorder %s11, 4
    %s21 = sphi 0, %s23
    %s24 = sphi 0, %s21
    %s25 = sphi 0, %s24
    %s41 = sphi 0, %s25
    %s45 = sphi 0, %s45
    %s47 = sphi 0, %s45
    %s48 = sphi 0, %s47
    %s62 = sphi 0, %s48
    %s66 = sphi 0, %s66
    %s68 = sphi 0, %s66
    %s69 = sphi 0, %s68
    %s83 = sphi 0, %s69
    %s89 = sphi 0, %s91
    %s92 = sphi 0, %s89
    %s93 = sphi 0, %s92
    %s109 = sphi 0, %s93
    %s115 = sphi 0, %s117
    %s118 = sphi 0, %s115
    %s119 = sphi 0, %s118
    %s135 = sphi 0, %s119
  $region4: #{bottleneck_forward.5} parent=0 // loop_header_branch
    %14 = sbr.rel (%p12) target = $region8
  $region5: #{bottleneck_forward.5} parent=0 // loop_body
    %s16 = ssub.s32 %s11, 1
    %s17 = ssub.s32 %s11, 2
    %s18 = sadd.s32 %s11, 1
    %s19 = ssub.s32 %s11, %s18
    %p20 = scmp.eq.s32.totalorder %s19, 0
    %s22 = sadd.s32 %s21, 1
    %s23 = scalar_select %p20, %s21, %s22
    %p26 = pneg %p20
    %p27 = scmp.eq.s32.totalorder %s11, 1
    %p28 = por %p26, %p27
    %p29 = scmp.ne.s32.totalorder %s21, %s24
    %p30 = scmp.eq.s32.totalorder %s11, 0
    %p31 = por %p29, %p30
    %p32 = scmp.ne.s32.totalorder %s21, %s24
    %p33 = scmp.eq.s32.totalorder %s16, 1
    %p34 = por %p32, %p33
    %p35 = scmp.ne.s32.totalorder %s24, %s25
    %p36 = scmp.eq.s32.totalorder %s16, 0
    %p37 = por %p35, %p36
    %p38 = scmp.ne.s32.totalorder %s24, %s25
    %p39 = scmp.eq.s32.totalorder %s17, 1
    %p40 = por %p38, %p39
    %p42 = scmp.ne.s32.totalorder %s25, %s41
    %p43 = scmp.eq.s32.totalorder %s17, 0
    %p44 = por %p42, %p43
    %s46 = sadd.s32 %s45, 1
    %p49 = scmp.eq.s32.totalorder %s11, 1
    %p50 = scmp.ne.s32.totalorder %s45, %s47
    %p51 = scmp.eq.s32.totalorder %s11, 0
    %p52 = por %p50, %p51
    %p53 = scmp.ne.s32.totalorder %s45, %s47
    %p54 = scmp.eq.s32.totalorder %s16, 1
    %p55 = por %p53, %p54
    %p56 = scmp.ne.s32.totalorder %s47, %s48
    %p57 = scmp.eq.s32.totalorder %s16, 0
    %p58 = por %p56, %p57
    %p59 = scmp.ne.s32.totalorder %s47, %s48
    %p60 = scmp.eq.s32.totalorder %s17, 1
    %p61 = por %p59, %p60
    %p63 = scmp.ne.s32.totalorder %s48, %s62
    %p64 = scmp.eq.s32.totalorder %s17, 0
    %p65 = por %p63, %p64
    %s67 = sadd.s32 %s66, 1
    %p70 = scmp.eq.s32.totalorder %s11, 1
    %p71 = scmp.ne.s32.totalorder %s66, %s68
    %p72 = scmp.eq.s32.totalorder %s11, 0
    %p73 = por %p71, %p72
    %p74 = scmp.ne.s32.totalorder %s66, %s68
    %p75 = scmp.eq.s32.totalorder %s16, 1
    %p76 = por %p74, %p75
    %p77 = scmp.ne.s32.totalorder %s68, %s69
    %p78 = scmp.eq.s32.totalorder %s16, 0
    %p79 = por %p77, %p78
    %p80 = scmp.ne.s32.totalorder %s68, %s69
    %p81 = scmp.eq.s32.totalorder %s17, 1
    %p82 = por %p80, %p81
    %p84 = scmp.ne.s32.totalorder %s69, %s83
    %p85 = scmp.eq.s32.totalorder %s17, 0
    %p86 = por %p84, %p85
    %s87 = ssub.s32 %s11, %s18
    %p88 = scmp.eq.s32.totalorder %s87, 0
    %s90 = sadd.s32 %s89, 1
    %s91 = scalar_select %p88, %s89, %s90
    %p94 = pneg %p88
    %p95 = scmp.eq.s32.totalorder %s11, 1
    %p96 = por %p94, %p95
    %p97 = scmp.ne.s32.totalorder %s89, %s92
    %p98 = scmp.eq.s32.totalorder %s11, 0
    %p99 = por %p97, %p98
    %p100 = scmp.ne.s32.totalorder %s89, %s92
    %p101 = scmp.eq.s32.totalorder %s16, 1
    %p102 = por %p100, %p101
    %p103 = scmp.ne.s32.totalorder %s92, %s93
    %p104 = scmp.eq.s32.totalorder %s16, 0
    %p105 = por %p103, %p104
    %p106 = scmp.ne.s32.totalorder %s92, %s93
    %p107 = scmp.eq.s32.totalorder %s17, 1
    %p108 = por %p106, %p107
    %p110 = scmp.ne.s32.totalorder %s93, %s109
    %p111 = scmp.eq.s32.totalorder %s17, 0
    %p112 = por %p110, %p111
    %s113 = ssub.s32 %s11, %s18
    %p114 = scmp.eq.s32.totalorder %s113, 0
    %s116 = sadd.s32 %s115, 1
    %s117 = scalar_select %p114, %s115, %s116
    %p120 = pneg %p114
    %p121 = scmp.eq.s32.totalorder %s11, 1
    %p122 = por %p120, %p121
    %p123 = scmp.ne.s32.totalorder %s115, %s118
    %p124 = scmp.eq.s32.totalorder %s11, 0
    %p125 = por %p123, %p124
    %p126 = scmp.ne.s32.totalorder %s115, %s118
    %p127 = scmp.eq.s32.totalorder %s16, 1
    %p128 = por %p126, %p127
    %p129 = scmp.ne.s32.totalorder %s118, %s119
    %p130 = scmp.eq.s32.totalorder %s16, 0
    %p131 = por %p129, %p130
    %p132 = scmp.ne.s32.totalorder %s118, %s119
    %p133 = scmp.eq.s32.totalorder %s17, 1
    %p134 = por %p132, %p133
    %p136 = scmp.ne.s32.totalorder %s119, %s135
    %p137 = scmp.eq.s32.totalorder %s17, 0
    %p138 = por %p136, %p137
    %p139 = scmp.le.s32.totalorder 1, %s11
    %p140 = scmp.lt.s32.totalorder %s11, 3
    %p141 = pnand %p139, %p140
    %p142 = pneg %p141
    // Predicated region
    $region9: #{bottleneck_forward.5} parent=5 // pred_check
      _
    $region10: #{bottleneck_forward.5} parent=5 // pred_check_branch
      %144 = sbr.rel (%p141) target = $region12
    $region11: #{bottleneck_forward.5} parent=5 // pred_region
      %s145 = ssub.s32 %s11, 1
      // Predicated region
      $region13: #{bottleneck_forward.5} parent=11 // pred_check
        %p146 = pneg %p58
      $region14: #{bottleneck_forward.5} parent=11 // pred_check_branch
        %148 = sbr.rel (%p146) target = $region16
      $region15: #{bottleneck_forward.5} parent=11 // pred_region
        _
      $region16: #{bottleneck_forward.5} parent=11 // pred_fallthru
        _
      // Predicated region
      $region17: #{bottleneck_forward.5} parent=11 // pred_check
        %p149 = pneg %p79
      $region18: #{bottleneck_forward.5} parent=11 // pred_check_branch
        %151 = sbr.rel (%p149) target = $region20
      $region19: #{bottleneck_forward.5} parent=11 // pred_region
        _
      $region20: #{bottleneck_forward.5} parent=11 // pred_fallthru
        _
    $region12: #{bottleneck_forward.5} parent=5 // pred_fallthru
      _
    %p152 = scmp.lt.s32.totalorder %s11, 2
    // Predicated region
    $region21: #{bottleneck_forward.5} parent=5 // pred_check
      %p153 = pneg %p152
    $region22: #{bottleneck_forward.5} parent=5 // pred_check_branch
      %155 = sbr.rel (%p153) target = $region24
    $region23: #{bottleneck_forward.5} parent=5 // pred_region
      // Predicated region
      $region25: #{bottleneck_forward.5} parent=23 // pred_check
        %p156 = pneg %p31
      $region26: #{bottleneck_forward.5} parent=23 // pred_check_branch
        %158 = sbr.rel (%p156) target = $region28
      $region27: #{bottleneck_forward.5} parent=23 // pred_region
        %p159 = scmp.lt.s32.totalorder %s11, 1
        %s160 = scalar_select %p159, %s11, 1
        %s161 = smul.addr %s160, 54
        %s162 = smul.addr %s161, 8
        %s163 = scalar_lea.vmem %s0, %s162
      $region28: #{bottleneck_forward.5} parent=23 // pred_fallthru
        _
    $region24: #{bottleneck_forward.5} parent=5 // pred_fallthru
      _
    %p164 = scmp.le.s32.totalorder 1, %s11
    %p165 = scmp.lt.s32.totalorder %s11, 3
    %p166 = pnand %p164, %p165
    %p167 = pneg %p166
    // Predicated region
    $region29: #{bottleneck_forward.5} parent=5 // pred_check
      _
    $region30: #{bottleneck_forward.5} parent=5 // pred_check_branch
      %169 = sbr.rel (%p166) target = $region32
    $region31: #{bottleneck_forward.5} parent=5 // pred_region
      %s170 = ssub.s32 %s11, 1
      %p171 = scmp.lt.s32.totalorder %s16, 1
      %s172 = scalar_select %p171, %s16, 1
      %s173 = smul.addr %s172, 54
      %s174 = smul.addr %s173, 8
      %s175 = scalar_lea.vmem %s0, %s174
      %p176 = pneg %p37
      %p177 = pneg %p34
      %p178 = pneg %p58
      %p179 = pneg %p55
      %p180 = pneg %p79
      %p181 = pneg %p76
      %p182 = pneg %p105
      %p183 = pneg %p102
      %p184 = scmp.lt.s32.totalorder %s16, 1
      %s185 = scalar_select %p184, %s16, 1
      %s186 = smul.addr %s185, 32
      %s187 = smul.addr %s186, 8
      %s188 = scalar_lea.vmem %s3, %s187
      %p189 = pneg %p131
      %p190 = pneg %p128
      %p191 = scmp.lt.s32.totalorder %s16, 1
      %s192 = scalar_select %p191, %s16, 1
      %s193 = smul.addr %s192, 2
      %s194 = scalar_lea.vmem %s4, %s193
      %p195 = scmp.lt.s32.totalorder %s16, 1
      %s196 = scalar_select %p195, %s16, 1
      %s197 = smul.addr %s196, 54
      %s198 = smul.addr %s197, 8
      %s199 = scalar_lea.vmem %s0, %s198
      %p200 = scmp.lt.s32.totalorder %s16, 1
      %s201 = scalar_select %p200, %s16, 1
      %s202 = smul.addr %s201, 32
      %s203 = smul.addr %s202, 8
      %s204 = scalar_lea.vmem %s3, %s203
      %p205 = scmp.lt.s32.totalorder %s16, 1
      %s206 = scalar_select %p205, %s16, 1
      %s207 = smul.addr %s206, 2
      %s208 = scalar_lea.vmem %s4, %s207
      %v210 = vld [vmem:[%s199] sm:$0xff]
      %v211 = vld [vmem:[%s199 + $0x8] sm:$0xff]
      %v212 = vld [vmem:[%s199 + $0x10] sm:$0x3]
      %v213 = vld [vmem:[%s199 + $0x18] sm:$0xff]
      %v214 = vld [vmem:[%s199 + $0x20] sm:$0xff]
      %v215 = vld [vmem:[%s199 + $0x28] sm:$0x3]
      %v216 = vld [vmem:[%s199 + $0x30] sm:$0xff]
      %v217 = vld [vmem:[%s199 + $0x38] sm:$0xff]
      %v218 = vld [vmem:[%s199 + $0x40] sm:$0x3]
      %v219 = vld [vmem:[%s199 + $0x48] sm:$0xff]
      %v220 = vld [vmem:[%s199 + $0x50] sm:$0xff]
      %v221 = vld [vmem:[%s199 + $0x58] sm:$0x3]
      %v222 = vld [vmem:[%s199 + $0x60] sm:$0xff]
      %v223 = vld [vmem:[%s199 + $0x68] sm:$0xff]
      %v224 = vld [vmem:[%s199 + $0x70] sm:$0x3]
      %v225 = vld [vmem:[%s199 + $0x78] sm:$0xff]
      %v226 = vld [vmem:[%s199 + $0x80] sm:$0xff]
      %v227 = vld [vmem:[%s199 + $0x88] sm:$0x3]
      %v228 = vld [vmem:[%s199 + $0x90] sm:$0xff]
      %v229 = vld [vmem:[%s199 + $0x98] sm:$0xff]
      %v230 = vld [vmem:[%s199 + $0xa0] sm:$0x3]
      %v231 = vld [vmem:[%s199 + $0xa8] sm:$0xff]
      %v232 = vld [vmem:[%s199 + $0xb0] sm:$0xff]
      %v233 = vld [vmem:[%s199 + $0xb8] sm:$0x3]
      %v234 = vld [vmem:[%s199 + $0xc0] sm:$0xff]
      %v235 = vld [vmem:[%s199 + $0xc8] sm:$0xff]
      %v236 = vld [vmem:[%s199 + $0xd0] sm:$0x3]
      %v237 = vld [vmem:[%s199 + $0xd8] sm:$0xff]
      %v238 = vld [vmem:[%s199 + $0xe0] sm:$0xff]
      %v239 = vld [vmem:[%s199 + $0xe8] sm:$0x3]
      %v240 = vld [vmem:[%s199 + $0xf0] sm:$0xff]
      %v241 = vld [vmem:[%s199 + $0xf8] sm:$0xff]
      %v242 = vld [vmem:[%s199 + $0x100] sm:$0x3]
      %v243 = vld [vmem:[%s199 + $0x108] sm:$0xff]
      %v244 = vld [vmem:[%s199 + $0x110] sm:$0xff]
      %v245 = vld [vmem:[%s199 + $0x118] sm:$0x3]
      %v246 = vld [vmem:[%s199 + $0x120] sm:$0xff]
      %v247 = vld [vmem:[%s199 + $0x128] sm:$0xff]
      %v248 = vld [vmem:[%s199 + $0x130] sm:$0x3]
      %v249 = vld [vmem:[%s199 + $0x138] sm:$0xff]
      %v250 = vld [vmem:[%s199 + $0x140] sm:$0xff]
      %v251 = vld [vmem:[%s199 + $0x148] sm:$0x3]
      %v252 = vld [vmem:[%s199 + $0x150] sm:$0xff]
      %v253 = vld [vmem:[%s199 + $0x158] sm:$0xff]
      %v254 = vld [vmem:[%s199 + $0x160] sm:$0x3]
      %v255 = vld [vmem:[%s199 + $0x168] sm:$0xff]
      %v256 = vld [vmem:[%s199 + $0x170] sm:$0xff]
      %v257 = vld [vmem:[%s199 + $0x178] sm:$0x3]
      %v258 = vld [vmem:[%s199 + $0x180] sm:$0xff]
      %v259 = vld [vmem:[%s199 + $0x188] sm:$0xff]
      %v260 = vld [vmem:[%s199 + $0x190] sm:$0x3]
      %v261 = vld [vmem:[%s199 + $0x198] sm:$0xff]
      %v262 = vld [vmem:[%s199 + $0x1a0] sm:$0xff]
      %v263 = vld [vmem:[%s199 + $0x1a8] sm:$0x3]
      %v264 = vld [vmem:[%s1] sm:$0x1]
      %v265 = vld [vmem:[%s1 + $0x1] sm:$0x1]
      %v266 = vlaneseq
      %v267 = vshrl.u32 %v266, 7
      %v268 = vsub.s32 0, %v267
      %v269 = vrot.slane %v264, %v268
      %v270 = vmul.f32 %v210, %v269
      %v271 = vmul.f32 %v211, %v269
      %v272 = vmul.f32 %v212, %v269
      %v273 = vmul.f32 %v213, %v269
      %v274 = vmul.f32 %v214, %v269
      %v275 = vmul.f32 %v215, %v269
      %v276 = vmul.f32 %v216, %v269
      %v277 = vmul.f32 %v217, %v269
      %v278 = vmul.f32 %v218, %v269
      %v279 = vmul.f32 %v219, %v269
      %v280 = vmul.f32 %v220, %v269
      %v281 = vmul.f32 %v221, %v269
      %v282 = vmul.f32 %v222, %v269
      %v283 = vmul.f32 %v223, %v269
      %v284 = vmul.f32 %v224, %v269
      %v285 = vmul.f32 %v225, %v269
      %v286 = vmul.f32 %v226, %v269
      %v287 = vmul.f32 %v227, %v269
      %v288 = vmul.f32 %v228, %v269
      %v289 = vmul.f32 %v229, %v269
      %v290 = vmul.f32 %v230, %v269
      %v291 = vmul.f32 %v231, %v269
      %v292 = vmul.f32 %v232, %v269
      %v293 = vmul.f32 %v233, %v269
      %v294 = vmul.f32 %v234, %v269
      %v295 = vmul.f32 %v235, %v269
      %v296 = vmul.f32 %v236, %v269
      %v297 = vmul.f32 %v237, %v269
      %v298 = vmul.f32 %v238, %v269
      %v299 = vmul.f32 %v239, %v269
      %v300 = vmul.f32 %v240, %v269
      %v301 = vmul.f32 %v241, %v269
      %v302 = vmul.f32 %v242, %v269
      %v303 = vmul.f32 %v243, %v269
      %v304 = vmul.f32 %v244, %v269
      %v305 = vmul.f32 %v245, %v269
      %v306 = vmul.f32 %v246, %v269
      %v307 = vmul.f32 %v247, %v269
      %v308 = vmul.f32 %v248, %v269
      %v309 = vmul.f32 %v249, %v269
      %v310 = vmul.f32 %v250, %v269
      %v311 = vmul.f32 %v251, %v269
      %v312 = vmul.f32 %v252, %v269
      %v313 = vmul.f32 %v253, %v269
      %v314 = vmul.f32 %v254, %v269
      %v315 = vmul.f32 %v255, %v269
      %v316 = vmul.f32 %v256, %v269
      %v317 = vmul.f32 %v257, %v269
      %v318 = vmul.f32 %v258, %v269
      %v319 = vmul.f32 %v259, %v269
      %v320 = vmul.f32 %v260, %v269
      %v321 = vmul.f32 %v261, %v269
      %v322 = vmul.f32 %v262, %v269
      %v323 = vmul.f32 %v263, %v269
      %v324 = vlaneseq
      %v325 = vshrl.u32 %v324, 7
      %v326 = vsub.s32 0, %v325
      %v327 = vrot.slane %v265, %v326
      %v328 = vadd.f32 %v270, %v327
      %v329 = vadd.f32 %v271, %v327
      %v330 = vadd.f32 %v272, %v327
      %v331 = vadd.f32 %v273, %v327
      %v332 = vadd.f32 %v274, %v327
      %v333 = vadd.f32 %v275, %v327
      %v334 = vadd.f32 %v276, %v327
      %v335 = vadd.f32 %v277, %v327
      %v336 = vadd.f32 %v278, %v327
      %v337 = vadd.f32 %v279, %v327
      %v338 = vadd.f32 %v280, %v327
      %v339 = vadd.f32 %v281, %v327
      %v340 = vadd.f32 %v282, %v327
      %v341 = vadd.f32 %v283, %v327
      %v342 = vadd.f32 %v284, %v327
      %v343 = vadd.f32 %v285, %v327
      %v344 = vadd.f32 %v286, %v327
      %v345 = vadd.f32 %v287, %v327
      %v346 = vadd.f32 %v288, %v327
      %v347 = vadd.f32 %v289, %v327
      %v348 = vadd.f32 %v290, %v327
      %v349 = vadd.f32 %v291, %v327
      %v350 = vadd.f32 %v292, %v327
      %v351 = vadd.f32 %v293, %v327
      %v352 = vadd.f32 %v294, %v327
      %v353 = vadd.f32 %v295, %v327
      %v354 = vadd.f32 %v296, %v327
      %v355 = vadd.f32 %v297, %v327
      %v356 = vadd.f32 %v298, %v327
      %v357 = vadd.f32 %v299, %v327
      %v358 = vadd.f32 %v300, %v327
      %v359 = vadd.f32 %v301, %v327
      %v360 = vadd.f32 %v302, %v327
      %v361 = vadd.f32 %v303, %v327
      %v362 = vadd.f32 %v304, %v327
      %v363 = vadd.f32 %v305, %v327
      %v364 = vadd.f32 %v306, %v327
      %v365 = vadd.f32 %v307, %v327
      %v366 = vadd.f32 %v308, %v327
      %v367 = vadd.f32 %v309, %v327
      %v368 = vadd.f32 %v310, %v327
      %v369 = vadd.f32 %v311, %v327
      %v370 = vadd.f32 %v312, %v327
      %v371 = vadd.f32 %v313, %v327
      %v372 = vadd.f32 %v314, %v327
      %v373 = vadd.f32 %v315, %v327
      %v374 = vadd.f32 %v316, %v327
      %v375 = vadd.f32 %v317, %v327
      %v376 = vadd.f32 %v318, %v327
      %v377 = vadd.f32 %v319, %v327
      %v378 = vadd.f32 %v320, %v327
      %v379 = vadd.f32 %v321, %v327
      %v380 = vadd.f32 %v322, %v327
      %v381 = vadd.f32 %v323, %v327
      %v382 = vmax.f32 %v328, 0.0
      %v383 = vmax.f32 %v329, 0.0
      %v384 = vmax.f32 %v330, 0.0
      %v385 = vmax.f32 %v331, 0.0
      %v386 = vmax.f32 %v332, 0.0
      %v387 = vmax.f32 %v333, 0.0
      %v388 = vmax.f32 %v334, 0.0
      %v389 = vmax.f32 %v335, 0.0
      %v390 = vmax.f32 %v336, 0.0
      %v391 = vmax.f32 %v337, 0.0
      %v392 = vmax.f32 %v338, 0.0
      %v393 = vmax.f32 %v339, 0.0
      %v394 = vmax.f32 %v340, 0.0
      %v395 = vmax.f32 %v341, 0.0
      %v396 = vmax.f32 %v342, 0.0
      %v397 = vmax.f32 %v343, 0.0
      %v398 = vmax.f32 %v344, 0.0
      %v399 = vmax.f32 %v345, 0.0
      %v400 = vmax.f32 %v346, 0.0
      %v401 = vmax.f32 %v347, 0.0
      %v402 = vmax.f32 %v348, 0.0
      %v403 = vmax.f32 %v349, 0.0
      %v404 = vmax.f32 %v350, 0.0
      %v405 = vmax.f32 %v351, 0.0
      %v406 = vmax.f32 %v352, 0.0
      %v407 = vmax.f32 %v353, 0.0
      %v408 = vmax.f32 %v354, 0.0
      %v409 = vmax.f32 %v355, 0.0
      %v410 = vmax.f32 %v356, 0.0
      %v411 = vmax.f32 %v357, 0.0
      %v412 = vmax.f32 %v358, 0.0
      %v413 = vmax.f32 %v359, 0.0
      %v414 = vmax.f32 %v360, 0.0
      %v415 = vmax.f32 %v361, 0.0
      %v416 = vmax.f32 %v362, 0.0
      %v417 = vmax.f32 %v363, 0.0
      %v418 = vmax.f32 %v364, 0.0
      %v419 = vmax.f32 %v365, 0.0
      %v420 = vmax.f32 %v366, 0.0
      %v421 = vmax.f32 %v367, 0.0
      %v422 = vmax.f32 %v368, 0.0
      %v423 = vmax.f32 %v369, 0.0
      %v424 = vmax.f32 %v370, 0.0
      %v425 = vmax.f32 %v371, 0.0
      %v426 = vmax.f32 %v372, 0.0
      %v427 = vmax.f32 %v373, 0.0
      %v428 = vmax.f32 %v374, 0.0
      %v429 = vmax.f32 %v375, 0.0
      %v430 = vmax.f32 %v376, 0.0
      %v431 = vmax.f32 %v377, 0.0
      %v432 = vmax.f32 %v378, 0.0
      %v433 = vmax.f32 %v379, 0.0
      %v434 = vmax.f32 %v380, 0.0
      %v435 = vmax.f32 %v381, 0.0
      %v436 = vlaneseq
      %v437 = vshrl.u32 %v436, 7
      %v438 = vadd.s32 %v437, 8
      %v439 = vadd.s32 %v437, 16
      %vm440 = vcmp.ge.s32.totalorder %v437, 1
      %vm441 = vcmp.ge.s32.totalorder %v438, 1
      %vm442 = vcmp.ge.s32.totalorder %v439, 1
      %vm443 = vmand 0, %vm440
      %vm444 = vmand 0, %vm441
      %vm445 = vmand 0, %vm442
      %vm446 = vmand 1, %vm440
      %vm447 = vmand 1, %vm441
      %vm448 = vmand 1, %vm442
      %vm449 = vcmp.le.s32.totalorder %v437, 16
      %vm450 = vcmp.le.s32.totalorder %v438, 16
      %vm451 = vcmp.le.s32.totalorder %v439, 16
      %vm452 = vmand %vm443, %vm449
      %vm453 = vmand %vm444, %vm450
      %vm454 = vmand %vm445, %vm451
      %vm455 = vmand %vm446, %vm449
      %vm456 = vmand %vm447, %vm450
      %vm457 = vmand %vm448, %vm451
      %v458 = vsel %vm452, 1, 0
      %v459 = vsel %vm453, 1, 0
      %v460 = vsel %vm454, 1, 0
      %v461 = vsel %vm455, 1, 0
      %v462 = vsel %vm456, 1, 0
      %v463 = vsel %vm457, 1, 0
      %vm464 = vcmp.eq.s32.totalorder %v458, 1
      %vm465 = vcmp.eq.s32.totalorder %v459, 1
      %vm466 = vcmp.eq.s32.totalorder %v460, 1
      %vm467 = vcmp.eq.s32.totalorder %v461, 1
      %vm468 = vcmp.eq.s32.totalorder %v462, 1
      %vm469 = vcmp.eq.s32.totalorder %v463, 1
      %v470 = vsel %vm464, %v382, 0.0
      %v471 = vsel %vm465, %v383, 0.0
      %v472 = vsel %vm466, %v384, 0.0
      %v473 = vsel %vm467, %v385, 0.0
      %v474 = vsel %vm468, %v386, 0.0
      %v475 = vsel %vm469, %v387, 0.0
      %v476 = vsel %vm467, %v388, 0.0
      %v477 = vsel %vm468, %v389, 0.0
      %v478 = vsel %vm469, %v390, 0.0
      %v479 = vsel %vm467, %v391, 0.0
      %v480 = vsel %vm468, %v392, 0.0
      %v481 = vsel %vm469, %v393, 0.0
      %v482 = vsel %vm467, %v394, 0.0
      %v483 = vsel %vm468, %v395, 0.0
      %v484 = vsel %vm469, %v396, 0.0
      %v485 = vsel %vm467, %v397, 0.0
      %v486 = vsel %vm468, %v398, 0.0
      %v487 = vsel %vm469, %v399, 0.0
      %v488 = vsel %vm467, %v400, 0.0
      %v489 = vsel %vm468, %v401, 0.0
      %v490 = vsel %vm469, %v402, 0.0
      %v491 = vsel %vm467, %v403, 0.0
      %v492 = vsel %vm468, %v404, 0.0
      %v493 = vsel %vm469, %v405, 0.0
      %v494 = vsel %vm467, %v406, 0.0
      %v495 = vsel %vm468, %v407, 0.0
      %v496 = vsel %vm469, %v408, 0.0
      %v497 = vsel %vm467, %v409, 0.0
      %v498 = vsel %vm468, %v410, 0.0
      %v499 = vsel %vm469, %v411, 0.0
      %v500 = vsel %vm467, %v412, 0.0
      %v501 = vsel %vm468, %v413, 0.0
      %v502 = vsel %vm469, %v414, 0.0
      %v503 = vsel %vm467, %v415, 0.0
      %v504 = vsel %vm468, %v416, 0.0
      %v505 = vsel %vm469, %v417, 0.0
      %v506 = vsel %vm467, %v418, 0.0
      %v507 = vsel %vm468, %v419, 0.0
      %v508 = vsel %vm469, %v420, 0.0
      %v509 = vsel %vm467, %v421, 0.0
      %v510 = vsel %vm468, %v422, 0.0
      %v511 = vsel %vm469, %v423, 0.0
      %v512 = vsel %vm467, %v424, 0.0
      %v513 = vsel %vm468, %v425, 0.0
      %v514 = vsel %vm469, %v426, 0.0
      %v515 = vsel %vm467, %v427, 0.0
      %v516 = vsel %vm468, %v428, 0.0
      %v517 = vsel %vm469, %v429, 0.0
      %v518 = vsel %vm467, %v430, 0.0
      %v519 = vsel %vm468, %v431, 0.0
      %v520 = vsel %vm469, %v432, 0.0
      %v521 = vsel %vm464, %v433, 0.0
      %v522 = vsel %vm465, %v434, 0.0
      %v523 = vsel %vm466, %v435, 0.0
      %v524 = vpack.c.bf16 %v471, %v470
      %v525 = vpack.c.bf16 %v472, %v472
      %v526 = vpack.c.bf16 %v474, %v473
      %v527 = vpack.c.bf16 %v475, %v475
      %v528 = vpack.c.bf16 %v477, %v476
      %v529 = vpack.c.bf16 %v478, %v478
      %v530 = vpack.c.bf16 %v480, %v479
      %v531 = vpack.c.bf16 %v481, %v481
      %v532 = vpack.c.bf16 %v483, %v482
      %v533 = vpack.c.bf16 %v484, %v484
      %v534 = vpack.c.bf16 %v486, %v485
      %v535 = vpack.c.bf16 %v487, %v487
      %v536 = vpack.c.bf16 %v489, %v488
      %v537 = vpack.c.bf16 %v490, %v490
      %v538 = vpack.c.bf16 %v492, %v491
      %v539 = vpack.c.bf16 %v493, %v493
      %v540 = vpack.c.bf16 %v495, %v494
      %v541 = vpack.c.bf16 %v496, %v496
      %v542 = vpack.c.bf16 %v498, %v497
      %v543 = vpack.c.bf16 %v499, %v499
      %v544 = vpack.c.bf16 %v501, %v500
      %v545 = vpack.c.bf16 %v502, %v502
      %v546 = vpack.c.bf16 %v504, %v503
      %v547 = vpack.c.bf16 %v505, %v505
      %v548 = vpack.c.bf16 %v507, %v506
      %v549 = vpack.c.bf16 %v508, %v508
      %v550 = vpack.c.bf16 %v510, %v509
      %v551 = vpack.c.bf16 %v511, %v511
      %v552 = vpack.c.bf16 %v513, %v512
      %v553 = vpack.c.bf16 %v514, %v514
      %v554 = vpack.c.bf16 %v516, %v515
      %v555 = vpack.c.bf16 %v517, %v517
      %v556 = vpack.c.bf16 %v519, %v518
      %v557 = vpack.c.bf16 %v520, %v520
      %v558 = vpack.c.bf16 %v522, %v521
      %v559 = vpack.c.bf16 %v523, %v523
      %vm560 = vsmask.f32 7424
      %v562 = vshrl.u32 %v524, 16
      %v564 = vshll.u32 %v524, 16
      %v566 = vrot.slane %v564, 1
      %v567 = vor.u32 %v562, %v566
      %v569 = vshll.u32 %v525, 16
      %v571 = vrot.slane %v569, 1
      %v572 = vsel %vm560, %v567, %v571
      %v574 = vshrl.u32 %v526, 16
      %v576 = vshll.u32 %v526, 16
      %v578 = vrot.slane %v576, 1
      %v579 = vor.u32 %v574, %v578
      %v581 = vshll.u32 %v527, 16
      %v583 = vrot.slane %v581, 1
      %v584 = vsel %vm560, %v579, %v583
      %v586 = vshrl.u32 %v528, 16
      %v588 = vshll.u32 %v528, 16
      %v590 = vrot.slane %v588, 1
      %v591 = vor.u32 %v586, %v590
      %v593 = vshll.u32 %v529, 16
      %v595 = vrot.slane %v593, 1
      %v596 = vsel %vm560, %v591, %v595
      %v598 = vshrl.u32 %v530, 16
      %v600 = vshll.u32 %v530, 16
      %v602 = vrot.slane %v600, 1
      %v603 = vor.u32 %v598, %v602
      %v605 = vshll.u32 %v531, 16
      %v607 = vrot.slane %v605, 1
      %v608 = vsel %vm560, %v603, %v607
      %v610 = vshrl.u32 %v532, 16
      %v612 = vshll.u32 %v532, 16
      %v614 = vrot.slane %v612, 1
      %v615 = vor.u32 %v610, %v614
      %v617 = vshll.u32 %v533, 16
      %v619 = vrot.slane %v617, 1
      %v620 = vsel %vm560, %v615, %v619
      %v622 = vshrl.u32 %v534, 16
      %v624 = vshll.u32 %v534, 16
      %v626 = vrot.slane %v624, 1
      %v627 = vor.u32 %v622, %v626
      %v629 = vshll.u32 %v535, 16
      %v631 = vrot.slane %v629, 1
      %v632 = vsel %vm560, %v627, %v631
      %v634 = vshrl.u32 %v536, 16
      %v636 = vshll.u32 %v536, 16
      %v638 = vrot.slane %v636, 1
      %v639 = vor.u32 %v634, %v638
      %v641 = vshll.u32 %v537, 16
      %v643 = vrot.slane %v641, 1
      %v644 = vsel %vm560, %v639, %v643
      %v646 = vshrl.u32 %v538, 16
      %v648 = vshll.u32 %v538, 16
      %v650 = vrot.slane %v648, 1
      %v651 = vor.u32 %v646, %v650
      %v653 = vshll.u32 %v539, 16
      %v655 = vrot.slane %v653, 1
      %v656 = vsel %vm560, %v651, %v655
      %v658 = vshrl.u32 %v540, 16
      %v660 = vshll.u32 %v540, 16
      %v662 = vrot.slane %v660, 1
      %v663 = vor.u32 %v658, %v662
      %v665 = vshll.u32 %v541, 16
      %v667 = vrot.slane %v665, 1
      %v668 = vsel %vm560, %v663, %v667
      %v670 = vshrl.u32 %v542, 16
      %v672 = vshll.u32 %v542, 16
      %v674 = vrot.slane %v672, 1
      %v675 = vor.u32 %v670, %v674
      %v677 = vshll.u32 %v543, 16
      %v679 = vrot.slane %v677, 1
      %v680 = vsel %vm560, %v675, %v679
      %v682 = vshrl.u32 %v544, 16
      %v684 = vshll.u32 %v544, 16
      %v686 = vrot.slane %v684, 1
      %v687 = vor.u32 %v682, %v686
      %v689 = vshll.u32 %v545, 16
      %v691 = vrot.slane %v689, 1
      %v692 = vsel %vm560, %v687, %v691
      %v694 = vshrl.u32 %v546, 16
      %v696 = vshll.u32 %v546, 16
      %v698 = vrot.slane %v696, 1
      %v699 = vor.u32 %v694, %v698
      %v701 = vshll.u32 %v547, 16
      %v703 = vrot.slane %v701, 1
      %v704 = vsel %vm560, %v699, %v703
      %v706 = vshrl.u32 %v548, 16
      %v708 = vshll.u32 %v548, 16
      %v710 = vrot.slane %v708, 1
      %v711 = vor.u32 %v706, %v710
      %v713 = vshll.u32 %v549, 16
      %v715 = vrot.slane %v713, 1
      %v716 = vsel %vm560, %v711, %v715
      %v718 = vshrl.u32 %v550, 16
      %v720 = vshll.u32 %v550, 16
      %v722 = vrot.slane %v720, 1
      %v723 = vor.u32 %v718, %v722
      %v725 = vshll.u32 %v551, 16
      %v727 = vrot.slane %v725, 1
      %v728 = vsel %vm560, %v723, %v727
      %v730 = vshrl.u32 %v552, 16
      %v732 = vshll.u32 %v552, 16
      %v734 = vrot.slane %v732, 1
      %v735 = vor.u32 %v730, %v734
      %v737 = vshll.u32 %v553, 16
      %v739 = vrot.slane %v737, 1
      %v740 = vsel %vm560, %v735, %v739
      %v742 = vshrl.u32 %v554, 16
      %v744 = vshll.u32 %v554, 16
      %v746 = vrot.slane %v744, 1
      %v747 = vor.u32 %v742, %v746
      %v749 = vshll.u32 %v555, 16
      %v751 = vrot.slane %v749, 1
      %v752 = vsel %vm560, %v747, %v751
      %vm785 = vcmask 1046528
      %v786 = vrot.slane %v524, 1
      %v787 = vrot.slane %v525, 1
      %v788 = vsel %vm785, %v786, %v787
      %v789 = vrot.slane %v526, 1
      %v790 = vrot.slane %v527, 1
      %v791 = vsel %vm785, %v789, %v790
      %v792 = vrot.slane %v528, 1
      %v793 = vrot.slane %v529, 1
      %v794 = vsel %vm785, %v792, %v793
      %v795 = vrot.slane %v530, 1
      %v796 = vrot.slane %v531, 1
      %v797 = vsel %vm785, %v795, %v796
      %v798 = vrot.slane %v532, 1
      %v799 = vrot.slane %v533, 1
      %v800 = vsel %vm785, %v798, %v799
      %v801 = vrot.slane %v534, 1
      %v802 = vrot.slane %v535, 1
      %v803 = vsel %vm785, %v801, %v802
      %v804 = vrot.slane %v536, 1
      %v805 = vrot.slane %v537, 1
      %v806 = vsel %vm785, %v804, %v805
      %v807 = vrot.slane %v538, 1
      %v808 = vrot.slane %v539, 1
      %v809 = vsel %vm785, %v807, %v808
      %v810 = vrot.slane %v540, 1
      %v811 = vrot.slane %v541, 1
      %v812 = vsel %vm785, %v810, %v811
      %v813 = vrot.slane %v542, 1
      %v814 = vrot.slane %v543, 1
      %v815 = vsel %vm785, %v813, %v814
      %v816 = vrot.slane %v544, 1
      %v817 = vrot.slane %v545, 1
      %v818 = vsel %vm785, %v816, %v817
      %v819 = vrot.slane %v546, 1
      %v820 = vrot.slane %v547, 1
      %v821 = vsel %vm785, %v819, %v820
      %v822 = vrot.slane %v548, 1
      %v823 = vrot.slane %v549, 1
      %v824 = vsel %vm785, %v822, %v823
      %v825 = vrot.slane %v550, 1
      %v826 = vrot.slane %v551, 1
      %v827 = vsel %vm785, %v825, %v826
      %v828 = vrot.slane %v552, 1
      %v829 = vrot.slane %v553, 1
      %v830 = vsel %vm785, %v828, %v829
      %v831 = vrot.slane %v554, 1
      %v832 = vrot.slane %v555, 1
      %v833 = vsel %vm785, %v831, %v832
      %v835 = vshrl.u32 %v556, 16
      %v837 = vshll.u32 %v556, 16
      %v839 = vrot.slane %v837, 1
      %v840 = vor.u32 %v835, %v839
      %v842 = vshll.u32 %v557, 16
      %v844 = vrot.slane %v842, 1
      %v845 = vsel %vm560, %v840, %v844
      %v848 = vrot.slane %v556, 1
      %v849 = vrot.slane %v557, 1
      %v850 = vsel %vm785, %v848, %v849
      %v852 = vshrl.u32 %v558, 16
      %v854 = vshll.u32 %v558, 16
      %v856 = vrot.slane %v854, 1
      %v857 = vor.u32 %v852, %v856
      %v859 = vshll.u32 %v559, 16
      %v861 = vrot.slane %v859, 1
      %v862 = vsel %vm560, %v857, %v861
      %v865 = vrot.slane %v558, 1
      %v866 = vrot.slane %v559, 1
      %v867 = vsel %vm785, %v865, %v866
      %868 = vrot.lane.b32.xlu0 %v572, 32
      %v869 = vpop.permute.xlu0 %868
      %870 = vrot.lane.b32.xlu0 %v584, 32
      %v871 = vpop.permute.xlu0 %870
      %872 = vrot.lane.b32.xlu0 %v596, 32
      %v873 = vpop.permute.xlu0 %872
      %874 = vrot.lane.b32.xlu0 %v608, 32
      %v875 = vpop.permute.xlu0 %874
      %876 = vrot.lane.b32.xlu0 %v620, 32
      %v877 = vpop.permute.xlu0 %876
      %878 = vrot.lane.b32.xlu0 %v632, 32
      %v879 = vpop.permute.xlu0 %878
      %880 = vrot.lane.b32.xlu0 %v644, 32
      %v881 = vpop.permute.xlu0 %880
      %882 = vrot.lane.b32.xlu0 %v656, 32
      %v883 = vpop.permute.xlu0 %882
      %884 = vrot.lane.b32.xlu0 %v668, 32
      %v885 = vpop.permute.xlu0 %884
      %886 = vrot.lane.b32.xlu0 %v680, 32
      %v887 = vpop.permute.xlu0 %886
      %888 = vrot.lane.b32.xlu0 %v692, 32
      %v889 = vpop.permute.xlu0 %888
      %890 = vrot.lane.b32.xlu0 %v704, 32
      %v891 = vpop.permute.xlu0 %890
      %892 = vrot.lane.b32.xlu0 %v716, 32
      %v893 = vpop.permute.xlu0 %892
      %894 = vrot.lane.b32.xlu0 %v728, 32
      %v895 = vpop.permute.xlu0 %894
      %896 = vrot.lane.b32.xlu0 %v740, 32
      %v897 = vpop.permute.xlu0 %896
      %898 = vrot.lane.b32.xlu0 %v752, 32
      %v899 = vpop.permute.xlu0 %898
      %900 = vrot.lane.b32.xlu0 %v788, 64
      %v901 = vpop.permute.xlu0 %900
      %902 = vrot.lane.b32.xlu0 %v791, 64
      %v903 = vpop.permute.xlu0 %902
      %904 = vrot.lane.b32.xlu0 %v794, 64
      %v905 = vpop.permute.xlu0 %904
      %906 = vrot.lane.b32.xlu0 %v797, 64
      %v907 = vpop.permute.xlu0 %906
      %908 = vrot.lane.b32.xlu0 %v800, 64
      %v909 = vpop.permute.xlu0 %908
      %910 = vrot.lane.b32.xlu0 %v803, 64
      %v911 = vpop.permute.xlu0 %910
      %912 = vrot.lane.b32.xlu0 %v806, 64
      %v913 = vpop.permute.xlu0 %912
      %914 = vrot.lane.b32.xlu0 %v809, 64
      %v915 = vpop.permute.xlu0 %914
      %916 = vrot.lane.b32.xlu0 %v812, 64
      %v917 = vpop.permute.xlu0 %916
      %918 = vrot.lane.b32.xlu0 %v815, 64
      %v919 = vpop.permute.xlu0 %918
      %920 = vrot.lane.b32.xlu0 %v818, 64
      %v921 = vpop.permute.xlu0 %920
      %922 = vrot.lane.b32.xlu0 %v821, 64
      %v923 = vpop.permute.xlu0 %922
      %924 = vrot.lane.b32.xlu0 %v824, 64
      %v925 = vpop.permute.xlu0 %924
      %926 = vrot.lane.b32.xlu0 %v827, 64
      %v927 = vpop.permute.xlu0 %926
      %928 = vrot.lane.b32.xlu0 %v830, 64
      %v929 = vpop.permute.xlu0 %928
      %930 = vrot.lane.b32.xlu0 %v833, 64
      %v931 = vpop.permute.xlu0 %930
      %932 = vrot.lane.b32.xlu0 %v526, 96
      %v933 = vpop.permute.xlu0 %932
      %934 = vrot.lane.b32.xlu0 %v528, 96
      %v935 = vpop.permute.xlu0 %934
      %936 = vrot.lane.b32.xlu0 %v530, 96
      %v937 = vpop.permute.xlu0 %936
      %938 = vrot.lane.b32.xlu0 %v532, 96
      %v939 = vpop.permute.xlu0 %938
      %940 = vrot.lane.b32.xlu0 %v534, 96
      %v941 = vpop.permute.xlu0 %940
      %942 = vrot.lane.b32.xlu0 %v536, 96
      %v943 = vpop.permute.xlu0 %942
      %944 = vrot.lane.b32.xlu0 %v538, 96
      %v945 = vpop.permute.xlu0 %944
      %946 = vrot.lane.b32.xlu0 %v540, 96
      %v947 = vpop.permute.xlu0 %946
      %948 = vrot.lane.b32.xlu0 %v542, 96
      %v949 = vpop.permute.xlu0 %948
      %950 = vrot.lane.b32.xlu0 %v544, 96
      %v951 = vpop.permute.xlu0 %950
      %952 = vrot.lane.b32.xlu0 %v546, 96
      %v953 = vpop.permute.xlu0 %952
      %954 = vrot.lane.b32.xlu0 %v548, 96
      %v955 = vpop.permute.xlu0 %954
      %956 = vrot.lane.b32.xlu0 %v550, 96
      %v957 = vpop.permute.xlu0 %956
      %958 = vrot.lane.b32.xlu0 %v552, 96
      %v959 = vpop.permute.xlu0 %958
      %960 = vrot.lane.b32.xlu0 %v554, 96
      %v961 = vpop.permute.xlu0 %960
      %962 = vrot.lane.b32.xlu0 %v556, 96
      %v963 = vpop.permute.xlu0 %962
      %964 = vrot.lane.b32.xlu0 %v791, 32
      %v965 = vpop.permute.xlu0 %964
      %966 = vrot.lane.b32.xlu0 %v794, 32
      %v967 = vpop.permute.xlu0 %966
      %968 = vrot.lane.b32.xlu0 %v797, 32
      %v969 = vpop.permute.xlu0 %968
      %970 = vrot.lane.b32.xlu0 %v800, 32
      %v971 = vpop.permute.xlu0 %970
      %972 = vrot.lane.b32.xlu0 %v803, 32
      %v973 = vpop.permute.xlu0 %972
      %974 = vrot.lane.b32.xlu0 %v806, 32
      %v975 = vpop.permute.xlu0 %974
      %976 = vrot.lane.b32.xlu0 %v809, 32
      %v977 = vpop.permute.xlu0 %976
      %978 = vrot.lane.b32.xlu0 %v812, 32
      %v979 = vpop.permute.xlu0 %978
      %980 = vrot.lane.b32.xlu0 %v815, 32
      %v981 = vpop.permute.xlu0 %980
      %982 = vrot.lane.b32.xlu0 %v818, 32
      %v983 = vpop.permute.xlu0 %982
      %984 = vrot.lane.b32.xlu0 %v821, 32
      %v985 = vpop.permute.xlu0 %984
      %986 = vrot.lane.b32.xlu0 %v824, 32
      %v987 = vpop.permute.xlu0 %986
      %988 = vrot.lane.b32.xlu0 %v827, 32
      %v989 = vpop.permute.xlu0 %988
      %990 = vrot.lane.b32.xlu0 %v830, 32
      %v991 = vpop.permute.xlu0 %990
      %992 = vrot.lane.b32.xlu0 %v833, 32
      %v993 = vpop.permute.xlu0 %992
      %994 = vrot.lane.b32.xlu0 %v850, 32
      %v995 = vpop.permute.xlu0 %994
      %996 = vrot.lane.b32.xlu0 %v528, 64
      %v997 = vpop.permute.xlu0 %996
      %998 = vrot.lane.b32.xlu0 %v530, 64
      %v999 = vpop.permute.xlu0 %998
      %1000 = vrot.lane.b32.xlu0 %v532, 64
      %v1001 = vpop.permute.xlu0 %1000
      %1002 = vrot.lane.b32.xlu0 %v534, 64
      %v1003 = vpop.permute.xlu0 %1002
      %1004 = vrot.lane.b32.xlu0 %v536, 64
      %v1005 = vpop.permute.xlu0 %1004
      %1006 = vrot.lane.b32.xlu0 %v538, 64
      %v1007 = vpop.permute.xlu0 %1006
      %1008 = vrot.lane.b32.xlu0 %v540, 64
      %v1009 = vpop.permute.xlu0 %1008
      %1010 = vrot.lane.b32.xlu0 %v542, 64
      %v1011 = vpop.permute.xlu0 %1010
      %1012 = vrot.lane.b32.xlu0 %v544, 64
      %v1013 = vpop.permute.xlu0 %1012
      %1014 = vrot.lane.b32.xlu0 %v546, 64
      %v1015 = vpop.permute.xlu0 %1014
      %1016 = vrot.lane.b32.xlu0 %v548, 64
      %v1017 = vpop.permute.xlu0 %1016
      %1018 = vrot.lane.b32.xlu0 %v550, 64
      %v1019 = vpop.permute.xlu0 %1018
      %1020 = vrot.lane.b32.xlu0 %v552, 64
      %v1021 = vpop.permute.xlu0 %1020
      %1022 = vrot.lane.b32.xlu0 %v554, 64
      %v1023 = vpop.permute.xlu0 %1022
      %1024 = vrot.lane.b32.xlu0 %v556, 64
      %v1025 = vpop.permute.xlu0 %1024
      %1026 = vrot.lane.b32.xlu0 %v558, 64
      %v1027 = vpop.permute.xlu0 %1026
      %1028 = vrot.lane.b32.xlu0 %v596, 96
      %v1029 = vpop.permute.xlu0 %1028
      %1030 = vrot.lane.b32.xlu0 %v608, 96
      %v1031 = vpop.permute.xlu0 %1030
      %1032 = vrot.lane.b32.xlu0 %v620, 96
      %v1033 = vpop.permute.xlu0 %1032
      %1034 = vrot.lane.b32.xlu0 %v632, 96
      %v1035 = vpop.permute.xlu0 %1034
      %1036 = vrot.lane.b32.xlu0 %v644, 96
      %v1037 = vpop.permute.xlu0 %1036
      %1038 = vrot.lane.b32.xlu0 %v656, 96
      %v1039 = vpop.permute.xlu0 %1038
      %1040 = vrot.lane.b32.xlu0 %v668, 96
      %v1041 = vpop.permute.xlu0 %1040
      %1042 = vrot.lane.b32.xlu0 %v680, 96
      %v1043 = vpop.permute.xlu0 %1042
      %1044 = vrot.lane.b32.xlu0 %v692, 96
      %v1045 = vpop.permute.xlu0 %1044
      %1046 = vrot.lane.b32.xlu0 %v704, 96
      %v1047 = vpop.permute.xlu0 %1046
      %1048 = vrot.lane.b32.xlu0 %v716, 96
      %v1049 = vpop.permute.xlu0 %1048
      %1050 = vrot.lane.b32.xlu0 %v728, 96
      %v1051 = vpop.permute.xlu0 %1050
      %1052 = vrot.lane.b32.xlu0 %v740, 96
      %v1053 = vpop.permute.xlu0 %1052
      %1054 = vrot.lane.b32.xlu0 %v752, 96
      %v1055 = vpop.permute.xlu0 %1054
      %1056 = vrot.lane.b32.xlu0 %v845, 96
      %v1057 = vpop.permute.xlu0 %1056
      %1058 = vrot.lane.b32.xlu0 %v862, 96
      %v1059 = vpop.permute.xlu0 %1058
      %vm1060 = vcmask 261120
      %v1062 = vsel %vm1060, %v524, %v869
      %v1064 = vsel %vm1060, %v526, %v871
      %v1066 = vsel %vm1060, %v528, %v873
      %v1068 = vsel %vm1060, %v530, %v875
      %v1070 = vsel %vm1060, %v532, %v877
      %v1072 = vsel %vm1060, %v534, %v879
      %v1074 = vsel %vm1060, %v536, %v881
      %v1076 = vsel %vm1060, %v538, %v883
      %v1078 = vsel %vm1060, %v540, %v885
      %v1080 = vsel %vm1060, %v542, %v887
      %v1082 = vsel %vm1060, %v544, %v889
      %v1084 = vsel %vm1060, %v546, %v891
      %v1086 = vsel %vm1060, %v548, %v893
      %v1088 = vsel %vm1060, %v550, %v895
      %v1090 = vsel %vm1060, %v552, %v897
      %v1092 = vsel %vm1060, %v554, %v899
      %vm1093 = vcmask 523264
      %v1095 = vsel %vm1093, %v1062, %v901
      %v1097 = vsel %vm1093, %v1064, %v903
      %v1099 = vsel %vm1093, %v1066, %v905
      %v1101 = vsel %vm1093, %v1068, %v907
      %v1103 = vsel %vm1093, %v1070, %v909
      %v1105 = vsel %vm1093, %v1072, %v911
      %v1107 = vsel %vm1093, %v1074, %v913
      %v1109 = vsel %vm1093, %v1076, %v915
      %v1111 = vsel %vm1093, %v1078, %v917
      %v1113 = vsel %vm1093, %v1080, %v919
      %v1115 = vsel %vm1093, %v1082, %v921
      %v1117 = vsel %vm1093, %v1084, %v923
      %v1119 = vsel %vm1093, %v1086, %v925
      %v1121 = vsel %vm1093, %v1088, %v927
      %v1123 = vsel %vm1093, %v1090, %v929
      %v1125 = vsel %vm1093, %v1092, %v931
      %vm1126 = vcmask 785408
      %v1128 = vsel %vm1126, %v1095, %v933
      %v1131 = vsel %vm1126, %v1097, %v935
      %v1134 = vsel %vm1126, %v1099, %v937
      %v1137 = vsel %vm1126, %v1101, %v939
      %v1140 = vsel %vm1126, %v1103, %v941
      %v1143 = vsel %vm1126, %v1105, %v943
      %v1146 = vsel %vm1126, %v1107, %v945
      %v1149 = vsel %vm1126, %v1109, %v947
      %v1152 = vsel %vm1126, %v1111, %v949
      %v1155 = vsel %vm1126, %v1113, %v951
      %v1158 = vsel %vm1126, %v1115, %v953
      %v1161 = vsel %vm1126, %v1117, %v955
      %v1164 = vsel %vm1126, %v1119, %v957
      %v1167 = vsel %vm1126, %v1121, %v959
      %v1170 = vsel %vm1126, %v1123, %v961
      %v1173 = vsel %vm1126, %v1125, %v963
      %v1177 = vsel %vm1060, %v584, %v965
      %v1180 = vsel %vm1060, %v596, %v967
      %v1183 = vsel %vm1060, %v608, %v969
      %v1186 = vsel %vm1060, %v620, %v971
      %v1189 = vsel %vm1060, %v632, %v973
      %v1192 = vsel %vm1060, %v644, %v975
      %v1195 = vsel %vm1060, %v656, %v977
      %v1198 = vsel %vm1060, %v668, %v979
      %v1201 = vsel %vm1060, %v680, %v981
      %v1204 = vsel %vm1060, %v692, %v983
      %v1207 = vsel %vm1060, %v704, %v985
      %v1210 = vsel %vm1060, %v716, %v987
      %v1213 = vsel %vm1060, %v728, %v989
      %v1216 = vsel %vm1060, %v740, %v991
      %v1219 = vsel %vm1060, %v752, %v993
      %v1222 = vsel %vm1060, %v845, %v995
      %v1224 = vsel %vm1093, %v1177, %v997
      %v1226 = vsel %vm1093, %v1180, %v999
      %v1228 = vsel %vm1093, %v1183, %v1001
      %v1230 = vsel %vm1093, %v1186, %v1003
      %v1232 = vsel %vm1093, %v1189, %v1005
      %v1234 = vsel %vm1093, %v1192, %v1007
      %v1236 = vsel %vm1093, %v1195, %v1009
      %v1238 = vsel %vm1093, %v1198, %v1011
      %v1240 = vsel %vm1093, %v1201, %v1013
      %v1242 = vsel %vm1093, %v1204, %v1015
      %v1244 = vsel %vm1093, %v1207, %v1017
      %v1246 = vsel %vm1093, %v1210, %v1019
      %v1248 = vsel %vm1093, %v1213, %v1021
      %v1250 = vsel %vm1093, %v1216, %v1023
      %v1252 = vsel %vm1093, %v1219, %v1025
      %v1254 = vsel %vm1093, %v1222, %v1027
      %v1256 = vsel %vm1126, %v1224, %v1029
      %v1259 = vsel %vm1126, %v1226, %v1031
      %v1262 = vsel %vm1126, %v1228, %v1033
      %v1265 = vsel %vm1126, %v1230, %v1035
      %v1268 = vsel %vm1126, %v1232, %v1037
      %v1271 = vsel %vm1126, %v1234, %v1039
      %v1274 = vsel %vm1126, %v1236, %v1041
      %v1277 = vsel %vm1126, %v1238, %v1043
      %v1280 = vsel %vm1126, %v1240, %v1045
      %v1283 = vsel %vm1126, %v1242, %v1047
      %v1286 = vsel %vm1126, %v1244, %v1049
      %v1289 = vsel %vm1126, %v1246, %v1051
      %v1292 = vsel %vm1126, %v1248, %v1053
      %v1295 = vsel %vm1126, %v1250, %v1055
      %v1298 = vsel %vm1126, %v1252, %v1057
      %v1301 = vsel %vm1126, %v1254, %v1059
      %v1303 = vld [vmem:[%s2] sm:$0xf]
      %v1304 = vld [vmem:[%s2 + $0x4] sm:$0xf]
      %v1305 = vld [vmem:[%s2 + $0x8] sm:$0xf]
      %v1306 = vld [vmem:[%s2 + $0xc] sm:$0xf]
      %v1307 = vld [vmem:[%s2 + $0x10] sm:$0xf]
      %v1308 = vld [vmem:[%s2 + $0x14] sm:$0xf]
      %v1309 = vld [vmem:[%s2 + $0x18] sm:$0xf]
      %v1310 = vld [vmem:[%s2 + $0x1c] sm:$0xf]
      %v1311 = vld [vmem:[%s2 + $0x20] sm:$0xf]
      %v1312 = vld [vmem:[%s2 + $0x24] sm:$0xf]
      %v1313 = vld [vmem:[%s2 + $0x28] sm:$0xf]
      %v1314 = vld [vmem:[%s2 + $0x2c] sm:$0xf]
      %v1315 = vld [vmem:[%s2 + $0x30] sm:$0xf]
      %v1316 = vld [vmem:[%s2 + $0x34] sm:$0xf]
      %v1317 = vld [vmem:[%s2 + $0x38] sm:$0xf]
      %v1318 = vld [vmem:[%s2 + $0x3c] sm:$0xf]
      %v1319 = vld [vmem:[%s2 + $0x40] sm:$0xf]
      %v1320 = vld [vmem:[%s2 + $0x44] sm:$0xf]
      %v1321 = vld [vmem:[%s2 + $0x48] sm:$0xf]
      %v1322 = vld [vmem:[%s2 + $0x4c] sm:$0xf]
      %v1323 = vld [vmem:[%s2 + $0x50] sm:$0xf]
      %v1324 = vld [vmem:[%s2 + $0x54] sm:$0xf]
      %v1325 = vld [vmem:[%s2 + $0x58] sm:$0xf]
      %v1326 = vld [vmem:[%s2 + $0x5c] sm:$0xf]
      %v1327 = vld [vmem:[%s2 + $0x60] sm:$0xf]
      %v1328 = vld [vmem:[%s2 + $0x64] sm:$0xf]
      %v1329 = vld [vmem:[%s2 + $0x68] sm:$0xf]
      %v1330 = vld [vmem:[%s2 + $0x6c] sm:$0xf]
      %v1331 = vld [vmem:[%s2 + $0x70] sm:$0xf]
      %v1332 = vld [vmem:[%s2 + $0x74] sm:$0xf]
      %v1333 = vld [vmem:[%s2 + $0x78] sm:$0xf]
      %v1334 = vld [vmem:[%s2 + $0x7c] sm:$0xf]
      %v1335 = vld [vmem:[%s2 + $0x80] sm:$0xf]
      %v1336 = vld [vmem:[%s2 + $0x84] sm:$0xf]
      %v1337 = vld [vmem:[%s2 + $0x88] sm:$0xf]
      %v1338 = vld [vmem:[%s2 + $0x8c] sm:$0xf]
      %v1375 = vunpack.c.l.b16 %v1303
      %v1376 = vunpack.c.l.b16 %v1304
      %v1377 = vunpack.c.l.b16 %v1305
      %v1378 = vunpack.c.l.b16 %v1306
      %v1379 = vunpack.c.l.b16 %v1307
      %v1380 = vunpack.c.l.b16 %v1308
      %v1381 = vunpack.c.l.b16 %v1309
      %v1382 = vunpack.c.l.b16 %v1310
      %v1383 = vunpack.c.l.b16 %v1311
      %v1384 = vunpack.c.l.b16 %v1312
      %v1385 = vunpack.c.l.b16 %v1313
      %v1386 = vunpack.c.l.b16 %v1314
      %v1387 = vunpack.c.l.b16 %v1315
      %v1388 = vunpack.c.l.b16 %v1316
      %v1389 = vunpack.c.l.b16 %v1317
      %v1390 = vunpack.c.l.b16 %v1318
      %v1391 = vunpack.c.l.b16 %v1319
      %v1392 = vunpack.c.l.b16 %v1320
      %v1393 = vunpack.c.l.b16 %v1321
      %v1394 = vunpack.c.l.b16 %v1322
      %v1395 = vunpack.c.l.b16 %v1323
      %v1396 = vunpack.c.l.b16 %v1324
      %v1397 = vunpack.c.l.b16 %v1325
      %v1398 = vunpack.c.l.b16 %v1326
      %v1399 = vunpack.c.l.b16 %v1327
      %v1400 = vunpack.c.l.b16 %v1328
      %v1401 = vunpack.c.l.b16 %v1329
      %v1402 = vunpack.c.l.b16 %v1330
      %v1403 = vunpack.c.l.b16 %v1331
      %v1404 = vunpack.c.l.b16 %v1332
      %v1405 = vunpack.c.l.b16 %v1333
      %v1406 = vunpack.c.l.b16 %v1334
      %v1407 = vunpack.c.l.b16 %v1335
      %v1408 = vunpack.c.l.b16 %v1336
      %v1409 = vunpack.c.l.b16 %v1337
      %v1410 = vunpack.c.l.b16 %v1338
      %v1411 = vpack.c.b16 %v1376, %v1375
      %v1412 = vpack.c.b16 %v1378, %v1377
      %v1413 = vpack.c.b16 %v1380, %v1379
      %v1414 = vpack.c.b16 %v1382, %v1381
      %v1415 = vpack.c.b16 %v1384, %v1383
      %v1416 = vpack.c.b16 %v1386, %v1385
      %v1417 = vpack.c.b16 %v1388, %v1387
      %v1418 = vpack.c.b16 %v1390, %v1389
      %v1419 = vpack.c.b16 %v1392, %v1391
      %v1420 = vpack.c.b16 %v1394, %v1393
      %v1421 = vpack.c.b16 %v1396, %v1395
      %v1422 = vpack.c.b16 %v1398, %v1397
      %v1423 = vpack.c.b16 %v1400, %v1399
      %v1424 = vpack.c.b16 %v1402, %v1401
      %v1425 = vpack.c.b16 %v1404, %v1403
      %v1426 = vpack.c.b16 %v1406, %v1405
      %v1427 = vpack.c.b16 %v1408, %v1407
      %v1428 = vpack.c.b16 %v1410, %v1409
      %v1448 = vsel %vm1060, %v794, 0
      %v1451 = vsel %vm1060, %v797, 0
      %v1454 = vsel %vm1060, %v800, 0
      %v1457 = vsel %vm1060, %v803, 0
      %v1460 = vsel %vm1060, %v806, 0
      %v1463 = vsel %vm1060, %v809, 0
      %v1466 = vsel %vm1060, %v812, 0
      %v1469 = vsel %vm1060, %v815, 0
      %v1472 = vsel %vm1060, %v818, 0
      %v1475 = vsel %vm1060, %v821, 0
      %v1478 = vsel %vm1060, %v824, 0
      %v1481 = vsel %vm1060, %v827, 0
      %v1484 = vsel %vm1060, %v830, 0
      %v1487 = vsel %vm1060, %v833, 0
      %v1490 = vsel %vm1060, %v850, 0
      %v1493 = vsel %vm1060, %v867, 0
      %1495 = vmatprep.subr.bf16.mxu0 0
      %1496 = vmatpush1.bf16.msra.mxu0 %v1411
      %1497 = vmatprep.subr.bf16.mxu0 0
      %1498 = vmatpush1.bf16.msra.mxu0 %v1412
      %1499 = vmatprep.subr.bf16.mxu0 0
      %1500 = vmatpush1.bf16.msra.mxu0 %v1413
      %1501 = vmatprep.subr.bf16.mxu0 0
      %1502 = vmatpush1.bf16.msra.mxu0 %v1414
      %1503 = vmatprep.subr.bf16.mxu0 0
      %1504 = vmatpush1.bf16.msra.mxu0 %v1415
      %1505 = vmatprep.subr.bf16.mxu0 0
      %1506 = vmatpush1.bf16.msra.mxu0 %v1416
      %1507 = vmatprep.subr.bf16.mxu0 0
      %1508 = vmatpush1.bf16.msra.mxu0 %v1417
      %1509 = vmatprep.subr.bf16.mxu0 0
      %1510 = vmatpush1.bf16.msra.mxu0 %v1418
      %1511 = vmatprep.subr.bf16.mxu0 0
      %1512 = vmatpush1.bf16.msra.mxu0 %v1419
      %1513 = vmatprep.subr.bf16.mxu0 0
      %1514 = vmatpush1.bf16.msra.mxu0 %v1420
      %1515 = vmatprep.subr.bf16.mxu0 0
      %1516 = vmatpush1.bf16.msra.mxu0 %v1421
      %1517 = vmatprep.subr.bf16.mxu0 0
      %1518 = vmatpush1.bf16.msra.mxu0 %v1422
      %1519 = vmatprep.subr.bf16.mxu0 0
      %1520 = vmatpush1.bf16.msra.mxu0 %v1423
      %1521 = vmatprep.subr.bf16.mxu0 0
      %1522 = vmatpush1.bf16.msra.mxu0 %v1424
      %1523 = vmatprep.subr.bf16.mxu0 0
      %1524 = vmatpush1.bf16.msra.mxu0 %v1425
      %1525 = vmatprep.subr.bf16.mxu0 0
      %1526 = vmatpush1.bf16.msra.mxu0 %v1426
      %1527 = vmatprep.mubr.bf16.mxu0 %v1256
      %1528 = vmatmul.mubr.bf16.gmra.mrb[0].mxu0 %v1128
      %v1529 = vpop.f32.mrb[0].mxu0
      %v1530 = vadd.f32 0.0, %v1529
      %v1531 = vpop.f32.mrb[0].mxu0
      %v1532 = vpop.f32.mrb[0].mxu0
      %v1533 = vadd.f32 0.0, %v1532
      %v1534 = vpop.f32.mrb[0].mxu0
      %1535 = vmatprep.mubr.bf16.mxu0 %v1259
      %1536 = vmatmul.mubr.bf16.gmra.mrb[0].mxu0 %v1131
      %v1537 = vpop.f32.mrb[0].mxu0
      %v1538 = vadd.f32 0.0, %v1537
      %v1539 = vpop.f32.mrb[0].mxu0
      %v1540 = vpop.f32.mrb[0].mxu0
      %v1541 = vadd.f32 0.0, %v1540
      %v1542 = vpop.f32.mrb[0].mxu0
      %1543 = vmatprep.mubr.bf16.mxu0 %v1262
      %1544 = vmatmul.mubr.bf16.gmra.mrb[0].mxu0 %v1134
      %v1545 = vpop.f32.mrb[0].mxu0
      %v1546 = vadd.f32 0.0, %v1545
      %v1547 = vpop.f32.mrb[0].mxu0
      %v1548 = vpop.f32.mrb[0].mxu0
      %v1549 = vadd.f32 0.0, %v1548
      %v1550 = vpop.f32.mrb[0].mxu0
      %1551 = vmatprep.mubr.bf16.mxu0 %v1265
      %1552 = vmatmul.mubr.bf16.gmra.mrb[0].mxu0 %v1137
      %v1553 = vpop.f32.mrb[0].mxu0
      %v1554 = vadd.f32 0.0, %v1553
      %v1555 = vpop.f32.mrb[0].mxu0
      %v1556 = vpop.f32.mrb[0].mxu0
      %v1557 = vadd.f32 0.0, %v1556
      %v1558 = vpop.f32.mrb[0].mxu0
      %1559 = vmatprep.mubr.bf16.mxu0 %v1268
      %1560 = vmatmul.mubr.bf16.gmra.mrb[0].mxu0 %v1140
      %v1561 = vpop.f32.mrb[0].mxu0
      %v1562 = vadd.f32 0.0, %v1561
      %v1563 = vpop.f32.mrb[0].mxu0
      %v1564 = vpop.f32.mrb[0].mxu0
      %v1565 = vadd.f32 0.0, %v1564
      %v1566 = vpop.f32.mrb[0].mxu0
      %1567 = vmatprep.mubr.bf16.mxu0 %v1271
      %1568 = vmatmul.mubr.bf16.gmra.mrb[0].mxu0 %v1143
      %v1569 = vpop.f32.mrb[0].mxu0
      %v1570 = vadd.f32 0.0, %v1569
      %v1571 = vpop.f32.mrb[0].mxu0
      %v1572 = vpop.f32.mrb[0].mxu0
      %v1573 = vadd.f32 0.0, %v1572
      %v1574 = vpop.f32.mrb[0].mxu0
      %1575 = vmatprep.mubr.bf16.mxu0 %v1274
      %1576 = vmatmul.mubr.bf16.gmra.mrb[0].mxu0 %v1146
      %v1577 = vpop.f32.mrb[0].mxu0
      %v1578 = vadd.f32 0.0, %v1577
      %v1579 = vpop.f32.mrb[0].mxu0
      %v1580 = vpop.f32.mrb[0].mxu0
      %v1581 = vadd.f32 0.0, %v1580
      %v1582 = vpop.f32.mrb[0].mxu0
      %1583 = vmatprep.mubr.bf16.mxu0 %v1277
      %1584 = vmatmul.mubr.bf16.gmra.mrb[0].mxu0 %v1149
      %v1585 = vpop.f32.mrb[0].mxu0
      %v1586 = vadd.f32 0.0, %v1585
      %v1587 = vpop.f32.mrb[0].mxu0
      %v1588 = vpop.f32.mrb[0].mxu0
      %v1589 = vadd.f32 0.0, %v1588
      %v1590 = vpop.f32.mrb[0].mxu0
      %1591 = vmatprep.mubr.bf16.mxu0 %v1280
      %1592 = vmatmul.mubr.bf16.gmra.mrb[0].mxu0 %v1152
      %v1593 = vpop.f32.mrb[0].mxu0
      %v1594 = vadd.f32 0.0, %v1593
      %v1595 = vpop.f32.mrb[0].mxu0
      %v1596 = vpop.f32.mrb[0].mxu0
      %v1597 = vadd.f32 0.0, %v1596
      %v1598 = vpop.f32.mrb[0].mxu0
      %1599 = vmatprep.mubr.bf16.mxu0 %v1283
      %1600 = vmatmul.mubr.bf16.gmra.mrb[0].mxu0 %v1155
      %v1601 = vpop.f32.mrb[0].mxu0
      %v1602 = vadd.f32 0.0, %v1601
      %v1603 = vpop.f32.mrb[0].mxu0
      %v1604 = vpop.f32.mrb[0].mxu0
      %v1605 = vadd.f32 0.0, %v1604
      %v1606 = vpop.f32.mrb[0].mxu0
      %1607 = vmatprep.mubr.bf16.mxu0 %v1286
      %1608 = vmatmul.mubr.bf16.gmra.mrb[0].mxu0 %v1158
      %v1609 = vpop.f32.mrb[0].mxu0
      %v1610 = vadd.f32 0.0, %v1609
      %v1611 = vpop.f32.mrb[0].mxu0
      %v1612 = vpop.f32.mrb[0].mxu0
      %v1613 = vadd.f32 0.0, %v1612
      %v1614 = vpop.f32.mrb[0].mxu0
      %1615 = vmatprep.mubr.bf16.mxu0 %v1289
      %1616 = vmatmul.mubr.bf16.gmra.mrb[0].mxu0 %v1161
      %v1617 = vpop.f32.mrb[0].mxu0
      %v1618 = vadd.f32 0.0, %v1617
      %v1619 = vpop.f32.mrb[0].mxu0
      %v1620 = vpop.f32.mrb[0].mxu0
      %v1621 = vadd.f32 0.0, %v1620
      %v1622 = vpop.f32.mrb[0].mxu0
      %1623 = vmatprep.mubr.bf16.mxu0 %v1292
      %1624 = vmatmul.mubr.bf16.gmra.mrb[0].mxu0 %v1164
      %v1625 = vpop.f32.mrb[0].mxu0
      %v1626 = vadd.f32 0.0, %v1625
      %v1627 = vpop.f32.mrb[0].mxu0
      %v1628 = vpop.f32.mrb[0].mxu0
      %v1629 = vadd.f32 0.0, %v1628
      %v1630 = vpop.f32.mrb[0].mxu0
      %1631 = vmatprep.mubr.bf16.mxu0 %v1295
      %1632 = vmatmul.mubr.bf16.gmra.mrb[0].mxu0 %v1167
      %v1633 = vpop.f32.mrb[0].mxu0
      %v1634 = vadd.f32 0.0, %v1633
      %v1635 = vpop.f32.mrb[0].mxu0
      %v1636 = vpop.f32.mrb[0].mxu0
      %v1637 = vadd.f32 0.0, %v1636
      %v1638 = vpop.f32.mrb[0].mxu0
      %1639 = vmatprep.mubr.bf16.mxu0 %v1298
      %1640 = vmatmul.mubr.bf16.gmra.mrb[0].mxu0 %v1170
      %v1641 = vpop.f32.mrb[0].mxu0
      %v1642 = vadd.f32 0.0, %v1641
      %v1643 = vpop.f32.mrb[0].mxu0
      %v1644 = vpop.f32.mrb[0].mxu0
      %v1645 = vadd.f32 0.0, %v1644
      %v1646 = vpop.f32.mrb[0].mxu0
      %1647 = vmatprep.mubr.bf16.mxu0 %v1301
      %1648 = vmatmul.mubr.bf16.gmra.mrb[0].mxu0 %v1173
      %v1649 = vpop.f32.mrb[0].mxu0
      %v1650 = vadd.f32 0.0, %v1649
      %v1651 = vpop.f32.mrb[0].mxu0
      %v1652 = vpop.f32.mrb[0].mxu0
      %v1653 = vadd.f32 0.0, %v1652
      %v1654 = vpop.f32.mrb[0].mxu0
      %1655 = vdwg.mxu0
      %1656 = vmatprep.subr.bf16.mxu0 0
      %1657 = vmatpush1.bf16.msra.mxu0 %v1427
      %1658 = vmatprep.subr.bf16.mxu0 0
      %1659 = vmatpush1.bf16.msra.mxu0 %v1428
      %1660 = vmatprep.subr.bf16.mxu0 0
      %1661 = vmatpush1.bf16.msra.mxu0 0
      %1662 = vmatprep.subr.bf16.mxu0 0
      %1663 = vmatpush1.bf16.msra.mxu0 0
      %1664 = vmatprep.subr.bf16.mxu0 0
      %1665 = vmatpush1.bf16.msra.mxu0 0
      %1666 = vmatprep.subr.bf16.mxu0 0
      %1667 = vmatpush1.bf16.msra.mxu0 0
      %1668 = vmatprep.subr.bf16.mxu0 0
      %1669 = vmatpush1.bf16.msra.mxu0 0
      %1670 = vmatprep.subr.bf16.mxu0 0
      %1671 = vmatpush1.bf16.msra.mxu0 0
      %1672 = vmatprep.subr.bf16.mxu0 0
      %1673 = vmatpush1.bf16.msra.mxu0 0
      %1674 = vmatprep.subr.bf16.mxu0 0
      %1675 = vmatpush1.bf16.msra.mxu0 0
      %1676 = vmatprep.subr.bf16.mxu0 0
      %1677 = vmatpush1.bf16.msra.mxu0 0
      %1678 = vmatprep.subr.bf16.mxu0 0
      %1679 = vmatpush1.bf16.msra.mxu0 0
      %1680 = vmatprep.subr.bf16.mxu0 0
      %1681 = vmatpush1.bf16.msra.mxu0 0
      %1682 = vmatprep.subr.bf16.mxu0 0
      %1683 = vmatpush1.bf16.msra.mxu0 0
      %1684 = vmatprep.subr.bf16.mxu0 0
      %1685 = vmatpush1.bf16.msra.mxu0 0
      %1686 = vmatprep.subr.bf16.mxu0 0
      %1687 = vmatpush1.bf16.msra.mxu0 0
      %1688 = vmatprep.mubr.bf16.mxu0 0
      %1689 = vmatmul.mubr.bf16.gmra.mrb[0].mxu0 %v1448
      %v1690 = vpop.f32.mrb[0].mxu0
      %v1691 = vadd.f32 %v1530, %v1690
      %v1692 = vpop.f32.mrb[0].mxu0
      %v1693 = vpop.f32.mrb[0].mxu0
      %v1694 = vadd.f32 %v1533, %v1693
      %v1695 = vpop.f32.mrb[0].mxu0
      %1696 = vmatprep.mubr.bf16.mxu0 0
      %1697 = vmatmul.mubr.bf16.gmra.mrb[0].mxu0 %v1451
      %v1698 = vpop.f32.mrb[0].mxu0
      %v1699 = vadd.f32 %v1538, %v1698
      %v1700 = vpop.f32.mrb[0].mxu0
      %v1701 = vpop.f32.mrb[0].mxu0
      %v1702 = vadd.f32 %v1541, %v1701
      %v1703 = vpop.f32.mrb[0].mxu0
      %1704 = vmatprep.mubr.bf16.mxu0 0
      %1705 = vmatmul.mubr.bf16.gmra.mrb[0].mxu0 %v1454
      %v1706 = vpop.f32.mrb[0].mxu0
      %v1707 = vadd.f32 %v1546, %v1706
      %v1708 = vpop.f32.mrb[0].mxu0
      %v1709 = vpop.f32.mrb[0].mxu0
      %v1710 = vadd.f32 %v1549, %v1709
      %v1711 = vpop.f32.mrb[0].mxu0
      %1712 = vmatprep.mubr.bf16.mxu0 0
      %1713 = vmatmul.mubr.bf16.gmra.mrb[0].mxu0 %v1457
      %v1714 = vpop.f32.mrb[0].mxu0
      %v1715 = vadd.f32 %v1554, %v1714
      %v1716 = vpop.f32.mrb[0].mxu0
      %v1717 = vpop.f32.mrb[0].mxu0
      %v1718 = vadd.f32 %v1557, %v1717
      %v1719 = vpop.f32.mrb[0].mxu0
      %1720 = vmatprep.mubr.bf16.mxu0 0
      %1721 = vmatmul.mubr.bf16.gmra.mrb[0].mxu0 %v1460
      %v1722 = vpop.f32.mrb[0].mxu0
      %v1723 = vadd.f32 %v1562, %v1722
      %v1724 = vpop.f32.mrb[0].mxu0
      %v1725 = vpop.f32.mrb[0].mxu0
      %v1726 = vadd.f32 %v1565, %v1725
      %v1727 = vpop.f32.mrb[0].mxu0
      %1728 = vmatprep.mubr.bf16.mxu0 0
      %1729 = vmatmul.mubr.bf16.gmra.mrb[0].mxu0 %v1463
      %v1730 = vpop.f32.mrb[0].mxu0
      %v1731 = vadd.f32 %v1570, %v1730
      %v1732 = vpop.f32.mrb[0].mxu0
      %v1733 = vpop.f32.mrb[0].mxu0
      %v1734 = vadd.f32 %v1573, %v1733
      %v1735 = vpop.f32.mrb[0].mxu0
      %1736 = vmatprep.mubr.bf16.mxu0 0
      %1737 = vmatmul.mubr.bf16.gmra.mrb[0].mxu0 %v1466
      %v1738 = vpop.f32.mrb[0].mxu0
      %v1739 = vadd.f32 %v1578, %v1738
      %v1740 = vpop.f32.mrb[0].mxu0
      %v1741 = vpop.f32.mrb[0].mxu0
      %v1742 = vadd.f32 %v1581, %v1741
      %v1743 = vpop.f32.mrb[0].mxu0
      %1744 = vmatprep.mubr.bf16.mxu0 0
      %1745 = vmatmul.mubr.bf16.gmra.mrb[0].mxu0 %v1469
      %v1746 = vpop.f32.mrb[0].mxu0
      %v1747 = vadd.f32 %v1586, %v1746
      %v1748 = vpop.f32.mrb[0].mxu0
      %v1749 = vpop.f32.mrb[0].mxu0
      %v1750 = vadd.f32 %v1589, %v1749
      %v1751 = vpop.f32.mrb[0].mxu0
      %1752 = vmatprep.mubr.bf16.mxu0 0
      %1753 = vmatmul.mubr.bf16.gmra.mrb[0].mxu0 %v1472
      %v1754 = vpop.f32.mrb[0].mxu0
      %v1755 = vadd.f32 %v1594, %v1754
      %v1756 = vpop.f32.mrb[0].mxu0
      %v1757 = vpop.f32.mrb[0].mxu0
      %v1758 = vadd.f32 %v1597, %v1757
      %v1759 = vpop.f32.mrb[0].mxu0
      %1760 = vmatprep.mubr.bf16.mxu0 0
      %1761 = vmatmul.mubr.bf16.gmra.mrb[0].mxu0 %v1475
      %v1762 = vpop.f32.mrb[0].mxu0
      %v1763 = vadd.f32 %v1602, %v1762
      %v1764 = vpop.f32.mrb[0].mxu0
      %v1765 = vpop.f32.mrb[0].mxu0
      %v1766 = vadd.f32 %v1605, %v1765
      %v1767 = vpop.f32.mrb[0].mxu0
      %1768 = vmatprep.mubr.bf16.mxu0 0
      %1769 = vmatmul.mubr.bf16.gmra.mrb[0].mxu0 %v1478
      %v1770 = vpop.f32.mrb[0].mxu0
      %v1771 = vadd.f32 %v1610, %v1770
      %v1772 = vpop.f32.mrb[0].mxu0
      %v1773 = vpop.f32.mrb[0].mxu0
      %v1774 = vadd.f32 %v1613, %v1773
      %v1775 = vpop.f32.mrb[0].mxu0
      %1776 = vmatprep.mubr.bf16.mxu0 0
      %1777 = vmatmul.mubr.bf16.gmra.mrb[0].mxu0 %v1481
      %v1778 = vpop.f32.mrb[0].mxu0
      %v1779 = vadd.f32 %v1618, %v1778
      %v1780 = vpop.f32.mrb[0].mxu0
      %v1781 = vpop.f32.mrb[0].mxu0
      %v1782 = vadd.f32 %v1621, %v1781
      %v1783 = vpop.f32.mrb[0].mxu0
      %1784 = vmatprep.mubr.bf16.mxu0 0
      %1785 = vmatmul.mubr.bf16.gmra.mrb[0].mxu0 %v1484
      %v1786 = vpop.f32.mrb[0].mxu0
      %v1787 = vadd.f32 %v1626, %v1786
      %v1788 = vpop.f32.mrb[0].mxu0
      %v1789 = vpop.f32.mrb[0].mxu0
      %v1790 = vadd.f32 %v1629, %v1789
      %v1791 = vpop.f32.mrb[0].mxu0
      %1792 = vmatprep.mubr.bf16.mxu0 0
      %1793 = vmatmul.mubr.bf16.gmra.mrb[0].mxu0 %v1487
      %v1794 = vpop.f32.mrb[0].mxu0
      %v1795 = vadd.f32 %v1634, %v1794
      %v1796 = vpop.f32.mrb[0].mxu0
      %v1797 = vpop.f32.mrb[0].mxu0
      %v1798 = vadd.f32 %v1637, %v1797
      %v1799 = vpop.f32.mrb[0].mxu0
      %1800 = vmatprep.mubr.bf16.mxu0 0
      %1801 = vmatmul.mubr.bf16.gmra.mrb[0].mxu0 %v1490
      %v1802 = vpop.f32.mrb[0].mxu0
      %v1803 = vadd.f32 %v1642, %v1802
      %v1804 = vpop.f32.mrb[0].mxu0
      %v1805 = vpop.f32.mrb[0].mxu0
      %v1806 = vadd.f32 %v1645, %v1805
      %v1807 = vpop.f32.mrb[0].mxu0
      %1808 = vmatprep.mubr.bf16.mxu0 0
      %1809 = vmatmul.mubr.bf16.gmra.mrb[0].mxu0 %v1493
      %v1810 = vpop.f32.mrb[0].mxu0
      %v1811 = vadd.f32 %v1650, %v1810
      %v1812 = vpop.f32.mrb[0].mxu0
      %v1813 = vpop.f32.mrb[0].mxu0
      %v1814 = vadd.f32 %v1653, %v1813
      %v1815 = vpop.f32.mrb[0].mxu0
      %1816 = vdwg.mxu0
      %1817 = vst.msk [vmem:[%s204] sm:$0xff] %vm1060, %v1691
      %1818 = vst.msk [vmem:[%s204 + $0x8] sm:$0xff] %vm1060, %v1694
      %1819 = vst.msk [vmem:[%s204 + $0x10] sm:$0xff] %vm1060, %v1699
      %1820 = vst.msk [vmem:[%s204 + $0x18] sm:$0xff] %vm1060, %v1702
      %1821 = vst.msk [vmem:[%s204 + $0x20] sm:$0xff] %vm1060, %v1707
      %1822 = vst.msk [vmem:[%s204 + $0x28] sm:$0xff] %vm1060, %v1710
      %1823 = vst.msk [vmem:[%s204 + $0x30] sm:$0xff] %vm1060, %v1715
      %1824 = vst.msk [vmem:[%s204 + $0x38] sm:$0xff] %vm1060, %v1718
      %1825 = vst.msk [vmem:[%s204 + $0x40] sm:$0xff] %vm1060, %v1723
      %1826 = vst.msk [vmem:[%s204 + $0x48] sm:$0xff] %vm1060, %v1726
      %1827 = vst.msk [vmem:[%s204 + $0x50] sm:$0xff] %vm1060, %v1731
      %1828 = vst.msk [vmem:[%s204 + $0x58] sm:$0xff] %vm1060, %v1734
      %1829 = vst.msk [vmem:[%s204 + $0x60] sm:$0xff] %vm1060, %v1739
      %1830 = vst.msk [vmem:[%s204 + $0x68] sm:$0xff] %vm1060, %v1742
      %1831 = vst.msk [vmem:[%s204 + $0x70] sm:$0xff] %vm1060, %v1747
      %1832 = vst.msk [vmem:[%s204 + $0x78] sm:$0xff] %vm1060, %v1750
      %1833 = vst.msk [vmem:[%s204 + $0x80] sm:$0xff] %vm1060, %v1755
      %1834 = vst.msk [vmem:[%s204 + $0x88] sm:$0xff] %vm1060, %v1758
      %1835 = vst.msk [vmem:[%s204 + $0x90] sm:$0xff] %vm1060, %v1763
      %1836 = vst.msk [vmem:[%s204 + $0x98] sm:$0xff] %vm1060, %v1766
      %1837 = vst.msk [vmem:[%s204 + $0xa0] sm:$0xff] %vm1060, %v1771
      %1838 = vst.msk [vmem:[%s204 + $0xa8] sm:$0xff] %vm1060, %v1774
      %1839 = vst.msk [vmem:[%s204 + $0xb0] sm:$0xff] %vm1060, %v1779
      %1840 = vst.msk [vmem:[%s204 + $0xb8] sm:$0xff] %vm1060, %v1782
      %1841 = vst.msk [vmem:[%s204 + $0xc0] sm:$0xff] %vm1060, %v1787
      %1842 = vst.msk [vmem:[%s204 + $0xc8] sm:$0xff] %vm1060, %v1790
      %1843 = vst.msk [vmem:[%s204 + $0xd0] sm:$0xff] %vm1060, %v1795
      %1844 = vst.msk [vmem:[%s204 + $0xd8] sm:$0xff] %vm1060, %v1798
      %1845 = vst.msk [vmem:[%s204 + $0xe0] sm:$0xff] %vm1060, %v1803
      %1846 = vst.msk [vmem:[%s204 + $0xe8] sm:$0xff] %vm1060, %v1806
      %1847 = vst.msk [vmem:[%s204 + $0xf0] sm:$0xff] %vm1060, %v1811
      %1848 = vst.msk [vmem:[%s204 + $0xf8] sm:$0xff] %vm1060, %v1814
      %v1849 = vsel %vm1060, %v1691, 0.0
      %v1850 = vsel %vm1060, %v1694, 0.0
      %v1851 = vadd.f32 %v1849, %v1850
      %v1852 = vsel %vm1060, %v1699, 0.0
      %v1853 = vadd.f32 %v1851, %v1852
      %v1854 = vsel %vm1060, %v1702, 0.0
      %v1855 = vadd.f32 %v1853, %v1854
      %v1856 = vsel %vm1060, %v1707, 0.0
      %v1857 = vadd.f32 %v1855, %v1856
      %v1858 = vsel %vm1060, %v1710, 0.0
      %v1859 = vadd.f32 %v1857, %v1858
      %v1860 = vsel %vm1060, %v1715, 0.0
      %v1861 = vadd.f32 %v1859, %v1860
      %v1862 = vsel %vm1060, %v1718, 0.0
      %v1863 = vadd.f32 %v1861, %v1862
      %v1864 = vsel %vm1060, %v1723, 0.0
      %v1865 = vadd.f32 %v1863, %v1864
      %v1866 = vsel %vm1060, %v1726, 0.0
      %v1867 = vadd.f32 %v1865, %v1866
      %v1868 = vsel %vm1060, %v1731, 0.0
      %v1869 = vadd.f32 %v1867, %v1868
      %v1870 = vsel %vm1060, %v1734, 0.0
      %v1871 = vadd.f32 %v1869, %v1870
      %v1872 = vsel %vm1060, %v1739, 0.0
      %v1873 = vadd.f32 %v1871, %v1872
      %v1874 = vsel %vm1060, %v1742, 0.0
      %v1875 = vadd.f32 %v1873, %v1874
      %v1876 = vsel %vm1060, %v1747, 0.0
      %v1877 = vadd.f32 %v1875, %v1876
      %v1878 = vsel %vm1060, %v1750, 0.0
      %v1879 = vadd.f32 %v1877, %v1878
      %v1880 = vsel %vm1060, %v1755, 0.0
      %v1881 = vadd.f32 %v1879, %v1880
      %v1882 = vsel %vm1060, %v1758, 0.0
      %v1883 = vadd.f32 %v1881, %v1882
      %v1884 = vsel %vm1060, %v1763, 0.0
      %v1885 = vadd.f32 %v1883, %v1884
      %v1886 = vsel %vm1060, %v1766, 0.0
      %v1887 = vadd.f32 %v1885, %v1886
      %v1888 = vsel %vm1060, %v1771, 0.0
      %v1889 = vadd.f32 %v1887, %v1888
      %v1890 = vsel %vm1060, %v1774, 0.0
      %v1891 = vadd.f32 %v1889, %v1890
      %v1892 = vsel %vm1060, %v1779, 0.0
      %v1893 = vadd.f32 %v1891, %v1892
      %v1894 = vsel %vm1060, %v1782, 0.0
      %v1895 = vadd.f32 %v1893, %v1894
      %v1896 = vsel %vm1060, %v1787, 0.0
      %v1897 = vadd.f32 %v1895, %v1896
      %v1898 = vsel %vm1060, %v1790, 0.0
      %v1899 = vadd.f32 %v1897, %v1898
      %v1900 = vsel %vm1060, %v1795, 0.0
      %v1901 = vadd.f32 %v1899, %v1900
      %v1902 = vsel %vm1060, %v1798, 0.0
      %v1903 = vadd.f32 %v1901, %v1902
      %v1904 = vsel %vm1060, %v1803, 0.0
      %v1905 = vadd.f32 %v1903, %v1904
      %v1906 = vsel %vm1060, %v1806, 0.0
      %v1907 = vadd.f32 %v1905, %v1906
      %v1908 = vsel %vm1060, %v1811, 0.0
      %v1909 = vadd.f32 %v1907, %v1908
      %v1910 = vsel %vm1060, %v1814, 0.0
      %v1911 = vadd.f32 %v1909, %v1910
      %v1912 = vrot.slane %v1911, 4
      %v1913 = vadd.f32 %v1911, %v1912
      %v1914 = vrot.slane %v1913, 2
      %v1915 = vadd.f32 %v1913, %v1914
      %v1916 = vrot.slane %v1915, 1
      %v1917 = vadd.f32 %v1915, %v1916
      %v1918 = vmul.f32 %v1691, %v1691
      %v1919 = vmul.f32 %v1694, %v1694
      %v1920 = vmul.f32 %v1699, %v1699
      %v1921 = vmul.f32 %v1702, %v1702
      %v1922 = vmul.f32 %v1707, %v1707
      %v1923 = vmul.f32 %v1710, %v1710
      %v1924 = vmul.f32 %v1715, %v1715
      %v1925 = vmul.f32 %v1718, %v1718
      %v1926 = vmul.f32 %v1723, %v1723
      %v1927 = vmul.f32 %v1726, %v1726
      %v1928 = vmul.f32 %v1731, %v1731
      %v1929 = vmul.f32 %v1734, %v1734
      %v1930 = vmul.f32 %v1739, %v1739
      %v1931 = vmul.f32 %v1742, %v1742
      %v1932 = vmul.f32 %v1747, %v1747
      %v1933 = vmul.f32 %v1750, %v1750
      %v1934 = vmul.f32 %v1755, %v1755
      %v1935 = vmul.f32 %v1758, %v1758
      %v1936 = vmul.f32 %v1763, %v1763
      %v1937 = vmul.f32 %v1766, %v1766
      %v1938 = vmul.f32 %v1771, %v1771
      %v1939 = vmul.f32 %v1774, %v1774
      %v1940 = vmul.f32 %v1779, %v1779
      %v1941 = vmul.f32 %v1782, %v1782
      %v1942 = vmul.f32 %v1787, %v1787
      %v1943 = vmul.f32 %v1790, %v1790
      %v1944 = vmul.f32 %v1795, %v1795
      %v1945 = vmul.f32 %v1798, %v1798
      %v1946 = vmul.f32 %v1803, %v1803
      %v1947 = vmul.f32 %v1806, %v1806
      %v1948 = vmul.f32 %v1811, %v1811
      %v1949 = vmul.f32 %v1814, %v1814
      %v1950 = vsel %vm1060, %v1918, 0.0
      %v1951 = vsel %vm1060, %v1919, 0.0
      %v1952 = vadd.f32 %v1950, %v1951
      %v1953 = vsel %vm1060, %v1920, 0.0
      %v1954 = vadd.f32 %v1952, %v1953
      %v1955 = vsel %vm1060, %v1921, 0.0
      %v1956 = vadd.f32 %v1954, %v1955
      %v1957 = vsel %vm1060, %v1922, 0.0
      %v1958 = vadd.f32 %v1956, %v1957
      %v1959 = vsel %vm1060, %v1923, 0.0
      %v1960 = vadd.f32 %v1958, %v1959
      %v1961 = vsel %vm1060, %v1924, 0.0
      %v1962 = vadd.f32 %v1960, %v1961
      %v1963 = vsel %vm1060, %v1925, 0.0
      %v1964 = vadd.f32 %v1962, %v1963
      %v1965 = vsel %vm1060, %v1926, 0.0
      %v1966 = vadd.f32 %v1964, %v1965
      %v1967 = vsel %vm1060, %v1927, 0.0
      %v1968 = vadd.f32 %v1966, %v1967
      %v1969 = vsel %vm1060, %v1928, 0.0
      %v1970 = vadd.f32 %v1968, %v1969
      %v1971 = vsel %vm1060, %v1929, 0.0
      %v1972 = vadd.f32 %v1970, %v1971
      %v1973 = vsel %vm1060, %v1930, 0.0
      %v1974 = vadd.f32 %v1972, %v1973
      %v1975 = vsel %vm1060, %v1931, 0.0
      %v1976 = vadd.f32 %v1974, %v1975
      %v1977 = vsel %vm1060, %v1932, 0.0
      %v1978 = vadd.f32 %v1976, %v1977
      %v1979 = vsel %vm1060, %v1933, 0.0
      %v1980 = vadd.f32 %v1978, %v1979
      %v1981 = vsel %vm1060, %v1934, 0.0
      %v1982 = vadd.f32 %v1980, %v1981
      %v1983 = vsel %vm1060, %v1935, 0.0
      %v1984 = vadd.f32 %v1982, %v1983
      %v1985 = vsel %vm1060, %v1936, 0.0
      %v1986 = vadd.f32 %v1984, %v1985
      %v1987 = vsel %vm1060, %v1937, 0.0
      %v1988 = vadd.f32 %v1986, %v1987
      %v1989 = vsel %vm1060, %v1938, 0.0
      %v1990 = vadd.f32 %v1988, %v1989
      %v1991 = vsel %vm1060, %v1939, 0.0
      %v1992 = vadd.f32 %v1990, %v1991
      %v1993 = vsel %vm1060, %v1940, 0.0
      %v1994 = vadd.f32 %v1992, %v1993
      %v1995 = vsel %vm1060, %v1941, 0.0
      %v1996 = vadd.f32 %v1994, %v1995
      %v1997 = vsel %vm1060, %v1942, 0.0
      %v1998 = vadd.f32 %v1996, %v1997
      %v1999 = vsel %vm1060, %v1943, 0.0
      %v2000 = vadd.f32 %v1998, %v1999
      %v2001 = vsel %vm1060, %v1944, 0.0
      %v2002 = vadd.f32 %v2000, %v2001
      %v2003 = vsel %vm1060, %v1945, 0.0
      %v2004 = vadd.f32 %v2002, %v2003
      %v2005 = vsel %vm1060, %v1946, 0.0
      %v2006 = vadd.f32 %v2004, %v2005
      %v2007 = vsel %vm1060, %v1947, 0.0
      %v2008 = vadd.f32 %v2006, %v2007
      %v2009 = vsel %vm1060, %v1948, 0.0
      %v2010 = vadd.f32 %v2008, %v2009
      %v2011 = vsel %vm1060, %v1949, 0.0
      %v2012 = vadd.f32 %v2010, %v2011
      %v2013 = vrot.slane %v2012, 4
      %v2014 = vadd.f32 %v2012, %v2013
      %v2015 = vrot.slane %v2014, 2
      %v2016 = vadd.f32 %v2014, %v2015
      %v2017 = vrot.slane %v2016, 1
      %v2018 = vadd.f32 %v2016, %v2017
      %vm2019 = vcmask 1040384
      %v2020 = vsel %vm2019, %v1917, %v2018
      %vm2021 = vcmask 254976
      %2022 = vst.msk [vmem:[%s208] sm:$0x3] %vm2021, %v2020
      %p2023 = scmp.lt.s32.totalorder %s16, 1
      %s2024 = scalar_select %p2023, %s16, 1
      %s2025 = smul.addr %s2024, 32
      %s2026 = smul.addr %s2025, 8
      %s2027 = scalar_lea.vmem %s3, %s2026
      %p2028 = scmp.lt.s32.totalorder %s16, 1
      %s2029 = scalar_select %p2028, %s16, 1
      %s2030 = smul.addr %s2029, 2
      %s2031 = scalar_lea.vmem %s4, %s2030
      // Predicated region
      $region33: #{bottleneck_forward.5} parent=31 // pred_check
        %p2032 = pneg %p102
      $region34: #{bottleneck_forward.5} parent=31 // pred_check_branch
        %2034 = sbr.rel (%p2032) target = $region36
      $region35: #{bottleneck_forward.5} parent=31 // pred_region
        _
      $region36: #{bottleneck_forward.5} parent=31 // pred_fallthru
        _
      // Predicated region
      $region37: #{bottleneck_forward.5} parent=31 // pred_check
        %p2035 = pneg %p128
      $region38: #{bottleneck_forward.5} parent=31 // pred_check_branch
        %2037 = sbr.rel (%p2035) target = $region40
      $region39: #{bottleneck_forward.5} parent=31 // pred_region
        _
      $region40: #{bottleneck_forward.5} parent=31 // pred_fallthru
        _
    $region32: #{bottleneck_forward.5} parent=5 // pred_fallthru
      _
    %p2038 = scmp.le.s32.totalorder 2, %s11
    // Predicated region
    $region41: #{bottleneck_forward.5} parent=5 // pred_check
      %p2039 = pneg %p2038
    $region42: #{bottleneck_forward.5} parent=5 // pred_check_branch
      %2041 = sbr.rel (%p2039) target = $region44
    $region43: #{bottleneck_forward.5} parent=5 // pred_region
      %s2042 = ssub.s32 %s11, 2
      // Predicated region
      $region45: #{bottleneck_forward.5} parent=43 // pred_check
        %p2043 = pneg %p108
      $region46: #{bottleneck_forward.5} parent=43 // pred_check_branch
        %2045 = sbr.rel (%p2043) target = $region48
      $region47: #{bottleneck_forward.5} parent=43 // pred_region
        %p2046 = scmp.lt.s32.totalorder %s17, 1
        %s2047 = scalar_select %p2046, %s17, 1
        %s2048 = smul.addr %s2047, 32
        %s2049 = smul.addr %s2048, 8
        %s2050 = scalar_lea.vmem %s3, %s2049
      $region48: #{bottleneck_forward.5} parent=43 // pred_fallthru
        _
      // Predicated region
      $region49: #{bottleneck_forward.5} parent=43 // pred_check
        %p2051 = pneg %p134
      $region50: #{bottleneck_forward.5} parent=43 // pred_check_branch
        %2053 = sbr.rel (%p2051) target = $region52
      $region51: #{bottleneck_forward.5} parent=43 // pred_region
        %p2054 = scmp.lt.s32.totalorder %s17, 1
        %s2055 = scalar_select %p2054, %s17, 1
        %s2056 = smul.addr %s2055, 2
        %s2057 = scalar_lea.vmem %s4, %s2056
      $region52: #{bottleneck_forward.5} parent=43 // pred_fallthru
        _
    $region44: #{bottleneck_forward.5} parent=5 // pred_fallthru
      _
  $region6: #{bottleneck_forward.5} parent=0 // loop_footer
    %s15 = sadd.s32 1, %s11
  $region7: #{bottleneck_forward.5} parent=0 // loop_footer_branch
    %10 = sbr.rel target = $region3
  $region8: #{bottleneck_forward.5} parent=0 // loop_exit
    _

</llo_original>
